<compile_context>
chip_gen: v6e
topology: v6e:2x2x1
jax: 0.10.0
libtpu: 0.0.40
codegen_flags: <defaults>
</compile_context>

<pallas_src>
import functools

import jax
import jax.numpy as jnp
from jax.experimental import pallas as pl
from jax.experimental.pallas import tpu as pltpu


# ----------------------------------------------------------------------------
# Fused Pallas kernel: all unrolled stages (ResNet prior + CG data consistency)
# ----------------------------------------------------------------------------
def _dgl_fused_kernel(lamda, n_cg, H, W,
                      x_ref, zf_ref, d_ref, mask_ref,
                      w1_ref, b1_ref, w2_ref, b2_ref, w3_ref, b3_ref,
                      out_ref):
    NPIX = H * W
    stage = pl.program_id(1)          # grid = (batch: parallel, stage: arbitrary)

    @pl.when(stage == 0)
    def _seed():
        # Seed the resident image; out_ref stays in VMEM across all stages of
        # this batch element (output index_map depends only on the batch axis).
        out_ref[...] = x_ref[...]

    def conv3x3(act, w_ref, b_ref):
        """3x3 same-conv as 9 accumulated MXU matmuls on a lane-dense map.

        act    : (cin, H*W)  f32, pixels along lanes.
        w_ref  : (9, cout, cin) bf16 ref — per-tap transposed weights.
        b_ref  : (cout, 1)   f32 ref.
        returns: (cout, H*W) f32.
        """
        acc = None
        for idx in range(9):
            dy, dx = idx // 3 - 1, idx % 3 - 1
            if dy == 0 and dx == 0:
                tap = act
            else:
                # Shift so lane (y*W + x) holds act[:, (y+dy)*W + (x+dx)];
                # out-of-image positions are zeroed by the 0/1 border mask
                # (which also removes the wrap-around of the lane rotation).
                shift = (-(dy * W + dx)) % NPIX
                rolled = pltpu.roll(act, shift, axis=1)            # XLU slot
                tap = rolled * mask_ref[idx:idx + 1, :]            # zero padding
            part = jax.lax.dot_general(
                w_ref[idx], tap.astype(jnp.bfloat16),              # bf16 at MXU only
                dimension_numbers=(((1,), (0,)), ((), ())),
                preferred_element_type=jnp.float32)                # (cout, H*W)
            acc = part if acc is None else acc + part
        return acc + b_ref[...]                                    # bias, lane bcast

    # ---------------- ResNet prior on the resident image --------------------
    x_t = out_ref[...]                                             # (2E, H*W)
    h = jnp.maximum(conv3x3(x_t, w1_ref, b1_ref), 0.0)
    h = jnp.maximum(conv3x3(h, w2_ref, b2_ref), 0.0)
    prior = conv3x3(h, w3_ref, b3_ref) + x_t                       # residual

    # ---------------- Data consistency: CG solve ----------------------------
    # Solve (A^H A + lamda I) x = zf + lamda * prior, initialized at x_t.
    dl = d_ref[...] + lamda                 # hoisted diagonal of the normal op
    rhs = zf_ref[...] + lamda * prior

    x0 = x_t
    r0 = rhs - dl * x0
    p0 = r0
    rs0 = jnp.sum(r0 * r0)

    def cg_body(_, carry):
        xk, rk, pk, rsk = carry
        ap = dl * pk
        alpha = rsk / (jnp.sum(pk * ap) + 1e-12)
        xk = xk + alpha * pk
        rk = rk - alpha * ap
        rsn = jnp.sum(rk * rk)
        beta = rsn / (rsk + 1e-12)
        pk = rk + beta * pk
        return (xk, rk, pk, rsn)

    # Fully unrolled: short fixed trip count keeps the serial alpha/beta
    # dependency chain visible to the LLO scheduler.
    xf, _, _, _ = jax.lax.fori_loop(0, n_cg, cg_body, (x0, r0, p0, rs0),
                                    unroll=True)
    out_ref[...] = xf                       # unmasked, lane-dense store


# ----------------------------------------------------------------------------
# Wrappers: complex <-> lane-dense channel views, fused pallas_call over grid
# ----------------------------------------------------------------------------
def _complex_to_channels_t(x):
    """(B,H,W,E) complex -> (2E, B*H*W) float32: channels first, pixels in lanes."""
    B, H, W, E = x.shape
    xr = jnp.stack([jnp.real(x), jnp.imag(x)], axis=-1)            # (B,H,W,E,2)
    xr = xr.reshape(B, H, W, 2 * E)                                # [e0_re, e0_im, ...]
    return xr.transpose(3, 0, 1, 2).reshape(2 * E, B * H * W).astype(jnp.float32)


def _channels_t_to_complex(x_t, B, H, W, num_emaps):
    C = 2 * num_emaps
    x = x_t.reshape(C, B, H, W).transpose(1, 2, 3, 0)              # (B,H,W,2E)
    xr = x.reshape(B, H, W, num_emaps, 2)
    return jax.lax.complex(xr[..., 0], xr[..., 1])


def _border_masks(H, W):
    """(9, H*W) float32 0/1 masks implementing zero padding for each 3x3 tap."""
    yy, xx = jnp.meshgrid(jnp.arange(H), jnp.arange(W), indexing="ij")
    yy = yy.reshape(-1)
    xx = xx.reshape(-1)
    rows = []
    for dy in (-1, 0, 1):
        for dx in (-1, 0, 1):
            valid = ((xx + dx >= 0) & (xx + dx < W) &
                     (yy + dy >= 0) & (yy + dy < H))
            rows.append(valid.astype(jnp.float32))
    return jnp.stack(rows)                                         # (9, H*W)


def dgl_unrolled_forward(image, zf_image, a_weights, stage_params, step_sizes,
                         lamda, dims, num_emaps, num_inf_steps, n_cg=8):
    """upto=True path of DGLUnrolledRep.forward: all stages in one pallas_call."""
    del dims, step_sizes        # step_sizes is read but never used in the reference forward
    B, H, W, E = image.shape
    C = 2 * E
    NPIX = H * W
    assert NPIX % 128 == 0, "H*W must be a multiple of 128 for the lane-dense layout"
    chid = stage_params[0]["w1"].shape[-1]

    # Lane-dense (channels, pixels) views built once in JAX outside the kernel.
    x_t = _complex_to_channels_t(image)                            # (C, B*H*W)
    zf_t = _complex_to_channels_t(zf_image)
    d_t = a_weights.transpose(3, 0, 1, 2).reshape(C, B * NPIX).astype(jnp.float32)
    masks = _border_masks(H, W)                                    # (9, H*W)

    # Per-stage conv weights in (stage, tap, cout, cin) layout (transposed so
    # each per-tap matmul is w_tap (cout,cin) @ tap (cin,pixels)), bf16 for MXU.
    def stack_w(name, cin_, cout_):
        return jnp.stack([p[name].reshape(9, cin_, cout_).transpose(0, 2, 1)
                          for p in stage_params]).astype(jnp.bfloat16)

    w1 = stack_w("w1", C, chid)                                    # (S, 9, chid, C)
    w2 = stack_w("w2", chid, chid)                                 # (S, 9, chid, chid)
    w3 = stack_w("w3", chid, C)                                    # (S, 9, C, chid)
    b1 = jnp.stack([p["b1"].reshape(chid, 1) for p in stage_params]).astype(jnp.float32)
    b2 = jnp.stack([p["b2"].reshape(chid, 1) for p in stage_params]).astype(jnp.float32)
    b3 = jnp.stack([p["b3"].reshape(C, 1) for p in stage_params]).astype(jnp.float32)

    kernel = functools.partial(_dgl_fused_kernel, float(lamda), int(n_cg), H, W)

    img_spec = pl.BlockSpec((C, NPIX), lambda b, s: (0, b))        # per-batch lane-dense block

    out_t = pl.pallas_call(
        kernel,
        out_shape=jax.ShapeDtypeStruct((C, B * NPIX), jnp.float32),
        grid_spec=pltpu.PrefetchScalarGridSpec(
            num_scalar_prefetch=0,
            grid=(B, num_inf_steps),                               # (parallel, arbitrary)
            in_specs=[
                img_spec, img_spec, img_spec,                      # x, zf, d
                pl.BlockSpec((9, NPIX), lambda b, s: (0, 0)),      # border masks
                pl.BlockSpec((None, 9, chid, C), lambda b, s: (s, 0, 0, 0)),     # w1
                pl.BlockSpec((None, chid, 1), lambda b, s: (s, 0, 0)),           # b1
                pl.BlockSpec((None, 9, chid, chid), lambda b, s: (s, 0, 0, 0)),  # w2
                pl.BlockSpec((None, chid, 1), lambda b, s: (s, 0, 0)),           # b2
                pl.BlockSpec((None, 9, C, chid), lambda b, s: (s, 0, 0, 0)),     # w3
                pl.BlockSpec((None, C, 1), lambda b, s: (s, 0, 0)),              # b3
            ],
            out_specs=pl.BlockSpec((C, NPIX), lambda b, s: (0, b)),
        ),
        # The initial image is only read at stage 0 of each batch element;
        # donate its HBM buffer to the output (no second image-sized buffer).
        input_output_aliases={0: 0},
        compiler_params=pltpu.CompilerParams(
            dimension_semantics=("parallel", "arbitrary"),         # v7x: 2 TCs split batch
            vmem_limit_bytes=32 * 1024 * 1024),                    # safe on v7x's 64 MiB
    )(x_t, zf_t, d_t, masks, w1, b1, w2, b2, w3, b3)

    return _channels_t_to_complex(out_t, B, H, W, num_emaps)


# ----------------------------------------------------------------------------
# Deterministic parameter init (synthetic "resnets" for each stage)
# ----------------------------------------------------------------------------
def init_stage_params(key, cin, chid):
    ks = jax.random.split(key, 3)

    def conv_w(k, ci, co):
        scale = 1.0 / (3.0 * 3.0 * ci) ** 0.5
        return scale * jax.random.normal(k, (3, 3, ci, co), jnp.float32)

    return {
        "w1": conv_w(ks[0], cin, chid), "b1": jnp.zeros((1, chid), jnp.float32),
        "w2": conv_w(ks[1], chid, chid), "b2": jnp.zeros((1, chid), jnp.float32),
        "w3": conv_w(ks[2], chid, cin), "b3": jnp.zeros((1, cin), jnp.float32),
    }


if __name__ == "__main__":
    B, H, W = 2, 16, 16
    num_emaps = 2
    num_inf_steps = 2
    hidden = 32
    lamda = 0.05
    cin = 2 * num_emaps
    dims = (B, H, W, num_emaps)

    key = jax.random.PRNGKey(0)
    k_img_r, k_img_i, k_zf_r, k_zf_i, k_w, k_p = jax.random.split(key, 6)

    image = jax.lax.complex(
        jax.random.normal(k_img_r, (B, H, W, num_emaps), jnp.float32),
        jax.random.normal(k_img_i, (B, H, W, num_emaps), jnp.float32))
    zf_image = jax.lax.complex(
        jax.random.normal(k_zf_r, (B, H, W, num_emaps), jnp.float32),
        jax.random.normal(k_zf_i, (B, H, W, num_emaps), jnp.float32))

    # Diagonal image-domain proxy for A^H A (same weight for re/im of each map).
    d = jax.random.uniform(k_w, (B, H, W, num_emaps), jnp.float32,
                           minval=0.1, maxval=1.0)
    a_weights = jnp.repeat(d, 2, axis=-1)                          # (B, H, W, 2E)

    stage_keys = jax.random.split(k_p, num_inf_steps)
    stage_params = [init_stage_params(k, cin, hidden) for k in stage_keys]
    step_sizes = [0.1 for _ in range(num_inf_steps)]               # unused in forward

    out = dgl_unrolled_forward(image, zf_image, a_weights, stage_params,
                               step_sizes, lamda, dims, num_emaps,
                               num_inf_steps, n_cg=8)
    out = jax.block_until_ready(out)

    assert out.shape == (B, H, W, num_emaps)
    assert bool(jnp.all(jnp.isfinite(jnp.abs(out))))
    print("KERNEL_OK")
</pallas_src>

<mosaic_0001>
module attributes {stable_mosaic.version = 11 : i64} {
  func.func @_dgl_fused_kernel(%arg0: i32, %arg1: i32, %arg2: memref<4x256xf32, #tpu.memory_space<vmem>>, %arg3: memref<4x256xf32, #tpu.memory_space<vmem>>, %arg4: memref<4x256xf32, #tpu.memory_space<vmem>>, %arg5: memref<9x256xf32, #tpu.memory_space<vmem>>, %arg6: memref<1x9x32x4xbf16, #tpu.memory_space<vmem>>, %arg7: memref<1x32x1xf32, #tpu.memory_space<vmem>>, %arg8: memref<1x9x32x32xbf16, #tpu.memory_space<vmem>>, %arg9: memref<1x32x1xf32, #tpu.memory_space<vmem>>, %arg10: memref<1x9x4x32xbf16, #tpu.memory_space<vmem>>, %arg11: memref<1x4x1xf32, #tpu.memory_space<vmem>>, %arg12: memref<4x256xf32, #tpu.memory_space<vmem>>) attributes {dimension_semantics = [#tpu.dimension_semantics<parallel>, #tpu.dimension_semantics<arbitrary>], iteration_bounds = array<i64: 2, 2>, scalar_prefetch = 0 : i64, scratch_operands = 0 : i64, tpu.core_type = #tpu.core_type<tc>, window_params = [{transform_indices = @transform_0, window_bounds = array<i64: 4, 256>}, {transform_indices = @transform_1, window_bounds = array<i64: 4, 256>}, {transform_indices = @transform_2, window_bounds = array<i64: 4, 256>}, {pipeline_mode = #tpu.pipeline_mode<synchronous>, transform_indices = @transform_3, window_bounds = array<i64: 9, 256>}, {transform_indices = @transform_4, window_bounds = array<i64: 1, 9, 32, 4>}, {transform_indices = @transform_5, window_bounds = array<i64: 1, 32, 1>}, {transform_indices = @transform_6, window_bounds = array<i64: 1, 9, 32, 32>}, {transform_indices = @transform_7, window_bounds = array<i64: 1, 32, 1>}, {transform_indices = @transform_8, window_bounds = array<i64: 1, 9, 4, 32>}, {transform_indices = @transform_9, window_bounds = array<i64: 1, 4, 1>}, {transform_indices = @transform_10, window_bounds = array<i64: 4, 256>}]} {
    %c0_i32 = arith.constant 0 : i32
    %0 = arith.cmpi eq, %arg1, %c0_i32 : i32
    %1 = arith.extui %0 : i1 to i32
    %c0_i32_0 = arith.constant 0 : i32
    %2 = arith.cmpi ne, %1, %c0_i32_0 : i32
    scf.if %2 {
      %c0_246 = arith.constant 0 : index
      %c0_247 = arith.constant 0 : index
      %456 = vector.load %arg2[%c0_246, %c0_247] : memref<4x256xf32, #tpu.memory_space<vmem>>, vector<4x256xf32>
      %c0_248 = arith.constant 0 : index
      %c0_249 = arith.constant 0 : index
      %457 = vector.load %arg12[%c0_248, %c0_249] : memref<4x256xf32, #tpu.memory_space<vmem>>, vector<4x256xf32>
      tpu.vector_store %arg12[%c0_248, %c0_249], %456 {strides = array<i32>} : memref<4x256xf32, #tpu.memory_space<vmem>>, vector<4x256xf32>,
    } else {
    }
    %c0 = arith.constant 0 : index
    %c0_1 = arith.constant 0 : index
    %3 = vector.load %arg12[%c0, %c0_1] : memref<4x256xf32, #tpu.memory_space<vmem>>, vector<4x256xf32>
    %c17_i32 = arith.constant 17 : i32
    %4 = tpu.dynamic_rotate %3 by %c17_i32 dim 1 : vector<4x256xf32>, i32 -> vector<4x256xf32>
    %c0_2 = arith.constant 0 : index
    %c0_3 = arith.constant 0 : index
    %5 = vector.load %arg5[%c0_2, %c0_3] : memref<9x256xf32, #tpu.memory_space<vmem>>, vector<1x256xf32>
    %6 = vector.broadcast %5 : vector<1x256xf32> to vector<4x256xf32>
    %7 = arith.mulf %4, %6 : vector<4x256xf32>
    %c0_4 = arith.constant 0 : index
    %c0_5 = arith.constant 0 : index
    %c0_6 = arith.constant 0 : index
    %c0_7 = arith.constant 0 : index
    %8 = vector.load %arg6[%c0_4, %c0_5, %c0_6, %c0_7] : memref<1x9x32x4xbf16, #tpu.memory_space<vmem>>, vector<1x1x32x4xbf16>
    %9 = vector.shape_cast %8 : vector<1x1x32x4xbf16> to vector<32x4xbf16>
    %10 = arith.truncf %7 : vector<4x256xf32> to vector<4x256xbf16>
    %cst = arith.constant dense<0.000000e+00> : vector<32x256xf32>
    %11 = tpu.matmul %9, %10, %cst {dimension_numbers = #tpu.dot_dimension_numbers<[1], [0], [0], [1], [0, 0, 1, 1], [], []>} : vector<32x4xbf16>, vector<4x256xbf16>, vector<32x256xf32> -> vector<32x256xf32>
    %c16_i32 = arith.constant 16 : i32
    %12 = tpu.dynamic_rotate %3 by %c16_i32 dim 1 : vector<4x256xf32>, i32 -> vector<4x256xf32>
    %c1 = arith.constant 1 : index
    %c0_8 = arith.constant 0 : index
    %13 = vector.load %arg5[%c1, %c0_8] : memref<9x256xf32, #tpu.memory_space<vmem>>, vector<1x256xf32>
    %14 = vector.broadcast %13 : vector<1x256xf32> to vector<4x256xf32>
    %15 = arith.mulf %12, %14 : vector<4x256xf32>
    %c0_9 = arith.constant 0 : index
    %c1_10 = arith.constant 1 : index
    %c0_11 = arith.constant 0 : index
    %c0_12 = arith.constant 0 : index
    %16 = vector.load %arg6[%c0_9, %c1_10, %c0_11, %c0_12] : memref<1x9x32x4xbf16, #tpu.memory_space<vmem>>, vector<1x1x32x4xbf16>
    %17 = vector.shape_cast %16 : vector<1x1x32x4xbf16> to vector<32x4xbf16>
    %18 = arith.truncf %15 : vector<4x256xf32> to vector<4x256xbf16>
    %cst_13 = arith.constant dense<0.000000e+00> : vector<32x256xf32>
    %19 = tpu.matmul %17, %18, %cst_13 {dimension_numbers = #tpu.dot_dimension_numbers<[1], [0], [0], [1], [0, 0, 1, 1], [], []>} : vector<32x4xbf16>, vector<4x256xbf16>, vector<32x256xf32> -> vector<32x256xf32>
    %20 = arith.addf %11, %19 : vector<32x256xf32>
    %c15_i32 = arith.constant 15 : i32
    %21 = tpu.dynamic_rotate %3 by %c15_i32 dim 1 : vector<4x256xf32>, i32 -> vector<4x256xf32>
    %c2 = arith.constant 2 : index
    %c0_14 = arith.constant 0 : index
    %22 = vector.load %arg5[%c2, %c0_14] : memref<9x256xf32, #tpu.memory_space<vmem>>, vector<1x256xf32>
    %23 = vector.broadcast %22 : vector<1x256xf32> to vector<4x256xf32>
    %24 = arith.mulf %21, %23 : vector<4x256xf32>
    %c0_15 = arith.constant 0 : index
    %c2_16 = arith.constant 2 : index
    %c0_17 = arith.constant 0 : index
    %c0_18 = arith.constant 0 : index
    %25 = vector.load %arg6[%c0_15, %c2_16, %c0_17, %c0_18] : memref<1x9x32x4xbf16, #tpu.memory_space<vmem>>, vector<1x1x32x4xbf16>
    %26 = vector.shape_cast %25 : vector<1x1x32x4xbf16> to vector<32x4xbf16>
    %27 = arith.truncf %24 : vector<4x256xf32> to vector<4x256xbf16>
    %cst_19 = arith.constant dense<0.000000e+00> : vector<32x256xf32>
    %28 = tpu.matmul %26, %27, %cst_19 {dimension_numbers = #tpu.dot_dimension_numbers<[1], [0], [0], [1], [0, 0, 1, 1], [], []>} : vector<32x4xbf16>, vector<4x256xbf16>, vector<32x256xf32> -> vector<32x256xf32>
    %29 = arith.addf %20, %28 : vector<32x256xf32>
    %c1_i32 = arith.constant 1 : i32
    %30 = tpu.dynamic_rotate %3 by %c1_i32 dim 1 : vector<4x256xf32>, i32 -> vector<4x256xf32>
    %c3 = arith.constant 3 : index
    %c0_20 = arith.constant 0 : index
    %31 = vector.load %arg5[%c3, %c0_20] : memref<9x256xf32, #tpu.memory_space<vmem>>, vector<1x256xf32>
    %32 = vector.broadcast %31 : vector<1x256xf32> to vector<4x256xf32>
    %33 = arith.mulf %30, %32 : vector<4x256xf32>
    %c0_21 = arith.constant 0 : index
    %c3_22 = arith.constant 3 : index
    %c0_23 = arith.constant 0 : index
    %c0_24 = arith.constant 0 : index
    %34 = vector.load %arg6[%c0_21, %c3_22, %c0_23, %c0_24] : memref<1x9x32x4xbf16, #tpu.memory_space<vmem>>, vector<1x1x32x4xbf16>
    %35 = vector.shape_cast %34 : vector<1x1x32x4xbf16> to vector<32x4xbf16>
    %36 = arith.truncf %33 : vector<4x256xf32> to vector<4x256xbf16>
    %cst_25 = arith.constant dense<0.000000e+00> : vector<32x256xf32>
    %37 = tpu.matmul %35, %36, %cst_25 {dimension_numbers = #tpu.dot_dimension_numbers<[1], [0], [0], [1], [0, 0, 1, 1], [], []>} : vector<32x4xbf16>, vector<4x256xbf16>, vector<32x256xf32> -> vector<32x256xf32>
    %38 = arith.addf %29, %37 : vector<32x256xf32>
    %c0_26 = arith.constant 0 : index
    %c4 = arith.constant 4 : index
    %c0_27 = arith.constant 0 : index
    %c0_28 = arith.constant 0 : index
    %39 = vector.load %arg6[%c0_26, %c4, %c0_27, %c0_28] : memref<1x9x32x4xbf16, #tpu.memory_space<vmem>>, vector<1x1x32x4xbf16>
    %40 = vector.shape_cast %39 : vector<1x1x32x4xbf16> to vector<32x4xbf16>
    %41 = arith.truncf %3 : vector<4x256xf32> to vector<4x256xbf16>
    %cst_29 = arith.constant dense<0.000000e+00> : vector<32x256xf32>
    %42 = tpu.matmul %40, %41, %cst_29 {dimension_numbers = #tpu.dot_dimension_numbers<[1], [0], [0], [1], [0, 0, 1, 1], [], []>} : vector<32x4xbf16>, vector<4x256xbf16>, vector<32x256xf32> -> vector<32x256xf32>
    %43 = arith.addf %38, %42 : vector<32x256xf32>
    %c255_i32 = arith.constant 255 : i32
    %44 = tpu.dynamic_rotate %3 by %c255_i32 dim 1 : vector<4x256xf32>, i32 -> vector<4x256xf32>
    %c5 = arith.constant 5 : index
    %c0_30 = arith.constant 0 : index
    %45 = vector.load %arg5[%c5, %c0_30] : memref<9x256xf32, #tpu.memory_space<vmem>>, vector<1x256xf32>
    %46 = vector.broadcast %45 : vector<1x256xf32> to vector<4x256xf32>
    %47 = arith.mulf %44, %46 : vector<4x256xf32>
    %c0_31 = arith.constant 0 : index
    %c5_32 = arith.constant 5 : index
    %c0_33 = arith.constant 0 : index
    %c0_34 = arith.constant 0 : index
    %48 = vector.load %arg6[%c0_31, %c5_32, %c0_33, %c0_34] : memref<1x9x32x4xbf16, #tpu.memory_space<vmem>>, vector<1x1x32x4xbf16>
    %49 = vector.shape_cast %48 : vector<1x1x32x4xbf16> to vector<32x4xbf16>
    %50 = arith.truncf %47 : vector<4x256xf32> to vector<4x256xbf16>
    %cst_35 = arith.constant dense<0.000000e+00> : vector<32x256xf32>
    %51 = tpu.matmul %49, %50, %cst_35 {dimension_numbers = #tpu.dot_dimension_numbers<[1], [0], [0], [1], [0, 0, 1, 1], [], []>} : vector<32x4xbf16>, vector<4x256xbf16>, vector<32x256xf32> -> vector<32x256xf32>
    %52 = arith.addf %43, %51 : vector<32x256xf32>
    %c241_i32 = arith.constant 241 : i32
    %53 = tpu.dynamic_rotate %3 by %c241_i32 dim 1 : vector<4x256xf32>, i32 -> vector<4x256xf32>
    %c6 = arith.constant 6 : index
    %c0_36 = arith.constant 0 : index
    %54 = vector.load %arg5[%c6, %c0_36] : memref<9x256xf32, #tpu.memory_space<vmem>>, vector<1x256xf32>
    %55 = vector.broadcast %54 : vector<1x256xf32> to vector<4x256xf32>
    %56 = arith.mulf %53, %55 : vector<4x256xf32>
    %c0_37 = arith.constant 0 : index
    %c6_38 = arith.constant 6 : index
    %c0_39 = arith.constant 0 : index
    %c0_40 = arith.constant 0 : index
    %57 = vector.load %arg6[%c0_37, %c6_38, %c0_39, %c0_40] : memref<1x9x32x4xbf16, #tpu.memory_space<vmem>>, vector<1x1x32x4xbf16>
    %58 = vector.shape_cast %57 : vector<1x1x32x4xbf16> to vector<32x4xbf16>
    %59 = arith.truncf %56 : vector<4x256xf32> to vector<4x256xbf16>
    %cst_41 = arith.constant dense<0.000000e+00> : vector<32x256xf32>
    %60 = tpu.matmul %58, %59, %cst_41 {dimension_numbers = #tpu.dot_dimension_numbers<[1], [0], [0], [1], [0, 0, 1, 1], [], []>} : vector<32x4xbf16>, vector<4x256xbf16>, vector<32x256xf32> -> vector<32x256xf32>
    %61 = arith.addf %52, %60 : vector<32x256xf32>
    %c240_i32 = arith.constant 240 : i32
    %62 = tpu.dynamic_rotate %3 by %c240_i32 dim 1 : vector<4x256xf32>, i32 -> vector<4x256xf32>
    %c7 = arith.constant 7 : index
    %c0_42 = arith.constant 0 : index
    %63 = vector.load %arg5[%c7, %c0_42] : memref<9x256xf32, #tpu.memory_space<vmem>>, vector<1x256xf32>
    %64 = vector.broadcast %63 : vector<1x256xf32> to vector<4x256xf32>
    %65 = arith.mulf %62, %64 : vector<4x256xf32>
    %c0_43 = arith.constant 0 : index
    %c7_44 = arith.constant 7 : index
    %c0_45 = arith.constant 0 : index
    %c0_46 = arith.constant 0 : index
    %66 = vector.load %arg6[%c0_43, %c7_44, %c0_45, %c0_46] : memref<1x9x32x4xbf16, #tpu.memory_space<vmem>>, vector<1x1x32x4xbf16>
    %67 = vector.shape_cast %66 : vector<1x1x32x4xbf16> to vector<32x4xbf16>
    %68 = arith.truncf %65 : vector<4x256xf32> to vector<4x256xbf16>
    %cst_47 = arith.constant dense<0.000000e+00> : vector<32x256xf32>
    %69 = tpu.matmul %67, %68, %cst_47 {dimension_numbers = #tpu.dot_dimension_numbers<[1], [0], [0], [1], [0, 0, 1, 1], [], []>} : vector<32x4xbf16>, vector<4x256xbf16>, vector<32x256xf32> -> vector<32x256xf32>
    %70 = arith.addf %61, %69 : vector<32x256xf32>
    %c239_i32 = arith.constant 239 : i32
    %71 = tpu.dynamic_rotate %3 by %c239_i32 dim 1 : vector<4x256xf32>, i32 -> vector<4x256xf32>
    %c8 = arith.constant 8 : index
    %c0_48 = arith.constant 0 : index
    %72 = vector.load %arg5[%c8, %c0_48] : memref<9x256xf32, #tpu.memory_space<vmem>>, vector<1x256xf32>
    %73 = vector.broadcast %72 : vector<1x256xf32> to vector<4x256xf32>
    %74 = arith.mulf %71, %73 : vector<4x256xf32>
    %c0_49 = arith.constant 0 : index
    %c8_50 = arith.constant 8 : index
    %c0_51 = arith.constant 0 : index
    %c0_52 = arith.constant 0 : index
    %75 = vector.load %arg6[%c0_49, %c8_50, %c0_51, %c0_52] : memref<1x9x32x4xbf16, #tpu.memory_space<vmem>>, vector<1x1x32x4xbf16>
    %76 = vector.shape_cast %75 : vector<1x1x32x4xbf16> to vector<32x4xbf16>
    %77 = arith.truncf %74 : vector<4x256xf32> to vector<4x256xbf16>
    %cst_53 = arith.constant dense<0.000000e+00> : vector<32x256xf32>
    %78 = tpu.matmul %76, %77, %cst_53 {dimension_numbers = #tpu.dot_dimension_numbers<[1], [0], [0], [1], [0, 0, 1, 1], [], []>} : vector<32x4xbf16>, vector<4x256xbf16>, vector<32x256xf32> -> vector<32x256xf32>
    %79 = arith.addf %70, %78 : vector<32x256xf32>
    %c0_54 = arith.constant 0 : index
    %c0_55 = arith.constant 0 : index
    %c0_56 = arith.constant 0 : index
    %80 = vector.load %arg7[%c0_54, %c0_55, %c0_56] : memref<1x32x1xf32, #tpu.memory_space<vmem>>, vector<1x32x1xf32>
    %81 = vector.shape_cast %80 : vector<1x32x1xf32> to vector<32x1xf32>
    %82 = vector.broadcast %81 : vector<32x1xf32> to vector<32x256xf32>
    %83 = arith.addf %79, %82 : vector<32x256xf32>
    %cst_57 = arith.constant 0.000000e+00 : f32
    %84 = vector.broadcast %cst_57 : f32 to vector<32x256xf32>
    %85 = arith.maximumf %83, %84 : vector<32x256xf32>
    %c17_i32_58 = arith.constant 17 : i32
    %86 = tpu.dynamic_rotate %85 by %c17_i32_58 dim 1 : vector<32x256xf32>, i32 -> vector<32x256xf32>
    %c0_59 = arith.constant 0 : index
    %c0_60 = arith.constant 0 : index
    %87 = vector.load %arg5[%c0_59, %c0_60] : memref<9x256xf32, #tpu.memory_space<vmem>>, vector<1x256xf32>
    %88 = vector.broadcast %87 : vector<1x256xf32> to vector<32x256xf32>
    %89 = arith.mulf %86, %88 : vector<32x256xf32>
    %c0_61 = arith.constant 0 : index
    %c0_62 = arith.constant 0 : index
    %c0_63 = arith.constant 0 : index
    %c0_64 = arith.constant 0 : index
    %90 = vector.load %arg8[%c0_61, %c0_62, %c0_63, %c0_64] : memref<1x9x32x32xbf16, #tpu.memory_space<vmem>>, vector<1x1x32x32xbf16>
    %91 = vector.shape_cast %90 : vector<1x1x32x32xbf16> to vector<32x32xbf16>
    %92 = arith.truncf %89 : vector<32x256xf32> to vector<32x256xbf16>
    %cst_65 = arith.constant dense<0.000000e+00> : vector<32x256xf32>
    %93 = tpu.matmul %91, %92, %cst_65 {dimension_numbers = #tpu.dot_dimension_numbers<[1], [0], [0], [1], [0, 0, 1, 1], [], []>} : vector<32x32xbf16>, vector<32x256xbf16>, vector<32x256xf32> -> vector<32x256xf32>
    %c16_i32_66 = arith.constant 16 : i32
    %94 = tpu.dynamic_rotate %85 by %c16_i32_66 dim 1 : vector<32x256xf32>, i32 -> vector<32x256xf32>
    %c1_67 = arith.constant 1 : index
    %c0_68 = arith.constant 0 : index
    %95 = vector.load %arg5[%c1_67, %c0_68] : memref<9x256xf32, #tpu.memory_space<vmem>>, vector<1x256xf32>
    %96 = vector.broadcast %95 : vector<1x256xf32> to vector<32x256xf32>
    %97 = arith.mulf %94, %96 : vector<32x256xf32>
    %c0_69 = arith.constant 0 : index
    %c1_70 = arith.constant 1 : index
    %c0_71 = arith.constant 0 : index
    %c0_72 = arith.constant 0 : index
    %98 = vector.load %arg8[%c0_69, %c1_70, %c0_71, %c0_72] : memref<1x9x32x32xbf16, #tpu.memory_space<vmem>>, vector<1x1x32x32xbf16>
    %99 = vector.shape_cast %98 : vector<1x1x32x32xbf16> to vector<32x32xbf16>
    %100 = arith.truncf %97 : vector<32x256xf32> to vector<32x256xbf16>
    %cst_73 = arith.constant dense<0.000000e+00> : vector<32x256xf32>
    %101 = tpu.matmul %99, %100, %cst_73 {dimension_numbers = #tpu.dot_dimension_numbers<[1], [0], [0], [1], [0, 0, 1, 1], [], []>} : vector<32x32xbf16>, vector<32x256xbf16>, vector<32x256xf32> -> vector<32x256xf32>
    %102 = arith.addf %93, %101 : vector<32x256xf32>
    %c15_i32_74 = arith.constant 15 : i32
    %103 = tpu.dynamic_rotate %85 by %c15_i32_74 dim 1 : vector<32x256xf32>, i32 -> vector<32x256xf32>
    %c2_75 = arith.constant 2 : index
    %c0_76 = arith.constant 0 : index
    %104 = vector.load %arg5[%c2_75, %c0_76] : memref<9x256xf32, #tpu.memory_space<vmem>>, vector<1x256xf32>
    %105 = vector.broadcast %104 : vector<1x256xf32> to vector<32x256xf32>
    %106 = arith.mulf %103, %105 : vector<32x256xf32>
    %c0_77 = arith.constant 0 : index
    %c2_78 = arith.constant 2 : index
    %c0_79 = arith.constant 0 : index
    %c0_80 = arith.constant 0 : index
    %107 = vector.load %arg8[%c0_77, %c2_78, %c0_79, %c0_80] : memref<1x9x32x32xbf16, #tpu.memory_space<vmem>>, vector<1x1x32x32xbf16>
    %108 = vector.shape_cast %107 : vector<1x1x32x32xbf16> to vector<32x32xbf16>
    %109 = arith.truncf %106 : vector<32x256xf32> to vector<32x256xbf16>
    %cst_81 = arith.constant dense<0.000000e+00> : vector<32x256xf32>
    %110 = tpu.matmul %108, %109, %cst_81 {dimension_numbers = #tpu.dot_dimension_numbers<[1], [0], [0], [1], [0, 0, 1, 1], [], []>} : vector<32x32xbf16>, vector<32x256xbf16>, vector<32x256xf32> -> vector<32x256xf32>
    %111 = arith.addf %102, %110 : vector<32x256xf32>
    %c1_i32_82 = arith.constant 1 : i32
    %112 = tpu.dynamic_rotate %85 by %c1_i32_82 dim 1 : vector<32x256xf32>, i32 -> vector<32x256xf32>
    %c3_83 = arith.constant 3 : index
    %c0_84 = arith.constant 0 : index
    %113 = vector.load %arg5[%c3_83, %c0_84] : memref<9x256xf32, #tpu.memory_space<vmem>>, vector<1x256xf32>
    %114 = vector.broadcast %113 : vector<1x256xf32> to vector<32x256xf32>
    %115 = arith.mulf %112, %114 : vector<32x256xf32>
    %c0_85 = arith.constant 0 : index
    %c3_86 = arith.constant 3 : index
    %c0_87 = arith.constant 0 : index
    %c0_88 = arith.constant 0 : index
    %116 = vector.load %arg8[%c0_85, %c3_86, %c0_87, %c0_88] : memref<1x9x32x32xbf16, #tpu.memory_space<vmem>>, vector<1x1x32x32xbf16>
    %117 = vector.shape_cast %116 : vector<1x1x32x32xbf16> to vector<32x32xbf16>
    %118 = arith.truncf %115 : vector<32x256xf32> to vector<32x256xbf16>
    %cst_89 = arith.constant dense<0.000000e+00> : vector<32x256xf32>
    %119 = tpu.matmul %117, %118, %cst_89 {dimension_numbers = #tpu.dot_dimension_numbers<[1], [0], [0], [1], [0, 0, 1, 1], [], []>} : vector<32x32xbf16>, vector<32x256xbf16>, vector<32x256xf32> -> vector<32x256xf32>
    %120 = arith.addf %111, %119 : vector<32x256xf32>
    %c0_90 = arith.constant 0 : index
    %c4_91 = arith.constant 4 : index
    %c0_92 = arith.constant 0 : index
    %c0_93 = arith.constant 0 : index
    %121 = vector.load %arg8[%c0_90, %c4_91, %c0_92, %c0_93] : memref<1x9x32x32xbf16, #tpu.memory_space<vmem>>, vector<1x1x32x32xbf16>
    %122 = vector.shape_cast %121 : vector<1x1x32x32xbf16> to vector<32x32xbf16>
    %123 = arith.truncf %85 : vector<32x256xf32> to vector<32x256xbf16>
    %cst_94 = arith.constant dense<0.000000e+00> : vector<32x256xf32>
    %124 = tpu.matmul %122, %123, %cst_94 {dimension_numbers = #tpu.dot_dimension_numbers<[1], [0], [0], [1], [0, 0, 1, 1], [], []>} : vector<32x32xbf16>, vector<32x256xbf16>, vector<32x256xf32> -> vector<32x256xf32>
    %125 = arith.addf %120, %124 : vector<32x256xf32>
    %c255_i32_95 = arith.constant 255 : i32
    %126 = tpu.dynamic_rotate %85 by %c255_i32_95 dim 1 : vector<32x256xf32>, i32 -> vector<32x256xf32>
    %c5_96 = arith.constant 5 : index
    %c0_97 = arith.constant 0 : index
    %127 = vector.load %arg5[%c5_96, %c0_97] : memref<9x256xf32, #tpu.memory_space<vmem>>, vector<1x256xf32>
    %128 = vector.broadcast %127 : vector<1x256xf32> to vector<32x256xf32>
    %129 = arith.mulf %126, %128 : vector<32x256xf32>
    %c0_98 = arith.constant 0 : index
    %c5_99 = arith.constant 5 : index
    %c0_100 = arith.constant 0 : index
    %c0_101 = arith.constant 0 : index
    %130 = vector.load %arg8[%c0_98, %c5_99, %c0_100, %c0_101] : memref<1x9x32x32xbf16, #tpu.memory_space<vmem>>, vector<1x1x32x32xbf16>
    %131 = vector.shape_cast %130 : vector<1x1x32x32xbf16> to vector<32x32xbf16>
    %132 = arith.truncf %129 : vector<32x256xf32> to vector<32x256xbf16>
    %cst_102 = arith.constant dense<0.000000e+00> : vector<32x256xf32>
    %133 = tpu.matmul %131, %132, %cst_102 {dimension_numbers = #tpu.dot_dimension_numbers<[1], [0], [0], [1], [0, 0, 1, 1], [], []>} : vector<32x32xbf16>, vector<32x256xbf16>, vector<32x256xf32> -> vector<32x256xf32>
    %134 = arith.addf %125, %133 : vector<32x256xf32>
    %c241_i32_103 = arith.constant 241 : i32
    %135 = tpu.dynamic_rotate %85 by %c241_i32_103 dim 1 : vector<32x256xf32>, i32 -> vector<32x256xf32>
    %c6_104 = arith.constant 6 : index
    %c0_105 = arith.constant 0 : index
    %136 = vector.load %arg5[%c6_104, %c0_105] : memref<9x256xf32, #tpu.memory_space<vmem>>, vector<1x256xf32>
    %137 = vector.broadcast %136 : vector<1x256xf32> to vector<32x256xf32>
    %138 = arith.mulf %135, %137 : vector<32x256xf32>
    %c0_106 = arith.constant 0 : index
    %c6_107 = arith.constant 6 : index
    %c0_108 = arith.constant 0 : index
    %c0_109 = arith.constant 0 : index
    %139 = vector.load %arg8[%c0_106, %c6_107, %c0_108, %c0_109] : memref<1x9x32x32xbf16, #tpu.memory_space<vmem>>, vector<1x1x32x32xbf16>
    %140 = vector.shape_cast %139 : vector<1x1x32x32xbf16> to vector<32x32xbf16>
    %141 = arith.truncf %138 : vector<32x256xf32> to vector<32x256xbf16>
    %cst_110 = arith.constant dense<0.000000e+00> : vector<32x256xf32>
    %142 = tpu.matmul %140, %141, %cst_110 {dimension_numbers = #tpu.dot_dimension_numbers<[1], [0], [0], [1], [0, 0, 1, 1], [], []>} : vector<32x32xbf16>, vector<32x256xbf16>, vector<32x256xf32> -> vector<32x256xf32>
    %143 = arith.addf %134, %142 : vector<32x256xf32>
    %c240_i32_111 = arith.constant 240 : i32
    %144 = tpu.dynamic_rotate %85 by %c240_i32_111 dim 1 : vector<32x256xf32>, i32 -> vector<32x256xf32>
    %c7_112 = arith.constant 7 : index
    %c0_113 = arith.constant 0 : index
    %145 = vector.load %arg5[%c7_112, %c0_113] : memref<9x256xf32, #tpu.memory_space<vmem>>, vector<1x256xf32>
    %146 = vector.broadcast %145 : vector<1x256xf32> to vector<32x256xf32>
    %147 = arith.mulf %144, %146 : vector<32x256xf32>
    %c0_114 = arith.constant 0 : index
    %c7_115 = arith.constant 7 : index
    %c0_116 = arith.constant 0 : index
    %c0_117 = arith.constant 0 : index
    %148 = vector.load %arg8[%c0_114, %c7_115, %c0_116, %c0_117] : memref<1x9x32x32xbf16, #tpu.memory_space<vmem>>, vector<1x1x32x32xbf16>
    %149 = vector.shape_cast %148 : vector<1x1x32x32xbf16> to vector<32x32xbf16>
    %150 = arith.truncf %147 : vector<32x256xf32> to vector<32x256xbf16>
    %cst_118 = arith.constant dense<0.000000e+00> : vector<32x256xf32>
    %151 = tpu.matmul %149, %150, %cst_118 {dimension_numbers = #tpu.dot_dimension_numbers<[1], [0], [0], [1], [0, 0, 1, 1], [], []>} : vector<32x32xbf16>, vector<32x256xbf16>, vector<32x256xf32> -> vector<32x256xf32>
    %152 = arith.addf %143, %151 : vector<32x256xf32>
    %c239_i32_119 = arith.constant 239 : i32
    %153 = tpu.dynamic_rotate %85 by %c239_i32_119 dim 1 : vector<32x256xf32>, i32 -> vector<32x256xf32>
    %c8_120 = arith.constant 8 : index
    %c0_121 = arith.constant 0 : index
    %154 = vector.load %arg5[%c8_120, %c0_121] : memref<9x256xf32, #tpu.memory_space<vmem>>, vector<1x256xf32>
    %155 = vector.broadcast %154 : vector<1x256xf32> to vector<32x256xf32>
    %156 = arith.mulf %153, %155 : vector<32x256xf32>
    %c0_122 = arith.constant 0 : index
    %c8_123 = arith.constant 8 : index
    %c0_124 = arith.constant 0 : index
    %c0_125 = arith.constant 0 : index
    %157 = vector.load %arg8[%c0_122, %c8_123, %c0_124, %c0_125] : memref<1x9x32x32xbf16, #tpu.memory_space<vmem>>, vector<1x1x32x32xbf16>
    %158 = vector.shape_cast %157 : vector<1x1x32x32xbf16> to vector<32x32xbf16>
    %159 = arith.truncf %156 : vector<32x256xf32> to vector<32x256xbf16>
    %cst_126 = arith.constant dense<0.000000e+00> : vector<32x256xf32>
    %160 = tpu.matmul %158, %159, %cst_126 {dimension_numbers = #tpu.dot_dimension_numbers<[1], [0], [0], [1], [0, 0, 1, 1], [], []>} : vector<32x32xbf16>, vector<32x256xbf16>, vector<32x256xf32> -> vector<32x256xf32>
    %161 = arith.addf %152, %160 : vector<32x256xf32>
    %c0_127 = arith.constant 0 : index
    %c0_128 = arith.constant 0 : index
    %c0_129 = arith.constant 0 : index
    %162 = vector.load %arg9[%c0_127, %c0_128, %c0_129] : memref<1x32x1xf32, #tpu.memory_space<vmem>>, vector<1x32x1xf32>
    %163 = vector.shape_cast %162 : vector<1x32x1xf32> to vector<32x1xf32>
    %164 = vector.broadcast %163 : vector<32x1xf32> to vector<32x256xf32>
    %165 = arith.addf %161, %164 : vector<32x256xf32>
    %cst_130 = arith.constant 0.000000e+00 : f32
    %166 = vector.broadcast %cst_130 : f32 to vector<32x256xf32>
    %167 = arith.maximumf %165, %166 : vector<32x256xf32>
    %c17_i32_131 = arith.constant 17 : i32
    %168 = tpu.dynamic_rotate %167 by %c17_i32_131 dim 1 : vector<32x256xf32>, i32 -> vector<32x256xf32>
    %c0_132 = arith.constant 0 : index
    %c0_133 = arith.constant 0 : index
    %169 = vector.load %arg5[%c0_132, %c0_133] : memref<9x256xf32, #tpu.memory_space<vmem>>, vector<1x256xf32>
    %170 = vector.broadcast %169 : vector<1x256xf32> to vector<32x256xf32>
    %171 = arith.mulf %168, %170 : vector<32x256xf32>
    %c0_134 = arith.constant 0 : index
    %c0_135 = arith.constant 0 : index
    %c0_136 = arith.constant 0 : index
    %c0_137 = arith.constant 0 : index
    %172 = vector.load %arg10[%c0_134, %c0_135, %c0_136, %c0_137] : memref<1x9x4x32xbf16, #tpu.memory_space<vmem>>, vector<1x1x4x32xbf16>
    %173 = vector.shape_cast %172 : vector<1x1x4x32xbf16> to vector<4x32xbf16>
    %174 = arith.truncf %171 : vector<32x256xf32> to vector<32x256xbf16>
    %cst_138 = arith.constant dense<0.000000e+00> : vector<4x256xf32>
    %175 = tpu.matmul %173, %174, %cst_138 {dimension_numbers = #tpu.dot_dimension_numbers<[1], [0], [0], [1], [0, 0, 1, 1], [], []>} : vector<4x32xbf16>, vector<32x256xbf16>, vector<4x256xf32> -> vector<4x256xf32>
    %c16_i32_139 = arith.constant 16 : i32
    %176 = tpu.dynamic_rotate %167 by %c16_i32_139 dim 1 : vector<32x256xf32>, i32 -> vector<32x256xf32>
    %c1_140 = arith.constant 1 : index
    %c0_141 = arith.constant 0 : index
    %177 = vector.load %arg5[%c1_140, %c0_141] : memref<9x256xf32, #tpu.memory_space<vmem>>, vector<1x256xf32>
    %178 = vector.broadcast %177 : vector<1x256xf32> to vector<32x256xf32>
    %179 = arith.mulf %176, %178 : vector<32x256xf32>
    %c0_142 = arith.constant 0 : index
    %c1_143 = arith.constant 1 : index
    %c0_144 = arith.constant 0 : index
    %c0_145 = arith.constant 0 : index
    %180 = vector.load %arg10[%c0_142, %c1_143, %c0_144, %c0_145] : memref<1x9x4x32xbf16, #tpu.memory_space<vmem>>, vector<1x1x4x32xbf16>
    %181 = vector.shape_cast %180 : vector<1x1x4x32xbf16> to vector<4x32xbf16>
    %182 = arith.truncf %179 : vector<32x256xf32> to vector<32x256xbf16>
    %cst_146 = arith.constant dense<0.000000e+00> : vector<4x256xf32>
    %183 = tpu.matmul %181, %182, %cst_146 {dimension_numbers = #tpu.dot_dimension_numbers<[1], [0], [0], [1], [0, 0, 1, 1], [], []>} : vector<4x32xbf16>, vector<32x256xbf16>, vector<4x256xf32> -> vector<4x256xf32>
    %184 = arith.addf %175, %183 : vector<4x256xf32>
    %c15_i32_147 = arith.constant 15 : i32
    %185 = tpu.dynamic_rotate %167 by %c15_i32_147 dim 1 : vector<32x256xf32>, i32 -> vector<32x256xf32>
    %c2_148 = arith.constant 2 : index
    %c0_149 = arith.constant 0 : index
    %186 = vector.load %arg5[%c2_148, %c0_149] : memref<9x256xf32, #tpu.memory_space<vmem>>, vector<1x256xf32>
    %187 = vector.broadcast %186 : vector<1x256xf32> to vector<32x256xf32>
    %188 = arith.mulf %185, %187 : vector<32x256xf32>
    %c0_150 = arith.constant 0 : index
    %c2_151 = arith.constant 2 : index
    %c0_152 = arith.constant 0 : index
    %c0_153 = arith.constant 0 : index
    %189 = vector.load %arg10[%c0_150, %c2_151, %c0_152, %c0_153] : memref<1x9x4x32xbf16, #tpu.memory_space<vmem>>, vector<1x1x4x32xbf16>
    %190 = vector.shape_cast %189 : vector<1x1x4x32xbf16> to vector<4x32xbf16>
    %191 = arith.truncf %188 : vector<32x256xf32> to vector<32x256xbf16>
    %cst_154 = arith.constant dense<0.000000e+00> : vector<4x256xf32>
    %192 = tpu.matmul %190, %191, %cst_154 {dimension_numbers = #tpu.dot_dimension_numbers<[1], [0], [0], [1], [0, 0, 1, 1], [], []>} : vector<4x32xbf16>, vector<32x256xbf16>, vector<4x256xf32> -> vector<4x256xf32>
    %193 = arith.addf %184, %192 : vector<4x256xf32>
    %c1_i32_155 = arith.constant 1 : i32
    %194 = tpu.dynamic_rotate %167 by %c1_i32_155 dim 1 : vector<32x256xf32>, i32 -> vector<32x256xf32>
    %c3_156 = arith.constant 3 : index
    %c0_157 = arith.constant 0 : index
    %195 = vector.load %arg5[%c3_156, %c0_157] : memref<9x256xf32, #tpu.memory_space<vmem>>, vector<1x256xf32>
    %196 = vector.broadcast %195 : vector<1x256xf32> to vector<32x256xf32>
    %197 = arith.mulf %194, %196 : vector<32x256xf32>
    %c0_158 = arith.constant 0 : index
    %c3_159 = arith.constant 3 : index
    %c0_160 = arith.constant 0 : index
    %c0_161 = arith.constant 0 : index
    %198 = vector.load %arg10[%c0_158, %c3_159, %c0_160, %c0_161] : memref<1x9x4x32xbf16, #tpu.memory_space<vmem>>, vector<1x1x4x32xbf16>
    %199 = vector.shape_cast %198 : vector<1x1x4x32xbf16> to vector<4x32xbf16>
    %200 = arith.truncf %197 : vector<32x256xf32> to vector<32x256xbf16>
    %cst_162 = arith.constant dense<0.000000e+00> : vector<4x256xf32>
    %201 = tpu.matmul %199, %200, %cst_162 {dimension_numbers = #tpu.dot_dimension_numbers<[1], [0], [0], [1], [0, 0, 1, 1], [], []>} : vector<4x32xbf16>, vector<32x256xbf16>, vector<4x256xf32> -> vector<4x256xf32>
    %202 = arith.addf %193, %201 : vector<4x256xf32>
    %c0_163 = arith.constant 0 : index
    %c4_164 = arith.constant 4 : index
    %c0_165 = arith.constant 0 : index
    %c0_166 = arith.constant 0 : index
    %203 = vector.load %arg10[%c0_163, %c4_164, %c0_165, %c0_166] : memref<1x9x4x32xbf16, #tpu.memory_space<vmem>>, vector<1x1x4x32xbf16>
    %204 = vector.shape_cast %203 : vector<1x1x4x32xbf16> to vector<4x32xbf16>
    %205 = arith.truncf %167 : vector<32x256xf32> to vector<32x256xbf16>
    %cst_167 = arith.constant dense<0.000000e+00> : vector<4x256xf32>
    %206 = tpu.matmul %204, %205, %cst_167 {dimension_numbers = #tpu.dot_dimension_numbers<[1], [0], [0], [1], [0, 0, 1, 1], [], []>} : vector<4x32xbf16>, vector<32x256xbf16>, vector<4x256xf32> -> vector<4x256xf32>
    %207 = arith.addf %202, %206 : vector<4x256xf32>
    %c255_i32_168 = arith.constant 255 : i32
    %208 = tpu.dynamic_rotate %167 by %c255_i32_168 dim 1 : vector<32x256xf32>, i32 -> vector<32x256xf32>
    %c5_169 = arith.constant 5 : index
    %c0_170 = arith.constant 0 : index
    %209 = vector.load %arg5[%c5_169, %c0_170] : memref<9x256xf32, #tpu.memory_space<vmem>>, vector<1x256xf32>
    %210 = vector.broadcast %209 : vector<1x256xf32> to vector<32x256xf32>
    %211 = arith.mulf %208, %210 : vector<32x256xf32>
    %c0_171 = arith.constant 0 : index
    %c5_172 = arith.constant 5 : index
    %c0_173 = arith.constant 0 : index
    %c0_174 = arith.constant 0 : index
    %212 = vector.load %arg10[%c0_171, %c5_172, %c0_173, %c0_174] : memref<1x9x4x32xbf16, #tpu.memory_space<vmem>>, vector<1x1x4x32xbf16>
    %213 = vector.shape_cast %212 : vector<1x1x4x32xbf16> to vector<4x32xbf16>
    %214 = arith.truncf %211 : vector<32x256xf32> to vector<32x256xbf16>
    %cst_175 = arith.constant dense<0.000000e+00> : vector<4x256xf32>
    %215 = tpu.matmul %213, %214, %cst_175 {dimension_numbers = #tpu.dot_dimension_numbers<[1], [0], [0], [1], [0, 0, 1, 1], [], []>} : vector<4x32xbf16>, vector<32x256xbf16>, vector<4x256xf32> -> vector<4x256xf32>
    %216 = arith.addf %207, %215 : vector<4x256xf32>
    %c241_i32_176 = arith.constant 241 : i32
    %217 = tpu.dynamic_rotate %167 by %c241_i32_176 dim 1 : vector<32x256xf32>, i32 -> vector<32x256xf32>
    %c6_177 = arith.constant 6 : index
    %c0_178 = arith.constant 0 : index
    %218 = vector.load %arg5[%c6_177, %c0_178] : memref<9x256xf32, #tpu.memory_space<vmem>>, vector<1x256xf32>
    %219 = vector.broadcast %218 : vector<1x256xf32> to vector<32x256xf32>
    %220 = arith.mulf %217, %219 : vector<32x256xf32>
    %c0_179 = arith.constant 0 : index
    %c6_180 = arith.constant 6 : index
    %c0_181 = arith.constant 0 : index
    %c0_182 = arith.constant 0 : index
    %221 = vector.load %arg10[%c0_179, %c6_180, %c0_181, %c0_182] : memref<1x9x4x32xbf16, #tpu.memory_space<vmem>>, vector<1x1x4x32xbf16>
    %222 = vector.shape_cast %221 : vector<1x1x4x32xbf16> to vector<4x32xbf16>
    %223 = arith.truncf %220 : vector<32x256xf32> to vector<32x256xbf16>
    %cst_183 = arith.constant dense<0.000000e+00> : vector<4x256xf32>
    %224 = tpu.matmul %222, %223, %cst_183 {dimension_numbers = #tpu.dot_dimension_numbers<[1], [0], [0], [1], [0, 0, 1, 1], [], []>} : vector<4x32xbf16>, vector<32x256xbf16>, vector<4x256xf32> -> vector<4x256xf32>
    %225 = arith.addf %216, %224 : vector<4x256xf32>
    %c240_i32_184 = arith.constant 240 : i32
    %226 = tpu.dynamic_rotate %167 by %c240_i32_184 dim 1 : vector<32x256xf32>, i32 -> vector<32x256xf32>
    %c7_185 = arith.constant 7 : index
    %c0_186 = arith.constant 0 : index
    %227 = vector.load %arg5[%c7_185, %c0_186] : memref<9x256xf32, #tpu.memory_space<vmem>>, vector<1x256xf32>
    %228 = vector.broadcast %227 : vector<1x256xf32> to vector<32x256xf32>
    %229 = arith.mulf %226, %228 : vector<32x256xf32>
    %c0_187 = arith.constant 0 : index
    %c7_188 = arith.constant 7 : index
    %c0_189 = arith.constant 0 : index
    %c0_190 = arith.constant 0 : index
    %230 = vector.load %arg10[%c0_187, %c7_188, %c0_189, %c0_190] : memref<1x9x4x32xbf16, #tpu.memory_space<vmem>>, vector<1x1x4x32xbf16>
    %231 = vector.shape_cast %230 : vector<1x1x4x32xbf16> to vector<4x32xbf16>
    %232 = arith.truncf %229 : vector<32x256xf32> to vector<32x256xbf16>
    %cst_191 = arith.constant dense<0.000000e+00> : vector<4x256xf32>
    %233 = tpu.matmul %231, %232, %cst_191 {dimension_numbers = #tpu.dot_dimension_numbers<[1], [0], [0], [1], [0, 0, 1, 1], [], []>} : vector<4x32xbf16>, vector<32x256xbf16>, vector<4x256xf32> -> vector<4x256xf32>
    %234 = arith.addf %225, %233 : vector<4x256xf32>
    %c239_i32_192 = arith.constant 239 : i32
    %235 = tpu.dynamic_rotate %167 by %c239_i32_192 dim 1 : vector<32x256xf32>, i32 -> vector<32x256xf32>
    %c8_193 = arith.constant 8 : index
    %c0_194 = arith.constant 0 : index
    %236 = vector.load %arg5[%c8_193, %c0_194] : memref<9x256xf32, #tpu.memory_space<vmem>>, vector<1x256xf32>
    %237 = vector.broadcast %236 : vector<1x256xf32> to vector<32x256xf32>
    %238 = arith.mulf %235, %237 : vector<32x256xf32>
    %c0_195 = arith.constant 0 : index
    %c8_196 = arith.constant 8 : index
    %c0_197 = arith.constant 0 : index
    %c0_198 = arith.constant 0 : index
    %239 = vector.load %arg10[%c0_195, %c8_196, %c0_197, %c0_198] : memref<1x9x4x32xbf16, #tpu.memory_space<vmem>>, vector<1x1x4x32xbf16>
    %240 = vector.shape_cast %239 : vector<1x1x4x32xbf16> to vector<4x32xbf16>
    %241 = arith.truncf %238 : vector<32x256xf32> to vector<32x256xbf16>
    %cst_199 = arith.constant dense<0.000000e+00> : vector<4x256xf32>
    %242 = tpu.matmul %240, %241, %cst_199 {dimension_numbers = #tpu.dot_dimension_numbers<[1], [0], [0], [1], [0, 0, 1, 1], [], []>} : vector<4x32xbf16>, vector<32x256xbf16>, vector<4x256xf32> -> vector<4x256xf32>
    %243 = arith.addf %234, %242 : vector<4x256xf32>
    %c0_200 = arith.constant 0 : index
    %c0_201 = arith.constant 0 : index
    %c0_202 = arith.constant 0 : index
    %244 = vector.load %arg11[%c0_200, %c0_201, %c0_202] : memref<1x4x1xf32, #tpu.memory_space<vmem>>, vector<1x4x1xf32>
    %245 = vector.shape_cast %244 : vector<1x4x1xf32> to vector<4x1xf32>
    %246 = vector.broadcast %245 : vector<4x1xf32> to vector<4x256xf32>
    %247 = arith.addf %243, %246 : vector<4x256xf32>
    %248 = arith.addf %247, %3 : vector<4x256xf32>
    %c0_203 = arith.constant 0 : index
    %c0_204 = arith.constant 0 : index
    %249 = vector.load %arg4[%c0_203, %c0_204] : memref<4x256xf32, #tpu.memory_space<vmem>>, vector<4x256xf32>
    %cst_205 = arith.constant 5.000000e-02 : f32
    %250 = vector.broadcast %cst_205 : f32 to vector<4x256xf32>
    %251 = arith.addf %249, %250 : vector<4x256xf32>
    %c0_206 = arith.constant 0 : index
    %c0_207 = arith.constant 0 : index
    %252 = vector.load %arg3[%c0_206, %c0_207] : memref<4x256xf32, #tpu.memory_space<vmem>>, vector<4x256xf32>
    %cst_208 = arith.constant 5.000000e-02 : f32
    %253 = vector.broadcast %cst_208 : f32 to vector<4x256xf32>
    %254 = arith.mulf %253, %248 : vector<4x256xf32>
    %255 = arith.addf %252, %254 : vector<4x256xf32>
    %256 = arith.mulf %251, %3 : vector<4x256xf32>
    %257 = arith.subf %255, %256 : vector<4x256xf32>
    %258 = arith.mulf %257, %257 : vector<4x256xf32>
    %259 = vector.shape_cast %258 : vector<4x256xf32> to vector<1x4x256xf32>
    %cst_209 = arith.constant dense<0.000000e+00> : vector<1xf32>
    %260 = vector.multi_reduction <add>, %259, %cst_209 [1, 2] : vector<1x4x256xf32> to vector<1xf32>
    %261 = vector.shape_cast %260 : vector<1xf32> to vector<1x1x1xf32>
    %262 = vector.extract %261[0, 0, 0] : f32 from vector<1x1x1xf32>
    %c0_i32_210 = arith.constant 0 : i32
    %263 = arith.mulf %251, %257 : vector<4x256xf32>
    %264 = arith.mulf %257, %263 : vector<4x256xf32>
    %265 = vector.shape_cast %264 : vector<4x256xf32> to vector<1x4x256xf32>
    %cst_211 = arith.constant dense<0.000000e+00> : vector<1xf32>
    %266 = vector.multi_reduction <add>, %265, %cst_211 [1, 2] : vector<1x4x256xf32> to vector<1xf32>
    %267 = vector.shape_cast %266 : vector<1xf32> to vector<1x1x1xf32>
    %268 = vector.extract %267[0, 0, 0] : f32 from vector<1x1x1xf32>
    %cst_212 = arith.constant 9.99999996E-13 : f32
    %269 = arith.addf %268, %cst_212 : f32
    %270 = arith.divf %262, %269 : f32
    %271 = vector.broadcast %270 : f32 to vector<4x256xf32>
    %272 = arith.mulf %271, %257 : vector<4x256xf32>
    %273 = arith.addf %3, %272 : vector<4x256xf32>
    %274 = vector.broadcast %270 : f32 to vector<4x256xf32>
    %275 = arith.mulf %274, %263 : vector<4x256xf32>
    %276 = arith.subf %257, %275 : vector<4x256xf32>
    %277 = arith.mulf %276, %276 : vector<4x256xf32>
    %278 = vector.shape_cast %277 : vector<4x256xf32> to vector<1x4x256xf32>
    %cst_213 = arith.constant dense<0.000000e+00> : vector<1xf32>
    %279 = vector.multi_reduction <add>, %278, %cst_213 [1, 2] : vector<1x4x256xf32> to vector<1xf32>
    %280 = vector.shape_cast %279 : vector<1xf32> to vector<1x1x1xf32>
    %281 = vector.extract %280[0, 0, 0] : f32 from vector<1x1x1xf32>
    %cst_214 = arith.constant 9.99999996E-13 : f32
    %282 = arith.addf %262, %cst_214 : f32
    %283 = arith.divf %281, %282 : f32
    %284 = vector.broadcast %283 : f32 to vector<4x256xf32>
    %285 = arith.mulf %284, %257 : vector<4x256xf32>
    %286 = arith.addf %276, %285 : vector<4x256xf32>
    %c1_i32_215 = arith.constant 1 : i32
    %287 = arith.mulf %251, %286 : vector<4x256xf32>
    %288 = arith.mulf %286, %287 : vector<4x256xf32>
    %289 = vector.shape_cast %288 : vector<4x256xf32> to vector<1x4x256xf32>
    %cst_216 = arith.constant dense<0.000000e+00> : vector<1xf32>
    %290 = vector.multi_reduction <add>, %289, %cst_216 [1, 2] : vector<1x4x256xf32> to vector<1xf32>
    %291 = vector.shape_cast %290 : vector<1xf32> to vector<1x1x1xf32>
    %292 = vector.extract %291[0, 0, 0] : f32 from vector<1x1x1xf32>
    %cst_217 = arith.constant 9.99999996E-13 : f32
    %293 = arith.addf %292, %cst_217 : f32
    %294 = arith.divf %281, %293 : f32
    %295 = vector.broadcast %294 : f32 to vector<4x256xf32>
    %296 = arith.mulf %295, %286 : vector<4x256xf32>
    %297 = arith.addf %273, %296 : vector<4x256xf32>
    %298 = vector.broadcast %294 : f32 to vector<4x256xf32>
    %299 = arith.mulf %298, %287 : vector<4x256xf32>
    %300 = arith.subf %276, %299 : vector<4x256xf32>
    %301 = arith.mulf %300, %300 : vector<4x256xf32>
    %302 = vector.shape_cast %301 : vector<4x256xf32> to vector<1x4x256xf32>
    %cst_218 = arith.constant dense<0.000000e+00> : vector<1xf32>
    %303 = vector.multi_reduction <add>, %302, %cst_218 [1, 2] : vector<1x4x256xf32> to vector<1xf32>
    %304 = vector.shape_cast %303 : vector<1xf32> to vector<1x1x1xf32>
    %305 = vector.extract %304[0, 0, 0] : f32 from vector<1x1x1xf32>
    %cst_219 = arith.constant 9.99999996E-13 : f32
    %306 = arith.addf %281, %cst_219 : f32
    %307 = arith.divf %305, %306 : f32
    %308 = vector.broadcast %307 : f32 to vector<4x256xf32>
    %309 = arith.mulf %308, %286 : vector<4x256xf32>
    %310 = arith.addf %300, %309 : vector<4x256xf32>
    %c2_i32 = arith.constant 2 : i32
    %311 = arith.mulf %251, %310 : vector<4x256xf32>
    %312 = arith.mulf %310, %311 : vector<4x256xf32>
    %313 = vector.shape_cast %312 : vector<4x256xf32> to vector<1x4x256xf32>
    %cst_220 = arith.constant dense<0.000000e+00> : vector<1xf32>
    %314 = vector.multi_reduction <add>, %313, %cst_220 [1, 2] : vector<1x4x256xf32> to vector<1xf32>
    %315 = vector.shape_cast %314 : vector<1xf32> to vector<1x1x1xf32>
    %316 = vector.extract %315[0, 0, 0] : f32 from vector<1x1x1xf32>
    %cst_221 = arith.constant 9.99999996E-13 : f32
    %317 = arith.addf %316, %cst_221 : f32
    %318 = arith.divf %305, %317 : f32
    %319 = vector.broadcast %318 : f32 to vector<4x256xf32>
    %320 = arith.mulf %319, %310 : vector<4x256xf32>
    %321 = arith.addf %297, %320 : vector<4x256xf32>
    %322 = vector.broadcast %318 : f32 to vector<4x256xf32>
    %323 = arith.mulf %322, %311 : vector<4x256xf32>
    %324 = arith.subf %300, %323 : vector<4x256xf32>
    %325 = arith.mulf %324, %324 : vector<4x256xf32>
    %326 = vector.shape_cast %325 : vector<4x256xf32> to vector<1x4x256xf32>
    %cst_222 = arith.constant dense<0.000000e+00> : vector<1xf32>
    %327 = vector.multi_reduction <add>, %326, %cst_222 [1, 2] : vector<1x4x256xf32> to vector<1xf32>
    %328 = vector.shape_cast %327 : vector<1xf32> to vector<1x1x1xf32>
    %329 = vector.extract %328[0, 0, 0] : f32 from vector<1x1x1xf32>
    %cst_223 = arith.constant 9.99999996E-13 : f32
    %330 = arith.addf %305, %cst_223 : f32
    %331 = arith.divf %329, %330 : f32
    %332 = vector.broadcast %331 : f32 to vector<4x256xf32>
    %333 = arith.mulf %332, %310 : vector<4x256xf32>
    %334 = arith.addf %324, %333 : vector<4x256xf32>
    %c3_i32 = arith.constant 3 : i32
    %335 = arith.mulf %251, %334 : vector<4x256xf32>
    %336 = arith.mulf %334, %335 : vector<4x256xf32>
    %337 = vector.shape_cast %336 : vector<4x256xf32> to vector<1x4x256xf32>
    %cst_224 = arith.constant dense<0.000000e+00> : vector<1xf32>
    %338 = vector.multi_reduction <add>, %337, %cst_224 [1, 2] : vector<1x4x256xf32> to vector<1xf32>
    %339 = vector.shape_cast %338 : vector<1xf32> to vector<1x1x1xf32>
    %340 = vector.extract %339[0, 0, 0] : f32 from vector<1x1x1xf32>
    %cst_225 = arith.constant 9.99999996E-13 : f32
    %341 = arith.addf %340, %cst_225 : f32
    %342 = arith.divf %329, %341 : f32
    %343 = vector.broadcast %342 : f32 to vector<4x256xf32>
    %344 = arith.mulf %343, %334 : vector<4x256xf32>
    %345 = arith.addf %321, %344 : vector<4x256xf32>
    %346 = vector.broadcast %342 : f32 to vector<4x256xf32>
    %347 = arith.mulf %346, %335 : vector<4x256xf32>
    %348 = arith.subf %324, %347 : vector<4x256xf32>
    %349 = arith.mulf %348, %348 : vector<4x256xf32>
    %350 = vector.shape_cast %349 : vector<4x256xf32> to vector<1x4x256xf32>
    %cst_226 = arith.constant dense<0.000000e+00> : vector<1xf32>
    %351 = vector.multi_reduction <add>, %350, %cst_226 [1, 2] : vector<1x4x256xf32> to vector<1xf32>
    %352 = vector.shape_cast %351 : vector<1xf32> to vector<1x1x1xf32>
    %353 = vector.extract %352[0, 0, 0] : f32 from vector<1x1x1xf32>
    %cst_227 = arith.constant 9.99999996E-13 : f32
    %354 = arith.addf %329, %cst_227 : f32
    %355 = arith.divf %353, %354 : f32
    %356 = vector.broadcast %355 : f32 to vector<4x256xf32>
    %357 = arith.mulf %356, %334 : vector<4x256xf32>
    %358 = arith.addf %348, %357 : vector<4x256xf32>
    %c4_i32 = arith.constant 4 : i32
    %359 = arith.mulf %251, %358 : vector<4x256xf32>
    %360 = arith.mulf %358, %359 : vector<4x256xf32>
    %361 = vector.shape_cast %360 : vector<4x256xf32> to vector<1x4x256xf32>
    %cst_228 = arith.constant dense<0.000000e+00> : vector<1xf32>
    %362 = vector.multi_reduction <add>, %361, %cst_228 [1, 2] : vector<1x4x256xf32> to vector<1xf32>
    %363 = vector.shape_cast %362 : vector<1xf32> to vector<1x1x1xf32>
    %364 = vector.extract %363[0, 0, 0] : f32 from vector<1x1x1xf32>
    %cst_229 = arith.constant 9.99999996E-13 : f32
    %365 = arith.addf %364, %cst_229 : f32
    %366 = arith.divf %353, %365 : f32
    %367 = vector.broadcast %366 : f32 to vector<4x256xf32>
    %368 = arith.mulf %367, %358 : vector<4x256xf32>
    %369 = arith.addf %345, %368 : vector<4x256xf32>
    %370 = vector.broadcast %366 : f32 to vector<4x256xf32>
    %371 = arith.mulf %370, %359 : vector<4x256xf32>
    %372 = arith.subf %348, %371 : vector<4x256xf32>
    %373 = arith.mulf %372, %372 : vector<4x256xf32>
    %374 = vector.shape_cast %373 : vector<4x256xf32> to vector<1x4x256xf32>
    %cst_230 = arith.constant dense<0.000000e+00> : vector<1xf32>
    %375 = vector.multi_reduction <add>, %374, %cst_230 [1, 2] : vector<1x4x256xf32> to vector<1xf32>
    %376 = vector.shape_cast %375 : vector<1xf32> to vector<1x1x1xf32>
    %377 = vector.extract %376[0, 0, 0] : f32 from vector<1x1x1xf32>
    %cst_231 = arith.constant 9.99999996E-13 : f32
    %378 = arith.addf %353, %cst_231 : f32
    %379 = arith.divf %377, %378 : f32
    %380 = vector.broadcast %379 : f32 to vector<4x256xf32>
    %381 = arith.mulf %380, %358 : vector<4x256xf32>
    %382 = arith.addf %372, %381 : vector<4x256xf32>
    %c5_i32 = arith.constant 5 : i32
    %383 = arith.mulf %251, %382 : vector<4x256xf32>
    %384 = arith.mulf %382, %383 : vector<4x256xf32>
    %385 = vector.shape_cast %384 : vector<4x256xf32> to vector<1x4x256xf32>
    %cst_232 = arith.constant dense<0.000000e+00> : vector<1xf32>
    %386 = vector.multi_reduction <add>, %385, %cst_232 [1, 2] : vector<1x4x256xf32> to vector<1xf32>
    %387 = vector.shape_cast %386 : vector<1xf32> to vector<1x1x1xf32>
    %388 = vector.extract %387[0, 0, 0] : f32 from vector<1x1x1xf32>
    %cst_233 = arith.constant 9.99999996E-13 : f32
    %389 = arith.addf %388, %cst_233 : f32
    %390 = arith.divf %377, %389 : f32
    %391 = vector.broadcast %390 : f32 to vector<4x256xf32>
    %392 = arith.mulf %391, %382 : vector<4x256xf32>
    %393 = arith.addf %369, %392 : vector<4x256xf32>
    %394 = vector.broadcast %390 : f32 to vector<4x256xf32>
    %395 = arith.mulf %394, %383 : vector<4x256xf32>
    %396 = arith.subf %372, %395 : vector<4x256xf32>
    %397 = arith.mulf %396, %396 : vector<4x256xf32>
    %398 = vector.shape_cast %397 : vector<4x256xf32> to vector<1x4x256xf32>
    %cst_234 = arith.constant dense<0.000000e+00> : vector<1xf32>
    %399 = vector.multi_reduction <add>, %398, %cst_234 [1, 2] : vector<1x4x256xf32> to vector<1xf32>
    %400 = vector.shape_cast %399 : vector<1xf32> to vector<1x1x1xf32>
    %401 = vector.extract %400[0, 0, 0] : f32 from vector<1x1x1xf32>
    %cst_235 = arith.constant 9.99999996E-13 : f32
    %402 = arith.addf %377, %cst_235 : f32
    %403 = arith.divf %401, %402 : f32
    %404 = vector.broadcast %403 : f32 to vector<4x256xf32>
    %405 = arith.mulf %404, %382 : vector<4x256xf32>
    %406 = arith.addf %396, %405 : vector<4x256xf32>
    %c6_i32 = arith.constant 6 : i32
    %407 = arith.mulf %251, %406 : vector<4x256xf32>
    %408 = arith.mulf %406, %407 : vector<4x256xf32>
    %409 = vector.shape_cast %408 : vector<4x256xf32> to vector<1x4x256xf32>
    %cst_236 = arith.constant dense<0.000000e+00> : vector<1xf32>
    %410 = vector.multi_reduction <add>, %409, %cst_236 [1, 2] : vector<1x4x256xf32> to vector<1xf32>
    %411 = vector.shape_cast %410 : vector<1xf32> to vector<1x1x1xf32>
    %412 = vector.extract %411[0, 0, 0] : f32 from vector<1x1x1xf32>
    %cst_237 = arith.constant 9.99999996E-13 : f32
    %413 = arith.addf %412, %cst_237 : f32
    %414 = arith.divf %401, %413 : f32
    %415 = vector.broadcast %414 : f32 to vector<4x256xf32>
    %416 = arith.mulf %415, %406 : vector<4x256xf32>
    %417 = arith.addf %393, %416 : vector<4x256xf32>
    %418 = vector.broadcast %414 : f32 to vector<4x256xf32>
    %419 = arith.mulf %418, %407 : vector<4x256xf32>
    %420 = arith.subf %396, %419 : vector<4x256xf32>
    %421 = arith.mulf %420, %420 : vector<4x256xf32>
    %422 = vector.shape_cast %421 : vector<4x256xf32> to vector<1x4x256xf32>
    %cst_238 = arith.constant dense<0.000000e+00> : vector<1xf32>
    %423 = vector.multi_reduction <add>, %422, %cst_238 [1, 2] : vector<1x4x256xf32> to vector<1xf32>
    %424 = vector.shape_cast %423 : vector<1xf32> to vector<1x1x1xf32>
    %425 = vector.extract %424[0, 0, 0] : f32 from vector<1x1x1xf32>
    %cst_239 = arith.constant 9.99999996E-13 : f32
    %426 = arith.addf %401, %cst_239 : f32
    %427 = arith.divf %425, %426 : f32
    %428 = vector.broadcast %427 : f32 to vector<4x256xf32>
    %429 = arith.mulf %428, %406 : vector<4x256xf32>
    %430 = arith.addf %420, %429 : vector<4x256xf32>
    %c7_i32 = arith.constant 7 : i32
    %431 = arith.mulf %251, %430 : vector<4x256xf32>
    %432 = arith.mulf %430, %431 : vector<4x256xf32>
    %433 = vector.shape_cast %432 : vector<4x256xf32> to vector<1x4x256xf32>
    %cst_240 = arith.constant dense<0.000000e+00> : vector<1xf32>
    %434 = vector.multi_reduction <add>, %433, %cst_240 [1, 2] : vector<1x4x256xf32> to vector<1xf32>
    %435 = vector.shape_cast %434 : vector<1xf32> to vector<1x1x1xf32>
    %436 = vector.extract %435[0, 0, 0] : f32 from vector<1x1x1xf32>
    %cst_241 = arith.constant 9.99999996E-13 : f32
    %437 = arith.addf %436, %cst_241 : f32
    %438 = arith.divf %425, %437 : f32
    %439 = vector.broadcast %438 : f32 to vector<4x256xf32>
    %440 = arith.mulf %439, %430 : vector<4x256xf32>
    %441 = arith.addf %417, %440 : vector<4x256xf32>
    %442 = vector.broadcast %438 : f32 to vector<4x256xf32>
    %443 = arith.mulf %442, %431 : vector<4x256xf32>
    %444 = arith.subf %420, %443 : vector<4x256xf32>
    %445 = arith.mulf %444, %444 : vector<4x256xf32>
    %446 = vector.shape_cast %445 : vector<4x256xf32> to vector<1x4x256xf32>
    %cst_242 = arith.constant dense<0.000000e+00> : vector<1xf32>
    %447 = vector.multi_reduction <add>, %446, %cst_242 [1, 2] : vector<1x4x256xf32> to vector<1xf32>
    %448 = vector.shape_cast %447 : vector<1xf32> to vector<1x1x1xf32>
    %449 = vector.extract %448[0, 0, 0] : f32 from vector<1x1x1xf32>
    %cst_243 = arith.constant 9.99999996E-13 : f32
    %450 = arith.addf %425, %cst_243 : f32
    %451 = arith.divf %449, %450 : f32
    %452 = vector.broadcast %451 : f32 to vector<4x256xf32>
    %453 = arith.mulf %452, %430 : vector<4x256xf32>
    %454 = arith.addf %444, %453 : vector<4x256xf32>
    %c0_244 = arith.constant 0 : index
    %c0_245 = arith.constant 0 : index
    %455 = vector.load %arg12[%c0_244, %c0_245] : memref<4x256xf32, #tpu.memory_space<vmem>>, vector<4x256xf32>
    tpu.vector_store %arg12[%c0_244, %c0_245], %441 {strides = array<i32>} : memref<4x256xf32, #tpu.memory_space<vmem>>, vector<4x256xf32>,
    return
  }
  func.func @transform_0(%arg0: i32, %arg1: i32) -> (i32, i32) {
    %c0_i32 = arith.constant 0 : i32
    %c0_i32_0 = arith.constant 0 : i32
    return %c0_i32, %arg0 : i32, i32
  }
  func.func @transform_1(%arg0: i32, %arg1: i32) -> (i32, i32) {
    %c0_i32 = arith.constant 0 : i32
    %c0_i32_0 = arith.constant 0 : i32
    return %c0_i32, %arg0 : i32, i32
  }
  func.func @transform_2(%arg0: i32, %arg1: i32) -> (i32, i32) {
    %c0_i32 = arith.constant 0 : i32
    %c0_i32_0 = arith.constant 0 : i32
    return %c0_i32, %arg0 : i32, i32
  }
  func.func @transform_3(%arg0: i32, %arg1: i32) -> (i32, i32) {
    %c0_i32 = arith.constant 0 : i32
    %c0_i32_0 = arith.constant 0 : i32
    %c0_i32_1 = arith.constant 0 : i32
    return %c0_i32, %c0_i32_0 : i32, i32
  }
  func.func @transform_4(%arg0: i32, %arg1: i32) -> (i32, i32, i32, i32) {
    %c0_i32 = arith.constant 0 : i32
    %c0_i32_0 = arith.constant 0 : i32
    %c0_i32_1 = arith.constant 0 : i32
    %c0_i32_2 = arith.constant 0 : i32
    return %arg1, %c0_i32, %c0_i32_0, %c0_i32_1 : i32, i32, i32, i32
  }
  func.func @transform_5(%arg0: i32, %arg1: i32) -> (i32, i32, i32) {
    %c0_i32 = arith.constant 0 : i32
    %c0_i32_0 = arith.constant 0 : i32
    %c0_i32_1 = arith.constant 0 : i32
    return %arg1, %c0_i32, %c0_i32_0 : i32, i32, i32
  }
  func.func @transform_6(%arg0: i32, %arg1: i32) -> (i32, i32, i32, i32) {
    %c0_i32 = arith.constant 0 : i32
    %c0_i32_0 = arith.constant 0 : i32
    %c0_i32_1 = arith.constant 0 : i32
    %c0_i32_2 = arith.constant 0 : i32
    return %arg1, %c0_i32, %c0_i32_0, %c0_i32_1 : i32, i32, i32, i32
  }
  func.func @transform_7(%arg0: i32, %arg1: i32) -> (i32, i32, i32) {
    %c0_i32 = arith.constant 0 : i32
    %c0_i32_0 = arith.constant 0 : i32
    %c0_i32_1 = arith.constant 0 : i32
    return %arg1, %c0_i32, %c0_i32_0 : i32, i32, i32
  }
  func.func @transform_8(%arg0: i32, %arg1: i32) -> (i32, i32, i32, i32) {
    %c0_i32 = arith.constant 0 : i32
    %c0_i32_0 = arith.constant 0 : i32
    %c0_i32_1 = arith.constant 0 : i32
    %c0_i32_2 = arith.constant 0 : i32
    return %arg1, %c0_i32, %c0_i32_0, %c0_i32_1 : i32, i32, i32, i32
  }
  func.func @transform_9(%arg0: i32, %arg1: i32) -> (i32, i32, i32) {
    %c0_i32 = arith.constant 0 : i32
    %c0_i32_0 = arith.constant 0 : i32
    %c0_i32_1 = arith.constant 0 : i32
    return %arg1, %c0_i32, %c0_i32_0 : i32, i32, i32
  }
  func.func @transform_10(%arg0: i32, %arg1: i32) -> (i32, i32) {
    %c0_i32 = arith.constant 0 : i32
    %c0_i32_0 = arith.constant 0 : i32
    return %c0_i32, %arg0 : i32, i32
  }
}

</mosaic_0001>

<llo_original>
// kernel: tpu_custom_call.1
$region0: #{tpu_custom_call.1}
  #allocation0 [shape = 'u32[]', space=smem, size = 0x4, offset = 0x4, fixed_abs, tag = 'smem constant byte address 0x4 - core index']
  #allocation1 [shape = 'u32[144,128]{1,0:T(1,128)}', space=vmem, size = 0x12000, scoped, tag = 'internal scratch']
  %s0 = inlined_call_operand.hbm [shape: f32[4,512], index: 0, kind: input, shape index: {}, may-alias: {0,10}]
  %s1 = inlined_call_operand.vmem [shape: f32[4,512], index: 1, kind: input, shape index: {}]
  %s2 = inlined_call_operand.vmem [shape: f32[4,512], index: 2, kind: input, shape index: {}]
  %s3 = inlined_call_operand.vmem [shape: f32[9,256], index: 3, kind: input, shape index: {}]
  %s4 = inlined_call_operand.vmem [shape: bf16[2,9,32,4], index: 4, kind: input, shape index: {}]
  %s5 = inlined_call_operand.vmem [shape: f32[2,32,1], index: 5, kind: input, shape index: {}]
  %s6 = inlined_call_operand.vmem [shape: bf16[2,9,32,32], index: 6, kind: input, shape index: {}]
  %s7 = inlined_call_operand.vmem [shape: f32[2,32,1], index: 7, kind: input, shape index: {}]
  %s8 = inlined_call_operand.vmem [shape: bf16[2,9,4,32], index: 8, kind: input, shape index: {}]
  %s9 = inlined_call_operand.vmem [shape: f32[2,4,1], index: 9, kind: input, shape index: {}]
  %s10 = inlined_call_operand.hbm [shape: f32[4,512], index: 10, kind: output, shape index: {}, may-alias: {0,10}]
  %s11 = sld [smem:[#allocation0]]
  $region81: #{tpu_custom_call.1} parent=0
    _
  %s13 = ssub.s32 1, %s11
  %s14 = scalar_select 0, %s13, %s11
  $region1: #{tpu_custom_call.1} parent=0
    #allocation2 [shape = 'u8[8192]{0}', space=vmem, size = 0x2000, scoped, tag = 'input window, operand 0']
    #allocation3 [shape = 's32[2]{0}', space=sflag, size = 0x8, scoped, tag = 'scoped memory for tpu_custom_call.1']
    #allocation4 [shape = 's32[2]{0}', space=sflag, size = 0x8, scoped, tag = 'scoped memory for tpu_custom_call.1']
    #allocation5 [shape = 'u8[8192]{0}', space=vmem, size = 0x2000, scoped, tag = 'output window, operand 0']
    %15 = vsyncpa [#allocation3], 0
    %s16 = scalar_lea.sflag [#allocation3], 1
    %17 = vsyncpa %s16, 0
    %18 = vsyncpa [#allocation4], 0
    %s19 = scalar_lea.sflag [#allocation4], 1
    %20 = vsyncpa %s19, 0
    loop: start=0, step=1, limit=6
    $region2: #{tpu_custom_call.1} parent=1 // loop_pre_header
      _
    $region3: #{tpu_custom_call.1} parent=1 // loop_header
      %s22 = sphi 0, %s26
      %p23 = scmp.ge.s32.totalorder %s22, 6
      %s29 = sphi 0, %s41
      %s30 = sphi 0, %s37
      %s31 = sphi 0, %s29
      %s32 = sphi 0, %s30
      %s33 = sphi 0, %s31
      %s34 = sphi 0, %s32
      %s44 = sphi 0, %s46
      %s47 = sphi 0, %s44
      %s48 = sphi 0, %s47
      %s64 = sphi 0, %s48
      %s70 = sphi 0, %s72
      %s73 = sphi 0, %s70
      %s74 = sphi 0, %s73
      %s90 = sphi 0, %s74
      %s96 = sphi 0, %s98
      %s99 = sphi 0, %s96
      %s100 = sphi 0, %s99
      %s116 = sphi 0, %s100
      %s120 = sphi 0, %s120
      %s122 = sphi 0, %s120
      %s123 = sphi 0, %s122
      %s137 = sphi 0, %s123
      %s143 = sphi 0, %s145
      %s146 = sphi 0, %s143
      %s147 = sphi 0, %s146
      %s163 = sphi 0, %s147
      %s169 = sphi 0, %s171
      %s172 = sphi 0, %s169
      %s173 = sphi 0, %s172
      %s189 = sphi 0, %s173
      %s195 = sphi 0, %s197
      %s198 = sphi 0, %s195
      %s199 = sphi 0, %s198
      %s215 = sphi 0, %s199
      %s221 = sphi 0, %s223
      %s224 = sphi 0, %s221
      %s225 = sphi 0, %s224
      %s241 = sphi 0, %s225
      %s247 = sphi 0, %s249
      %s250 = sphi 0, %s247
      %s251 = sphi 0, %s250
      %s267 = sphi 0, %s251
      %s273 = sphi 0, %s275
      %s276 = sphi 0, %s273
      %s277 = sphi 0, %s276
      %s293 = sphi 0, %s277
      %s299 = sphi 0, %s301
      %s302 = sphi 0, %s299
      %s303 = sphi 0, %s302
      %s319 = sphi 0, %s303
    $region4: #{tpu_custom_call.1} parent=1 // loop_header_branch
      %25 = sbr.rel (%p23) target = $region8
    $region5: #{tpu_custom_call.1} parent=1 // loop_body
      %s27 = ssub.s32 %s22, 1
      %s28 = ssub.s32 %s22, 2
      %s35 = sadd.s32 1, %s30
      %p36 = scmp.ge.s32.totalorder %s35, 2
      %s37 = scalar_select %p36, 0, %s35
      %s38 = sadd.s32 1, %s29
      %s39 = scalar_select %p36, %s38, %s29
      %p40 = scmp.ge.s32.totalorder %s39, 2
      %s41 = scalar_select %p40, 0, %s39
      %s42 = ssub.s32 %s29, %s41
      %p43 = scmp.eq.s32.totalorder %s42, 0
      %s45 = sadd.s32 %s44, 1
      %s46 = scalar_select %p43, %s44, %s45
      %p49 = pneg %p43
      %p50 = scmp.eq.s32.totalorder %s22, 3
      %p51 = por %p49, %p50
      %p52 = scmp.ne.s32.totalorder %s44, %s47
      %p53 = scmp.eq.s32.totalorder %s22, 0
      %p54 = por %p52, %p53
      %p55 = scmp.ne.s32.totalorder %s44, %s47
      %p56 = scmp.eq.s32.totalorder %s27, 3
      %p57 = por %p55, %p56
      %p58 = scmp.ne.s32.totalorder %s47, %s48
      %p59 = scmp.eq.s32.totalorder %s27, 0
      %p60 = por %p58, %p59
      %p61 = scmp.ne.s32.totalorder %s47, %s48
      %p62 = scmp.eq.s32.totalorder %s28, 3
      %p63 = por %p61, %p62
      %p65 = scmp.ne.s32.totalorder %s48, %s64
      %p66 = scmp.eq.s32.totalorder %s28, 0
      %p67 = por %p65, %p66
      %s68 = ssub.s32 %s29, %s41
      %p69 = scmp.eq.s32.totalorder %s68, 0
      %s71 = sadd.s32 %s70, 1
      %s72 = scalar_select %p69, %s70, %s71
      %p75 = pneg %p69
      %p76 = scmp.eq.s32.totalorder %s22, 3
      %p77 = por %p75, %p76
      %p78 = scmp.ne.s32.totalorder %s70, %s73
      %p79 = scmp.eq.s32.totalorder %s22, 0
      %p80 = por %p78, %p79
      %p81 = scmp.ne.s32.totalorder %s70, %s73
      %p82 = scmp.eq.s32.totalorder %s27, 3
      %p83 = por %p81, %p82
      %p84 = scmp.ne.s32.totalorder %s73, %s74
      %p85 = scmp.eq.s32.totalorder %s27, 0
      %p86 = por %p84, %p85
      %p87 = scmp.ne.s32.totalorder %s73, %s74
      %p88 = scmp.eq.s32.totalorder %s28, 3
      %p89 = por %p87, %p88
      %p91 = scmp.ne.s32.totalorder %s74, %s90
      %p92 = scmp.eq.s32.totalorder %s28, 0
      %p93 = por %p91, %p92
      %s94 = ssub.s32 %s29, %s41
      %p95 = scmp.eq.s32.totalorder %s94, 0
      %s97 = sadd.s32 %s96, 1
      %s98 = scalar_select %p95, %s96, %s97
      %p101 = pneg %p95
      %p102 = scmp.eq.s32.totalorder %s22, 3
      %p103 = por %p101, %p102
      %p104 = scmp.ne.s32.totalorder %s96, %s99
      %p105 = scmp.eq.s32.totalorder %s22, 0
      %p106 = por %p104, %p105
      %p107 = scmp.ne.s32.totalorder %s96, %s99
      %p108 = scmp.eq.s32.totalorder %s27, 3
      %p109 = por %p107, %p108
      %p110 = scmp.ne.s32.totalorder %s99, %s100
      %p111 = scmp.eq.s32.totalorder %s27, 0
      %p112 = por %p110, %p111
      %p113 = scmp.ne.s32.totalorder %s99, %s100
      %p114 = scmp.eq.s32.totalorder %s28, 3
      %p115 = por %p113, %p114
      %p117 = scmp.ne.s32.totalorder %s100, %s116
      %p118 = scmp.eq.s32.totalorder %s28, 0
      %p119 = por %p117, %p118
      %s121 = sadd.s32 %s120, 1
      %p124 = scmp.eq.s32.totalorder %s22, 3
      %p125 = scmp.ne.s32.totalorder %s120, %s122
      %p126 = scmp.eq.s32.totalorder %s22, 0
      %p127 = por %p125, %p126
      %p128 = scmp.ne.s32.totalorder %s120, %s122
      %p129 = scmp.eq.s32.totalorder %s27, 3
      %p130 = por %p128, %p129
      %p131 = scmp.ne.s32.totalorder %s122, %s123
      %p132 = scmp.eq.s32.totalorder %s27, 0
      %p133 = por %p131, %p132
      %p134 = scmp.ne.s32.totalorder %s122, %s123
      %p135 = scmp.eq.s32.totalorder %s28, 3
      %p136 = por %p134, %p135
      %p138 = scmp.ne.s32.totalorder %s123, %s137
      %p139 = scmp.eq.s32.totalorder %s28, 0
      %p140 = por %p138, %p139
      %s141 = ssub.s32 %s30, %s37
      %p142 = scmp.eq.s32.totalorder %s141, 0
      %s144 = sadd.s32 %s143, 1
      %s145 = scalar_select %p142, %s143, %s144
      %p148 = pneg %p142
      %p149 = scmp.eq.s32.totalorder %s22, 3
      %p150 = por %p148, %p149
      %p151 = scmp.ne.s32.totalorder %s143, %s146
      %p152 = scmp.eq.s32.totalorder %s22, 0
      %p153 = por %p151, %p152
      %p154 = scmp.ne.s32.totalorder %s143, %s146
      %p155 = scmp.eq.s32.totalorder %s27, 3
      %p156 = por %p154, %p155
      %p157 = scmp.ne.s32.totalorder %s146, %s147
      %p158 = scmp.eq.s32.totalorder %s27, 0
      %p159 = por %p157, %p158
      %p160 = scmp.ne.s32.totalorder %s146, %s147
      %p161 = scmp.eq.s32.totalorder %s28, 3
      %p162 = por %p160, %p161
      %p164 = scmp.ne.s32.totalorder %s147, %s163
      %p165 = scmp.eq.s32.totalorder %s28, 0
      %p166 = por %p164, %p165
      %s167 = ssub.s32 %s30, %s37
      %p168 = scmp.eq.s32.totalorder %s167, 0
      %s170 = sadd.s32 %s169, 1
      %s171 = scalar_select %p168, %s169, %s170
      %p174 = pneg %p168
      %p175 = scmp.eq.s32.totalorder %s22, 3
      %p176 = por %p174, %p175
      %p177 = scmp.ne.s32.totalorder %s169, %s172
      %p178 = scmp.eq.s32.totalorder %s22, 0
      %p179 = por %p177, %p178
      %p180 = scmp.ne.s32.totalorder %s169, %s172
      %p181 = scmp.eq.s32.totalorder %s27, 3
      %p182 = por %p180, %p181
      %p183 = scmp.ne.s32.totalorder %s172, %s173
      %p184 = scmp.eq.s32.totalorder %s27, 0
      %p185 = por %p183, %p184
      %p186 = scmp.ne.s32.totalorder %s172, %s173
      %p187 = scmp.eq.s32.totalorder %s28, 3
      %p188 = por %p186, %p187
      %p190 = scmp.ne.s32.totalorder %s173, %s189
      %p191 = scmp.eq.s32.totalorder %s28, 0
      %p192 = por %p190, %p191
      %s193 = ssub.s32 %s30, %s37
      %p194 = scmp.eq.s32.totalorder %s193, 0
      %s196 = sadd.s32 %s195, 1
      %s197 = scalar_select %p194, %s195, %s196
      %p200 = pneg %p194
      %p201 = scmp.eq.s32.totalorder %s22, 3
      %p202 = por %p200, %p201
      %p203 = scmp.ne.s32.totalorder %s195, %s198
      %p204 = scmp.eq.s32.totalorder %s22, 0
      %p205 = por %p203, %p204
      %p206 = scmp.ne.s32.totalorder %s195, %s198
      %p207 = scmp.eq.s32.totalorder %s27, 3
      %p208 = por %p206, %p207
      %p209 = scmp.ne.s32.totalorder %s198, %s199
      %p210 = scmp.eq.s32.totalorder %s27, 0
      %p211 = por %p209, %p210
      %p212 = scmp.ne.s32.totalorder %s198, %s199
      %p213 = scmp.eq.s32.totalorder %s28, 3
      %p214 = por %p212, %p213
      %p216 = scmp.ne.s32.totalorder %s199, %s215
      %p217 = scmp.eq.s32.totalorder %s28, 0
      %p218 = por %p216, %p217
      %s219 = ssub.s32 %s30, %s37
      %p220 = scmp.eq.s32.totalorder %s219, 0
      %s222 = sadd.s32 %s221, 1
      %s223 = scalar_select %p220, %s221, %s222
      %p226 = pneg %p220
      %p227 = scmp.eq.s32.totalorder %s22, 3
      %p228 = por %p226, %p227
      %p229 = scmp.ne.s32.totalorder %s221, %s224
      %p230 = scmp.eq.s32.totalorder %s22, 0
      %p231 = por %p229, %p230
      %p232 = scmp.ne.s32.totalorder %s221, %s224
      %p233 = scmp.eq.s32.totalorder %s27, 3
      %p234 = por %p232, %p233
      %p235 = scmp.ne.s32.totalorder %s224, %s225
      %p236 = scmp.eq.s32.totalorder %s27, 0
      %p237 = por %p235, %p236
      %p238 = scmp.ne.s32.totalorder %s224, %s225
      %p239 = scmp.eq.s32.totalorder %s28, 3
      %p240 = por %p238, %p239
      %p242 = scmp.ne.s32.totalorder %s225, %s241
      %p243 = scmp.eq.s32.totalorder %s28, 0
      %p244 = por %p242, %p243
      %s245 = ssub.s32 %s30, %s37
      %p246 = scmp.eq.s32.totalorder %s245, 0
      %s248 = sadd.s32 %s247, 1
      %s249 = scalar_select %p246, %s247, %s248
      %p252 = pneg %p246
      %p253 = scmp.eq.s32.totalorder %s22, 3
      %p254 = por %p252, %p253
      %p255 = scmp.ne.s32.totalorder %s247, %s250
      %p256 = scmp.eq.s32.totalorder %s22, 0
      %p257 = por %p255, %p256
      %p258 = scmp.ne.s32.totalorder %s247, %s250
      %p259 = scmp.eq.s32.totalorder %s27, 3
      %p260 = por %p258, %p259
      %p261 = scmp.ne.s32.totalorder %s250, %s251
      %p262 = scmp.eq.s32.totalorder %s27, 0
      %p263 = por %p261, %p262
      %p264 = scmp.ne.s32.totalorder %s250, %s251
      %p265 = scmp.eq.s32.totalorder %s28, 3
      %p266 = por %p264, %p265
      %p268 = scmp.ne.s32.totalorder %s251, %s267
      %p269 = scmp.eq.s32.totalorder %s28, 0
      %p270 = por %p268, %p269
      %s271 = ssub.s32 %s30, %s37
      %p272 = scmp.eq.s32.totalorder %s271, 0
      %s274 = sadd.s32 %s273, 1
      %s275 = scalar_select %p272, %s273, %s274
      %p278 = pneg %p272
      %p279 = scmp.eq.s32.totalorder %s22, 3
      %p280 = por %p278, %p279
      %p281 = scmp.ne.s32.totalorder %s273, %s276
      %p282 = scmp.eq.s32.totalorder %s22, 0
      %p283 = por %p281, %p282
      %p284 = scmp.ne.s32.totalorder %s273, %s276
      %p285 = scmp.eq.s32.totalorder %s27, 3
      %p286 = por %p284, %p285
      %p287 = scmp.ne.s32.totalorder %s276, %s277
      %p288 = scmp.eq.s32.totalorder %s27, 0
      %p289 = por %p287, %p288
      %p290 = scmp.ne.s32.totalorder %s276, %s277
      %p291 = scmp.eq.s32.totalorder %s28, 3
      %p292 = por %p290, %p291
      %p294 = scmp.ne.s32.totalorder %s277, %s293
      %p295 = scmp.eq.s32.totalorder %s28, 0
      %p296 = por %p294, %p295
      %s297 = ssub.s32 %s29, %s41
      %p298 = scmp.eq.s32.totalorder %s297, 0
      %s300 = sadd.s32 %s299, 1
      %s301 = scalar_select %p298, %s299, %s300
      %p304 = pneg %p298
      %p305 = scmp.eq.s32.totalorder %s22, 3
      %p306 = por %p304, %p305
      %p307 = scmp.ne.s32.totalorder %s299, %s302
      %p308 = scmp.eq.s32.totalorder %s22, 0
      %p309 = por %p307, %p308
      %p310 = scmp.ne.s32.totalorder %s299, %s302
      %p311 = scmp.eq.s32.totalorder %s27, 3
      %p312 = por %p310, %p311
      %p313 = scmp.ne.s32.totalorder %s302, %s303
      %p314 = scmp.eq.s32.totalorder %s27, 0
      %p315 = por %p313, %p314
      %p316 = scmp.ne.s32.totalorder %s302, %s303
      %p317 = scmp.eq.s32.totalorder %s28, 3
      %p318 = por %p316, %p317
      %p320 = scmp.ne.s32.totalorder %s303, %s319
      %p321 = scmp.eq.s32.totalorder %s28, 0
      %p322 = por %p320, %p321
      %p323 = scmp.le.s32.totalorder 1, %s22
      %p324 = scmp.lt.s32.totalorder %s22, 5
      %p325 = pnand %p323, %p324
      %p326 = pneg %p325
      // Predicated region
      $region9: #{tpu_custom_call.1} parent=5 // pred_check
        _
      $region10: #{tpu_custom_call.1} parent=5 // pred_check_branch
        %328 = sbr.rel (%p325) target = $region12
      $region11: #{tpu_custom_call.1} parent=5 // pred_region
        %s329 = ssub.s32 %s22, 1
        // Predicated region
        $region13: #{tpu_custom_call.1} parent=11 // pred_check
          %p330 = pneg %p133
        $region14: #{tpu_custom_call.1} parent=11 // pred_check_branch
          %332 = sbr.rel (%p330) target = $region16
        $region15: #{tpu_custom_call.1} parent=11 // pred_region
          _
        $region16: #{tpu_custom_call.1} parent=11 // pred_fallthru
          _
      $region12: #{tpu_custom_call.1} parent=5 // pred_fallthru
        _
      %p333 = scmp.lt.s32.totalorder %s22, 4
      // Predicated region
      $region17: #{tpu_custom_call.1} parent=5 // pred_check
        %p334 = pneg %p333
      $region18: #{tpu_custom_call.1} parent=5 // pred_check_branch
        %336 = sbr.rel (%p334) target = $region20
      $region19: #{tpu_custom_call.1} parent=5 // pred_region
        // Predicated region
        $region21: #{tpu_custom_call.1} parent=19 // pred_check
          %p337 = pneg %p54
        $region22: #{tpu_custom_call.1} parent=19 // pred_check_branch
          %339 = sbr.rel (%p337) target = $region24
        $region23: #{tpu_custom_call.1} parent=19 // pred_region
          %s340 = sand.u32 %s44, 1
          %s341 = scalar_lea.sflag [#allocation3], %s340
          %s342 = sand.u32 %s44, 1
          %s343 = smul.addr %s342, 8
          %s344 = scalar_lea.vmem [#allocation2], %s343
          %s345 = smul.u32 2, %s29
          %s347 = ssub.s32 128, 128
          %348 = vsyncadd %s341, %s347
          %s349 = smul.addr %s345, 64
          %s350 = scalar_lea.hbm %s0, %s349
          %s352 = sshll.u32 %s344, 4
          %s353 = int_to_ptr.vmem [resolvable:$true] %s352
          %355 = dma.hbm_to_vmem [thread:$0]  %s350, 128, %s353, %s341
        $region24: #{tpu_custom_call.1} parent=19 // pred_fallthru
          _
        // Predicated region
        $region25: #{tpu_custom_call.1} parent=19 // pred_check
          %p356 = pneg %p80
        $region26: #{tpu_custom_call.1} parent=19 // pred_check_branch
          %358 = sbr.rel (%p356) target = $region28
        $region27: #{tpu_custom_call.1} parent=19 // pred_region
          %s359 = smul.u32 2, %s29
          %p360 = scmp.lt.s32.totalorder %s359, 3
          %s361 = scalar_select %p360, %s359, 3
          %s362 = smul.addr %s361, 4
          %s363 = scalar_lea.vmem %s1, %s362
          %s364 = smul.u32 2, %s29
        $region28: #{tpu_custom_call.1} parent=19 // pred_fallthru
          _
        // Predicated region
        $region29: #{tpu_custom_call.1} parent=19 // pred_check
          %p365 = pneg %p106
        $region30: #{tpu_custom_call.1} parent=19 // pred_check_branch
          %367 = sbr.rel (%p365) target = $region32
        $region31: #{tpu_custom_call.1} parent=19 // pred_region
          %s368 = smul.u32 2, %s29
          %p369 = scmp.lt.s32.totalorder %s368, 3
          %s370 = scalar_select %p369, %s368, 3
          %s371 = smul.addr %s370, 4
          %s372 = scalar_lea.vmem %s2, %s371
          %s373 = smul.u32 2, %s29
        $region32: #{tpu_custom_call.1} parent=19 // pred_fallthru
          _
        // Predicated region
        $region33: #{tpu_custom_call.1} parent=19 // pred_check
          %p374 = pneg %p153
        $region34: #{tpu_custom_call.1} parent=19 // pred_check_branch
          %376 = sbr.rel (%p374) target = $region36
        $region35: #{tpu_custom_call.1} parent=19 // pred_region
          %p377 = scmp.lt.s32.totalorder %s30, 1
          %s378 = scalar_select %p377, %s30, 1
          %s379 = smul.addr %s378, 36
          %s380 = smul.addr %s379, 4
          %s381 = scalar_lea.vmem %s4, %s380
        $region36: #{tpu_custom_call.1} parent=19 // pred_fallthru
          _
        // Predicated region
        $region37: #{tpu_custom_call.1} parent=19 // pred_check
          %p382 = pneg %p179
        $region38: #{tpu_custom_call.1} parent=19 // pred_check_branch
          %384 = sbr.rel (%p382) target = $region40
        $region39: #{tpu_custom_call.1} parent=19 // pred_region
          %p385 = scmp.lt.s32.totalorder %s30, 1
          %s386 = scalar_select %p385, %s30, 1
          %s387 = smul.addr %s386, 4
          %s388 = smul.addr %s387, 8
          %s389 = scalar_lea.vmem %s5, %s388
        $region40: #{tpu_custom_call.1} parent=19 // pred_fallthru
          _
        // Predicated region
        $region41: #{tpu_custom_call.1} parent=19 // pred_check
          %p390 = pneg %p205
        $region42: #{tpu_custom_call.1} parent=19 // pred_check_branch
          %392 = sbr.rel (%p390) target = $region44
        $region43: #{tpu_custom_call.1} parent=19 // pred_region
          %p393 = scmp.lt.s32.totalorder %s30, 1
          %s394 = scalar_select %p393, %s30, 1
          %s395 = smul.addr %s394, 36
          %s396 = smul.addr %s395, 4
          %s397 = scalar_lea.vmem %s6, %s396
        $region44: #{tpu_custom_call.1} parent=19 // pred_fallthru
          _
        // Predicated region
        $region45: #{tpu_custom_call.1} parent=19 // pred_check
          %p398 = pneg %p231
        $region46: #{tpu_custom_call.1} parent=19 // pred_check_branch
          %400 = sbr.rel (%p398) target = $region48
        $region47: #{tpu_custom_call.1} parent=19 // pred_region
          %p401 = scmp.lt.s32.totalorder %s30, 1
          %s402 = scalar_select %p401, %s30, 1
          %s403 = smul.addr %s402, 4
          %s404 = smul.addr %s403, 8
          %s405 = scalar_lea.vmem %s7, %s404
        $region48: #{tpu_custom_call.1} parent=19 // pred_fallthru
          _
        // Predicated region
        $region49: #{tpu_custom_call.1} parent=19 // pred_check
          %p406 = pneg %p257
        $region50: #{tpu_custom_call.1} parent=19 // pred_check_branch
          %408 = sbr.rel (%p406) target = $region52
        $region51: #{tpu_custom_call.1} parent=19 // pred_region
          %p409 = scmp.lt.s32.totalorder %s30, 1
          %s410 = scalar_select %p409, %s30, 1
          %s411 = smul.addr %s410, 9
          %s412 = smul.addr %s411, 2
          %s413 = scalar_lea.vmem %s8, %s412
        $region52: #{tpu_custom_call.1} parent=19 // pred_fallthru
          _
        // Predicated region
        $region53: #{tpu_custom_call.1} parent=19 // pred_check
          %p414 = pneg %p283
        $region54: #{tpu_custom_call.1} parent=19 // pred_check_branch
          %416 = sbr.rel (%p414) target = $region56
        $region55: #{tpu_custom_call.1} parent=19 // pred_region
          %p417 = scmp.lt.s32.totalorder %s30, 1
          %s418 = scalar_select %p417, %s30, 1
          %s419 = smul.addr %s418, 4
          %s420 = scalar_lea.vmem %s9, %s419
        $region56: #{tpu_custom_call.1} parent=19 // pred_fallthru
          _
      $region20: #{tpu_custom_call.1} parent=5 // pred_fallthru
        _
      %p421 = scmp.le.s32.totalorder 1, %s22
      %p422 = scmp.lt.s32.totalorder %s22, 5
      %p423 = pnand %p421, %p422
      %p424 = pneg %p423
      // Predicated region
      $region57: #{tpu_custom_call.1} parent=5 // pred_check
        _
      $region58: #{tpu_custom_call.1} parent=5 // pred_check_branch
        %426 = sbr.rel (%p423) target = $region60
      $region59: #{tpu_custom_call.1} parent=5 // pred_region
        %s427 = ssub.s32 %s22, 1
        %s428 = sand.u32 %s47, 1
        %s429 = scalar_lea.sflag [#allocation3], %s428
        %s430 = sand.u32 %s47, 1
        %s431 = smul.addr %s430, 8
        %s432 = scalar_lea.vmem [#allocation2], %s431
        // Predicated region
        $region61: #{tpu_custom_call.1} parent=59 // pred_check
          %p433 = pneg %p60
        $region62: #{tpu_custom_call.1} parent=59 // pred_check_branch
          %435 = sbr.rel (%p433) target = $region64
        $region63: #{tpu_custom_call.1} parent=59 // pred_region
          %436 = dma.done %s429, 128
        $region64: #{tpu_custom_call.1} parent=59 // pred_fallthru
          _
        %s437 = sand.u32 %s47, 1
        %s438 = scalar_lea.sflag [#allocation3], %s437
        %s439 = sand.u32 %s47, 1
        %s440 = smul.addr %s439, 8
        %s441 = scalar_lea.vmem [#allocation2], %s440
        %p442 = pneg %p60
        %p443 = pneg %p57
        %s444 = smul.u32 2, %s31
        %p445 = scmp.lt.s32.totalorder %s444, 3
        %s446 = scalar_select %p445, %s444, 3
        %s447 = smul.addr %s446, 4
        %s448 = scalar_lea.vmem %s1, %s447
        %p449 = pneg %p86
        %p450 = pneg %p83
        %s451 = smul.u32 2, %s31
        %p452 = scmp.lt.s32.totalorder %s451, 3
        %s453 = scalar_select %p452, %s451, 3
        %s454 = smul.addr %s453, 4
        %s455 = scalar_lea.vmem %s2, %s454
        %p456 = pneg %p112
        %p457 = pneg %p109
        %p458 = pneg %p133
        %p459 = pneg %p130
        %p460 = scmp.lt.s32.totalorder %s32, 1
        %s461 = scalar_select %p460, %s32, 1
        %s462 = smul.addr %s461, 36
        %s463 = smul.addr %s462, 4
        %s464 = scalar_lea.vmem %s4, %s463
        %p465 = pneg %p159
        %p466 = pneg %p156
        %p467 = scmp.lt.s32.totalorder %s32, 1
        %s468 = scalar_select %p467, %s32, 1
        %s469 = smul.addr %s468, 4
        %s470 = smul.addr %s469, 8
        %s471 = scalar_lea.vmem %s5, %s470
        %p472 = pneg %p185
        %p473 = pneg %p182
        %p474 = scmp.lt.s32.totalorder %s32, 1
        %s475 = scalar_select %p474, %s32, 1
        %s476 = smul.addr %s475, 36
        %s477 = smul.addr %s476, 4
        %s478 = scalar_lea.vmem %s6, %s477
        %p479 = pneg %p211
        %p480 = pneg %p208
        %p481 = scmp.lt.s32.totalorder %s32, 1
        %s482 = scalar_select %p481, %s32, 1
        %s483 = smul.addr %s482, 4
        %s484 = smul.addr %s483, 8
        %s485 = scalar_lea.vmem %s7, %s484
        %p486 = pneg %p237
        %p487 = pneg %p234
        %p488 = scmp.lt.s32.totalorder %s32, 1
        %s489 = scalar_select %p488, %s32, 1
        %s490 = smul.addr %s489, 9
        %s491 = smul.addr %s490, 2
        %s492 = scalar_lea.vmem %s8, %s491
        %p493 = pneg %p263
        %p494 = pneg %p260
        %p495 = scmp.lt.s32.totalorder %s32, 1
        %s496 = scalar_select %p495, %s32, 1
        %s497 = smul.addr %s496, 4
        %s498 = scalar_lea.vmem %s9, %s497
        %p499 = pneg %p289
        %p500 = pneg %p286
        %p501 = pneg %p315
        %p502 = pneg %p312
        %s503 = sand.u32 %s302, 1
        %s504 = scalar_lea.sflag [#allocation4], %s503
        %s505 = sand.u32 %s302, 1
        %s506 = smul.addr %s505, 8
        %s507 = scalar_lea.vmem [#allocation5], %s506
        %s508 = smul.u32 2, %s31
        %s509 = smul.u32 2, %s31
        %p510 = scmp.lt.s32.totalorder %s509, 3
        %s511 = scalar_select %p510, %s509, 3
        %s512 = smul.addr %s511, 4
        %s513 = scalar_lea.vmem %s1, %s512
        %s514 = smul.u32 2, %s31
        %s515 = smul.u32 2, %s31
        %p516 = scmp.lt.s32.totalorder %s515, 3
        %s517 = scalar_select %p516, %s515, 3
        %s518 = smul.addr %s517, 4
        %s519 = scalar_lea.vmem %s2, %s518
        %s520 = smul.u32 2, %s31
        %p521 = scmp.lt.s32.totalorder %s32, 1
        %s522 = scalar_select %p521, %s32, 1
        %s523 = smul.addr %s522, 36
        %s524 = smul.addr %s523, 4
        %s525 = scalar_lea.vmem %s4, %s524
        %p526 = scmp.lt.s32.totalorder %s32, 1
        %s527 = scalar_select %p526, %s32, 1
        %s528 = smul.addr %s527, 4
        %s529 = smul.addr %s528, 8
        %s530 = scalar_lea.vmem %s5, %s529
        %p531 = scmp.lt.s32.totalorder %s32, 1
        %s532 = scalar_select %p531, %s32, 1
        %s533 = smul.addr %s532, 36
        %s534 = smul.addr %s533, 4
        %s535 = scalar_lea.vmem %s6, %s534
        %p536 = scmp.lt.s32.totalorder %s32, 1
        %s537 = scalar_select %p536, %s32, 1
        %s538 = smul.addr %s537, 4
        %s539 = smul.addr %s538, 8
        %s540 = scalar_lea.vmem %s7, %s539
        %p541 = scmp.lt.s32.totalorder %s32, 1
        %s542 = scalar_select %p541, %s32, 1
        %s543 = smul.addr %s542, 9
        %s544 = smul.addr %s543, 2
        %s545 = scalar_lea.vmem %s8, %s544
        %p546 = scmp.lt.s32.totalorder %s32, 1
        %s547 = scalar_select %p546, %s32, 1
        %s548 = smul.addr %s547, 4
        %s549 = scalar_lea.vmem %s9, %s548
        %s550 = smul.u32 2, %s31
        %p552 = scmp.eq.s32.totalorder %s32, 0
        // Predicated region
        $region65: #{tpu_custom_call.1} parent=59 // pred_check
          %p553 = pneg %p552
        $region66: #{tpu_custom_call.1} parent=59 // pred_check_branch
          %555 = sbr.rel (%p553) target = $region68
        $region67: #{tpu_custom_call.1} parent=59 // pred_region
          %v556 = vld [vmem:[%s432] sm:$0xff]
          %557 = vst [vmem:[%s507] sm:$0xff] %v556
        $region68: #{tpu_custom_call.1} parent=59 // pred_fallthru
          _
        %v558 = vld [vmem:[%s507] sm:$0xff]
        %v560 = vcombine.high %v558, %v558
        %562 = vrot.lane.b32.xlu0 %v558, 17
        %v563 = vpop.permute.xlu0 %562
        %564 = vrot.lane.b32.xlu0 %v560, 17
        %v565 = vpop.permute.xlu0 %564
        %v566 = vlaneseq
        %v567 = vand.u32 %v566, 127
        %vm568 = vcmp.lt.s32.totalorder %v567, 17
        %v569 = vsel %vm568, %v563, %v565
        %v570 = vsel %vm568, %v565, %v563
        %v571 = vld [vmem:[%s3] ss:$8 sm:$0x3]
        %v573 = vlaneseq
        %v574 = vshrl.u32 %v573, 7
        %v575 = vsub.s32 0, %v574
        %v576 = vrot.slane %v571, %v575
        %v577 = vlaneseq
        %v578 = vshrl.u32 %v577, 7
        %v579 = vsub.s32 1, %v578
        %v580 = vrot.slane %v571, %v579
        %v583 = vmul.f32 %v570, %v576
        %v584 = vmul.f32 %v569, %v580
        %v585 = vld [vmem:[%s525] sm:$0xf]
        %v586 = vld [vmem:[%s525 + $0x4] sm:$0xf]
        %v587 = vld [vmem:[%s525 + $0x8] sm:$0xf]
        %v588 = vld [vmem:[%s525 + $0xc] sm:$0xf]
        %v589 = vpack.c.bf16 %v583, %v583
        %v590 = vpack.c.bf16 %v584, %v584
        %591 = vrot.lane.b32.xlu0 %v558, 16
        %v592 = vpop.permute.xlu0 %591
        %593 = vrot.lane.b32.xlu0 %v560, 16
        %v594 = vpop.permute.xlu0 %593
        %vm595 = vcmp.lt.s32.totalorder %v567, 16
        %v596 = vsel %vm595, %v592, %v594
        %v597 = vsel %vm595, %v594, %v592
        %s598 = scalar_lea.vmem %s3, 1
        %v599 = vld [vmem:[%s598] ss:$8 sm:$0x3]
        %v601 = vlaneseq
        %v602 = vshrl.u32 %v601, 7
        %v603 = vsub.s32 0, %v602
        %v604 = vrot.slane %v599, %v603
        %v605 = vlaneseq
        %v606 = vshrl.u32 %v605, 7
        %v607 = vsub.s32 1, %v606
        %v608 = vrot.slane %v599, %v607
        %v611 = vmul.f32 %v597, %v604
        %v612 = vmul.f32 %v596, %v608
        %s613 = scalar_lea.vmem %s525, 16
        %v614 = vld [vmem:[%s613] sm:$0xf]
        %v615 = vld [vmem:[%s613 + $0x4] sm:$0xf]
        %v616 = vld [vmem:[%s613 + $0x8] sm:$0xf]
        %v617 = vld [vmem:[%s613 + $0xc] sm:$0xf]
        %v618 = vpack.c.bf16 %v611, %v611
        %v619 = vpack.c.bf16 %v612, %v612
        %v624 = vunpack.c.l.b16 %v614
        %v625 = vunpack.c.l.b16 %v615
        %v626 = vunpack.c.l.b16 %v616
        %v627 = vunpack.c.l.b16 %v617
        %v628 = vpack.c.b16 %v625, %v624
        %v629 = vpack.c.b16 %v627, %v626
        %vm630 = vcmask 31744
        %v632 = vsel %vm630, %v628, 0
        %v635 = vsel %vm630, %v629, 0
        %vm637 = vcmask 1041408
        %v639 = vsel %vm637, %v618, 0
        %v642 = vsel %vm637, %v619, 0
        %644 = vmatprep.subr.bf16.mxu0 0
        %645 = vmatpush1.bf16.msra.mxu0 0
        %646 = vmatprep.subr.bf16.mxu0 0
        %647 = vmatpush1.bf16.msra.mxu0 0
        %648 = vmatprep.subr.bf16.mxu0 0
        %649 = vmatpush1.bf16.msra.mxu0 0
        %650 = vmatprep.subr.bf16.mxu0 0
        %651 = vmatpush1.bf16.msra.mxu0 0
        %652 = vmatprep.subr.bf16.mxu0 0
        %653 = vmatpush1.bf16.msra.mxu0 0
        %654 = vmatprep.subr.bf16.mxu0 0
        %655 = vmatpush1.bf16.msra.mxu0 0
        %656 = vmatprep.subr.bf16.mxu0 0
        %657 = vmatpush1.bf16.msra.mxu0 0
        %658 = vmatprep.subr.bf16.mxu0 %v642
        %659 = vmatpush1.bf16.msra.mxu0 %v639
        %660 = vmatprep.subr.bf16.mxu0 0
        %661 = vmatpush2.bf16.msra.mxu0 0
        %662 = vmatprep.subr.bf16.mxu0 0
        %663 = vmatpush2.bf16.msra.mxu0 0
        %664 = vmatprep.subr.bf16.mxu0 0
        %665 = vmatpush2.bf16.msra.mxu0 0
        %666 = vmatprep.subr.bf16.mxu0 0
        %667 = vmatpush2.bf16.msra.mxu0 0
        %668 = vmatprep.subr.bf16.mxu0 0
        %669 = vmatpush2.bf16.msra.mxu0 0
        %670 = vmatprep.subr.bf16.mxu0 0
        %671 = vmatpush2.bf16.msra.mxu0 0
        %672 = vmatprep.subr.bf16.mxu0 0
        %673 = vmatpush2.bf16.msra.mxu0 0
        %674 = vmatprep.subr.bf16.mxu0 0
        %675 = vmatpush2.bf16.msra.mxu0 0
        %676 = vmatprep.mubr.bf16.mxu0 0
        %677 = vmatmul.mubr.bf16.gmra.mxu0 %v632
        %v678 = vpop.f32.mrf.mxu0
        %v679 = vadd.f32 0.0, %v678
        %v680 = vpop.f32.mrf.mxu0
        %v681 = vadd.f32 0.0, %v680
        %v682 = vpop.f32.mrf.mxu0
        %v683 = vadd.f32 0.0, %v682
        %v684 = vpop.f32.mrf.mxu0
        %v685 = vadd.f32 0.0, %v684
        %686 = vmatprep.mubr.bf16.mxu0 0
        %687 = vmatmul.mubr.bf16.gmra.mxu0 %v635
        %v688 = vpop.f32.mrf.mxu0
        %v689 = vadd.f32 0.0, %v688
        %v690 = vpop.f32.mrf.mxu0
        %v691 = vadd.f32 0.0, %v690
        %v692 = vpop.f32.mrf.mxu0
        %v693 = vadd.f32 0.0, %v692
        %v694 = vpop.f32.mrf.mxu0
        %v695 = vadd.f32 0.0, %v694
        %696 = vdwg.mxu0
        %v701 = vunpack.c.l.b16 %v585
        %v702 = vunpack.c.l.b16 %v586
        %v703 = vunpack.c.l.b16 %v587
        %v704 = vunpack.c.l.b16 %v588
        %v705 = vpack.c.b16 %v702, %v701
        %v706 = vpack.c.b16 %v704, %v703
        %v708 = vsel %vm630, %v705, 0
        %v711 = vsel %vm630, %v706, 0
        %v714 = vsel %vm637, %v589, 0
        %v717 = vsel %vm637, %v590, 0
        %719 = vmatprep.subr.bf16.mxu0 0
        %720 = vmatpush1.bf16.msra.mxu0 0
        %721 = vmatprep.subr.bf16.mxu0 0
        %722 = vmatpush1.bf16.msra.mxu0 0
        %723 = vmatprep.subr.bf16.mxu0 0
        %724 = vmatpush1.bf16.msra.mxu0 0
        %725 = vmatprep.subr.bf16.mxu0 0
        %726 = vmatpush1.bf16.msra.mxu0 0
        %727 = vmatprep.subr.bf16.mxu0 0
        %728 = vmatpush1.bf16.msra.mxu0 0
        %729 = vmatprep.subr.bf16.mxu0 0
        %730 = vmatpush1.bf16.msra.mxu0 0
        %731 = vmatprep.subr.bf16.mxu0 0
        %732 = vmatpush1.bf16.msra.mxu0 0
        %733 = vmatprep.subr.bf16.mxu0 %v717
        %734 = vmatpush1.bf16.msra.mxu0 %v714
        %735 = vmatprep.subr.bf16.mxu0 0
        %736 = vmatpush2.bf16.msra.mxu0 0
        %737 = vmatprep.subr.bf16.mxu0 0
        %738 = vmatpush2.bf16.msra.mxu0 0
        %739 = vmatprep.subr.bf16.mxu0 0
        %740 = vmatpush2.bf16.msra.mxu0 0
        %741 = vmatprep.subr.bf16.mxu0 0
        %742 = vmatpush2.bf16.msra.mxu0 0
        %743 = vmatprep.subr.bf16.mxu0 0
        %744 = vmatpush2.bf16.msra.mxu0 0
        %745 = vmatprep.subr.bf16.mxu0 0
        %746 = vmatpush2.bf16.msra.mxu0 0
        %747 = vmatprep.subr.bf16.mxu0 0
        %748 = vmatpush2.bf16.msra.mxu0 0
        %749 = vmatprep.subr.bf16.mxu0 0
        %750 = vmatpush2.bf16.msra.mxu0 0
        %751 = vmatprep.mubr.bf16.mxu0 0
        %752 = vmatmul.mubr.bf16.gmra.mxu0 %v708
        %v753 = vpop.f32.mrf.mxu0
        %v754 = vadd.f32 %v679, %v753
        %v755 = vpop.f32.mrf.mxu0
        %v756 = vadd.f32 %v681, %v755
        %v757 = vpop.f32.mrf.mxu0
        %v758 = vadd.f32 %v683, %v757
        %v759 = vpop.f32.mrf.mxu0
        %v760 = vadd.f32 %v685, %v759
        %761 = vmatprep.mubr.bf16.mxu0 0
        %762 = vmatmul.mubr.bf16.gmra.mxu0 %v711
        %v763 = vpop.f32.mrf.mxu0
        %v764 = vadd.f32 %v689, %v763
        %v765 = vpop.f32.mrf.mxu0
        %v766 = vadd.f32 %v691, %v765
        %v767 = vpop.f32.mrf.mxu0
        %v768 = vadd.f32 %v693, %v767
        %v769 = vpop.f32.mrf.mxu0
        %v770 = vadd.f32 %v695, %v769
        %771 = vdwg.mxu0
        %772 = vrot.lane.b32.xlu0 %v558, 15
        %v773 = vpop.permute.xlu0 %772
        %774 = vrot.lane.b32.xlu0 %v560, 15
        %v775 = vpop.permute.xlu0 %774
        %vm776 = vcmp.lt.s32.totalorder %v567, 15
        %v777 = vsel %vm776, %v773, %v775
        %v778 = vsel %vm776, %v775, %v773
        %s779 = scalar_lea.vmem %s3, 2
        %v780 = vld [vmem:[%s779] ss:$8 sm:$0x3]
        %v782 = vlaneseq
        %v783 = vshrl.u32 %v782, 7
        %v784 = vsub.s32 0, %v783
        %v785 = vrot.slane %v780, %v784
        %v786 = vlaneseq
        %v787 = vshrl.u32 %v786, 7
        %v788 = vsub.s32 1, %v787
        %v789 = vrot.slane %v780, %v788
        %v792 = vmul.f32 %v778, %v785
        %v793 = vmul.f32 %v777, %v789
        %s794 = scalar_lea.vmem %s525, 32
        %v795 = vld [vmem:[%s794] sm:$0xf]
        %v796 = vld [vmem:[%s794 + $0x4] sm:$0xf]
        %v797 = vld [vmem:[%s794 + $0x8] sm:$0xf]
        %v798 = vld [vmem:[%s794 + $0xc] sm:$0xf]
        %v799 = vpack.c.bf16 %v792, %v792
        %v800 = vpack.c.bf16 %v793, %v793
        %v805 = vunpack.c.l.b16 %v795
        %v806 = vunpack.c.l.b16 %v796
        %v807 = vunpack.c.l.b16 %v797
        %v808 = vunpack.c.l.b16 %v798
        %v809 = vpack.c.b16 %v806, %v805
        %v810 = vpack.c.b16 %v808, %v807
        %v812 = vsel %vm630, %v809, 0
        %v815 = vsel %vm630, %v810, 0
        %v818 = vsel %vm637, %v799, 0
        %v821 = vsel %vm637, %v800, 0
        %823 = vmatprep.subr.bf16.mxu0 0
        %824 = vmatpush1.bf16.msra.mxu0 0
        %825 = vmatprep.subr.bf16.mxu0 0
        %826 = vmatpush1.bf16.msra.mxu0 0
        %827 = vmatprep.subr.bf16.mxu0 0
        %828 = vmatpush1.bf16.msra.mxu0 0
        %829 = vmatprep.subr.bf16.mxu0 0
        %830 = vmatpush1.bf16.msra.mxu0 0
        %831 = vmatprep.subr.bf16.mxu0 0
        %832 = vmatpush1.bf16.msra.mxu0 0
        %833 = vmatprep.subr.bf16.mxu0 0
        %834 = vmatpush1.bf16.msra.mxu0 0
        %835 = vmatprep.subr.bf16.mxu0 0
        %836 = vmatpush1.bf16.msra.mxu0 0
        %837 = vmatprep.subr.bf16.mxu0 %v821
        %838 = vmatpush1.bf16.msra.mxu0 %v818
        %839 = vmatprep.subr.bf16.mxu0 0
        %840 = vmatpush2.bf16.msra.mxu0 0
        %841 = vmatprep.subr.bf16.mxu0 0
        %842 = vmatpush2.bf16.msra.mxu0 0
        %843 = vmatprep.subr.bf16.mxu0 0
        %844 = vmatpush2.bf16.msra.mxu0 0
        %845 = vmatprep.subr.bf16.mxu0 0
        %846 = vmatpush2.bf16.msra.mxu0 0
        %847 = vmatprep.subr.bf16.mxu0 0
        %848 = vmatpush2.bf16.msra.mxu0 0
        %849 = vmatprep.subr.bf16.mxu0 0
        %850 = vmatpush2.bf16.msra.mxu0 0
        %851 = vmatprep.subr.bf16.mxu0 0
        %852 = vmatpush2.bf16.msra.mxu0 0
        %853 = vmatprep.subr.bf16.mxu0 0
        %854 = vmatpush2.bf16.msra.mxu0 0
        %855 = vmatprep.mubr.bf16.mxu0 0
        %856 = vmatmul.mubr.bf16.gmra.mxu0 %v812
        %v857 = vpop.f32.mrf.mxu0
        %v858 = vadd.f32 0.0, %v857
        %v859 = vpop.f32.mrf.mxu0
        %v860 = vadd.f32 0.0, %v859
        %v861 = vpop.f32.mrf.mxu0
        %v862 = vadd.f32 0.0, %v861
        %v863 = vpop.f32.mrf.mxu0
        %v864 = vadd.f32 0.0, %v863
        %865 = vmatprep.mubr.bf16.mxu0 0
        %866 = vmatmul.mubr.bf16.gmra.mxu0 %v815
        %v867 = vpop.f32.mrf.mxu0
        %v868 = vadd.f32 0.0, %v867
        %v869 = vpop.f32.mrf.mxu0
        %v870 = vadd.f32 0.0, %v869
        %v871 = vpop.f32.mrf.mxu0
        %v872 = vadd.f32 0.0, %v871
        %v873 = vpop.f32.mrf.mxu0
        %v874 = vadd.f32 0.0, %v873
        %875 = vdwg.mxu0
        %v876 = vadd.f32 %v754, %v858
        %v877 = vadd.f32 %v756, %v860
        %v878 = vadd.f32 %v758, %v862
        %v879 = vadd.f32 %v760, %v864
        %v880 = vadd.f32 %v764, %v868
        %v881 = vadd.f32 %v766, %v870
        %v882 = vadd.f32 %v768, %v872
        %v883 = vadd.f32 %v770, %v874
        %884 = vrot.lane.b32.xlu0 %v558, 1
        %v885 = vpop.permute.xlu0 %884
        %886 = vrot.lane.b32.xlu0 %v560, 1
        %v887 = vpop.permute.xlu0 %886
        %vm888 = vcmp.lt.s32.totalorder %v567, 1
        %v889 = vsel %vm888, %v885, %v887
        %v890 = vsel %vm888, %v887, %v885
        %s891 = scalar_lea.vmem %s3, 3
        %v892 = vld [vmem:[%s891] ss:$8 sm:$0x3]
        %v894 = vlaneseq
        %v895 = vshrl.u32 %v894, 7
        %v896 = vsub.s32 0, %v895
        %v897 = vrot.slane %v892, %v896
        %v898 = vlaneseq
        %v899 = vshrl.u32 %v898, 7
        %v900 = vsub.s32 1, %v899
        %v901 = vrot.slane %v892, %v900
        %v904 = vmul.f32 %v890, %v897
        %v905 = vmul.f32 %v889, %v901
        %s906 = scalar_lea.vmem %s525, 48
        %v907 = vld [vmem:[%s906] sm:$0xf]
        %v908 = vld [vmem:[%s906 + $0x4] sm:$0xf]
        %v909 = vld [vmem:[%s906 + $0x8] sm:$0xf]
        %v910 = vld [vmem:[%s906 + $0xc] sm:$0xf]
        %v911 = vpack.c.bf16 %v904, %v904
        %v912 = vpack.c.bf16 %v905, %v905
        %v917 = vunpack.c.l.b16 %v907
        %v918 = vunpack.c.l.b16 %v908
        %v919 = vunpack.c.l.b16 %v909
        %v920 = vunpack.c.l.b16 %v910
        %v921 = vpack.c.b16 %v918, %v917
        %v922 = vpack.c.b16 %v920, %v919
        %v924 = vsel %vm630, %v921, 0
        %v927 = vsel %vm630, %v922, 0
        %v930 = vsel %vm637, %v911, 0
        %v933 = vsel %vm637, %v912, 0
        %935 = vmatprep.subr.bf16.mxu0 0
        %936 = vmatpush1.bf16.msra.mxu0 0
        %937 = vmatprep.subr.bf16.mxu0 0
        %938 = vmatpush1.bf16.msra.mxu0 0
        %939 = vmatprep.subr.bf16.mxu0 0
        %940 = vmatpush1.bf16.msra.mxu0 0
        %941 = vmatprep.subr.bf16.mxu0 0
        %942 = vmatpush1.bf16.msra.mxu0 0
        %943 = vmatprep.subr.bf16.mxu0 0
        %944 = vmatpush1.bf16.msra.mxu0 0
        %945 = vmatprep.subr.bf16.mxu0 0
        %946 = vmatpush1.bf16.msra.mxu0 0
        %947 = vmatprep.subr.bf16.mxu0 0
        %948 = vmatpush1.bf16.msra.mxu0 0
        %949 = vmatprep.subr.bf16.mxu0 %v933
        %950 = vmatpush1.bf16.msra.mxu0 %v930
        %951 = vmatprep.subr.bf16.mxu0 0
        %952 = vmatpush2.bf16.msra.mxu0 0
        %953 = vmatprep.subr.bf16.mxu0 0
        %954 = vmatpush2.bf16.msra.mxu0 0
        %955 = vmatprep.subr.bf16.mxu0 0
        %956 = vmatpush2.bf16.msra.mxu0 0
        %957 = vmatprep.subr.bf16.mxu0 0
        %958 = vmatpush2.bf16.msra.mxu0 0
        %959 = vmatprep.subr.bf16.mxu0 0
        %960 = vmatpush2.bf16.msra.mxu0 0
        %961 = vmatprep.subr.bf16.mxu0 0
        %962 = vmatpush2.bf16.msra.mxu0 0
        %963 = vmatprep.subr.bf16.mxu0 0
        %964 = vmatpush2.bf16.msra.mxu0 0
        %965 = vmatprep.subr.bf16.mxu0 0
        %966 = vmatpush2.bf16.msra.mxu0 0
        %967 = vmatprep.mubr.bf16.mxu0 0
        %968 = vmatmul.mubr.bf16.gmra.mxu0 %v924
        %v969 = vpop.f32.mrf.mxu0
        %v970 = vadd.f32 0.0, %v969
        %v971 = vpop.f32.mrf.mxu0
        %v972 = vadd.f32 0.0, %v971
        %v973 = vpop.f32.mrf.mxu0
        %v974 = vadd.f32 0.0, %v973
        %v975 = vpop.f32.mrf.mxu0
        %v976 = vadd.f32 0.0, %v975
        %977 = vmatprep.mubr.bf16.mxu0 0
        %978 = vmatmul.mubr.bf16.gmra.mxu0 %v927
        %v979 = vpop.f32.mrf.mxu0
        %v980 = vadd.f32 0.0, %v979
        %v981 = vpop.f32.mrf.mxu0
        %v982 = vadd.f32 0.0, %v981
        %v983 = vpop.f32.mrf.mxu0
        %v984 = vadd.f32 0.0, %v983
        %v985 = vpop.f32.mrf.mxu0
        %v986 = vadd.f32 0.0, %v985
        %987 = vdwg.mxu0
        %v988 = vadd.f32 %v876, %v970
        %v989 = vadd.f32 %v877, %v972
        %v990 = vadd.f32 %v878, %v974
        %v991 = vadd.f32 %v879, %v976
        %v992 = vadd.f32 %v880, %v980
        %v993 = vadd.f32 %v881, %v982
        %v994 = vadd.f32 %v882, %v984
        %v995 = vadd.f32 %v883, %v986
        %s996 = scalar_lea.vmem %s525, 64
        %v997 = vld [vmem:[%s996] sm:$0xf]
        %v998 = vld [vmem:[%s996 + $0x4] sm:$0xf]
        %v999 = vld [vmem:[%s996 + $0x8] sm:$0xf]
        %v1000 = vld [vmem:[%s996 + $0xc] sm:$0xf]
        %v1001 = vpack.c.bf16 %v558, %v558
        %v1002 = vpack.c.bf16 %v560, %v560
        %v1007 = vunpack.c.l.b16 %v997
        %v1008 = vunpack.c.l.b16 %v998
        %v1009 = vunpack.c.l.b16 %v999
        %v1010 = vunpack.c.l.b16 %v1000
        %v1011 = vpack.c.b16 %v1008, %v1007
        %v1012 = vpack.c.b16 %v1010, %v1009
        %v1014 = vsel %vm630, %v1011, 0
        %v1017 = vsel %vm630, %v1012, 0
        %v1020 = vsel %vm637, %v1001, 0
        %v1023 = vsel %vm637, %v1002, 0
        %1025 = vmatprep.subr.bf16.mxu0 0
        %1026 = vmatpush1.bf16.msra.mxu0 0
        %1027 = vmatprep.subr.bf16.mxu0 0
        %1028 = vmatpush1.bf16.msra.mxu0 0
        %1029 = vmatprep.subr.bf16.mxu0 0
        %1030 = vmatpush1.bf16.msra.mxu0 0
        %1031 = vmatprep.subr.bf16.mxu0 0
        %1032 = vmatpush1.bf16.msra.mxu0 0
        %1033 = vmatprep.subr.bf16.mxu0 0
        %1034 = vmatpush1.bf16.msra.mxu0 0
        %1035 = vmatprep.subr.bf16.mxu0 0
        %1036 = vmatpush1.bf16.msra.mxu0 0
        %1037 = vmatprep.subr.bf16.mxu0 0
        %1038 = vmatpush1.bf16.msra.mxu0 0
        %1039 = vmatprep.subr.bf16.mxu0 %v1023
        %1040 = vmatpush1.bf16.msra.mxu0 %v1020
        %1041 = vmatprep.subr.bf16.mxu0 0
        %1042 = vmatpush2.bf16.msra.mxu0 0
        %1043 = vmatprep.subr.bf16.mxu0 0
        %1044 = vmatpush2.bf16.msra.mxu0 0
        %1045 = vmatprep.subr.bf16.mxu0 0
        %1046 = vmatpush2.bf16.msra.mxu0 0
        %1047 = vmatprep.subr.bf16.mxu0 0
        %1048 = vmatpush2.bf16.msra.mxu0 0
        %1049 = vmatprep.subr.bf16.mxu0 0
        %1050 = vmatpush2.bf16.msra.mxu0 0
        %1051 = vmatprep.subr.bf16.mxu0 0
        %1052 = vmatpush2.bf16.msra.mxu0 0
        %1053 = vmatprep.subr.bf16.mxu0 0
        %1054 = vmatpush2.bf16.msra.mxu0 0
        %1055 = vmatprep.subr.bf16.mxu0 0
        %1056 = vmatpush2.bf16.msra.mxu0 0
        %1057 = vmatprep.mubr.bf16.mxu0 0
        %1058 = vmatmul.mubr.bf16.gmra.mxu0 %v1014
        %v1059 = vpop.f32.mrf.mxu0
        %v1060 = vadd.f32 0.0, %v1059
        %v1061 = vpop.f32.mrf.mxu0
        %v1062 = vadd.f32 0.0, %v1061
        %v1063 = vpop.f32.mrf.mxu0
        %v1064 = vadd.f32 0.0, %v1063
        %v1065 = vpop.f32.mrf.mxu0
        %v1066 = vadd.f32 0.0, %v1065
        %1067 = vmatprep.mubr.bf16.mxu0 0
        %1068 = vmatmul.mubr.bf16.gmra.mxu0 %v1017
        %v1069 = vpop.f32.mrf.mxu0
        %v1070 = vadd.f32 0.0, %v1069
        %v1071 = vpop.f32.mrf.mxu0
        %v1072 = vadd.f32 0.0, %v1071
        %v1073 = vpop.f32.mrf.mxu0
        %v1074 = vadd.f32 0.0, %v1073
        %v1075 = vpop.f32.mrf.mxu0
        %v1076 = vadd.f32 0.0, %v1075
        %1077 = vdwg.mxu0
        %v1078 = vadd.f32 %v988, %v1060
        %v1079 = vadd.f32 %v989, %v1062
        %v1080 = vadd.f32 %v990, %v1064
        %v1081 = vadd.f32 %v991, %v1066
        %v1082 = vadd.f32 %v992, %v1070
        %v1083 = vadd.f32 %v993, %v1072
        %v1084 = vadd.f32 %v994, %v1074
        %v1085 = vadd.f32 %v995, %v1076
        %1086 = vrot.lane.b32.xlu0 %v558, 127
        %v1087 = vpop.permute.xlu0 %1086
        %1088 = vrot.lane.b32.xlu0 %v560, 127
        %v1089 = vpop.permute.xlu0 %1088
        %vm1090 = vcmp.lt.s32.totalorder %v567, 127
        %v1091 = vsel %vm1090, %v1087, %v1089
        %v1092 = vsel %vm1090, %v1089, %v1087
        %s1093 = scalar_lea.vmem %s3, 5
        %v1094 = vld [vmem:[%s1093] ss:$8 sm:$0x3]
        %v1096 = vlaneseq
        %v1097 = vshrl.u32 %v1096, 7
        %v1098 = vsub.s32 0, %v1097
        %v1099 = vrot.slane %v1094, %v1098
        %v1100 = vlaneseq
        %v1101 = vshrl.u32 %v1100, 7
        %v1102 = vsub.s32 1, %v1101
        %v1103 = vrot.slane %v1094, %v1102
        %v1106 = vmul.f32 %v1091, %v1099
        %v1107 = vmul.f32 %v1092, %v1103
        %s1108 = scalar_lea.vmem %s525, 80
        %v1109 = vld [vmem:[%s1108] sm:$0xf]
        %v1110 = vld [vmem:[%s1108 + $0x4] sm:$0xf]
        %v1111 = vld [vmem:[%s1108 + $0x8] sm:$0xf]
        %v1112 = vld [vmem:[%s1108 + $0xc] sm:$0xf]
        %v1113 = vpack.c.bf16 %v1106, %v1106
        %v1114 = vpack.c.bf16 %v1107, %v1107
        %v1119 = vunpack.c.l.b16 %v1109
        %v1120 = vunpack.c.l.b16 %v1110
        %v1121 = vunpack.c.l.b16 %v1111
        %v1122 = vunpack.c.l.b16 %v1112
        %v1123 = vpack.c.b16 %v1120, %v1119
        %v1124 = vpack.c.b16 %v1122, %v1121
        %v1126 = vsel %vm630, %v1123, 0
        %v1129 = vsel %vm630, %v1124, 0
        %v1132 = vsel %vm637, %v1113, 0
        %v1135 = vsel %vm637, %v1114, 0
        %1137 = vmatprep.subr.bf16.mxu0 0
        %1138 = vmatpush1.bf16.msra.mxu0 0
        %1139 = vmatprep.subr.bf16.mxu0 0
        %1140 = vmatpush1.bf16.msra.mxu0 0
        %1141 = vmatprep.subr.bf16.mxu0 0
        %1142 = vmatpush1.bf16.msra.mxu0 0
        %1143 = vmatprep.subr.bf16.mxu0 0
        %1144 = vmatpush1.bf16.msra.mxu0 0
        %1145 = vmatprep.subr.bf16.mxu0 0
        %1146 = vmatpush1.bf16.msra.mxu0 0
        %1147 = vmatprep.subr.bf16.mxu0 0
        %1148 = vmatpush1.bf16.msra.mxu0 0
        %1149 = vmatprep.subr.bf16.mxu0 0
        %1150 = vmatpush1.bf16.msra.mxu0 0
        %1151 = vmatprep.subr.bf16.mxu0 %v1135
        %1152 = vmatpush1.bf16.msra.mxu0 %v1132
        %1153 = vmatprep.subr.bf16.mxu0 0
        %1154 = vmatpush2.bf16.msra.mxu0 0
        %1155 = vmatprep.subr.bf16.mxu0 0
        %1156 = vmatpush2.bf16.msra.mxu0 0
        %1157 = vmatprep.subr.bf16.mxu0 0
        %1158 = vmatpush2.bf16.msra.mxu0 0
        %1159 = vmatprep.subr.bf16.mxu0 0
        %1160 = vmatpush2.bf16.msra.mxu0 0
        %1161 = vmatprep.subr.bf16.mxu0 0
        %1162 = vmatpush2.bf16.msra.mxu0 0
        %1163 = vmatprep.subr.bf16.mxu0 0
        %1164 = vmatpush2.bf16.msra.mxu0 0
        %1165 = vmatprep.subr.bf16.mxu0 0
        %1166 = vmatpush2.bf16.msra.mxu0 0
        %1167 = vmatprep.subr.bf16.mxu0 0
        %1168 = vmatpush2.bf16.msra.mxu0 0
        %1169 = vmatprep.mubr.bf16.mxu0 0
        %1170 = vmatmul.mubr.bf16.gmra.mxu0 %v1126
        %v1171 = vpop.f32.mrf.mxu0
        %v1172 = vadd.f32 0.0, %v1171
        %v1173 = vpop.f32.mrf.mxu0
        %v1174 = vadd.f32 0.0, %v1173
        %v1175 = vpop.f32.mrf.mxu0
        %v1176 = vadd.f32 0.0, %v1175
        %v1177 = vpop.f32.mrf.mxu0
        %v1178 = vadd.f32 0.0, %v1177
        %1179 = vmatprep.mubr.bf16.mxu0 0
        %1180 = vmatmul.mubr.bf16.gmra.mxu0 %v1129
        %v1181 = vpop.f32.mrf.mxu0
        %v1182 = vadd.f32 0.0, %v1181
        %v1183 = vpop.f32.mrf.mxu0
        %v1184 = vadd.f32 0.0, %v1183
        %v1185 = vpop.f32.mrf.mxu0
        %v1186 = vadd.f32 0.0, %v1185
        %v1187 = vpop.f32.mrf.mxu0
        %v1188 = vadd.f32 0.0, %v1187
        %1189 = vdwg.mxu0
        %v1190 = vadd.f32 %v1078, %v1172
        %v1191 = vadd.f32 %v1079, %v1174
        %v1192 = vadd.f32 %v1080, %v1176
        %v1193 = vadd.f32 %v1081, %v1178
        %v1194 = vadd.f32 %v1082, %v1182
        %v1195 = vadd.f32 %v1083, %v1184
        %v1196 = vadd.f32 %v1084, %v1186
        %v1197 = vadd.f32 %v1085, %v1188
        %1198 = vrot.lane.b32.xlu0 %v558, 113
        %v1199 = vpop.permute.xlu0 %1198
        %1200 = vrot.lane.b32.xlu0 %v560, 113
        %v1201 = vpop.permute.xlu0 %1200
        %vm1202 = vcmp.lt.s32.totalorder %v567, 113
        %v1203 = vsel %vm1202, %v1199, %v1201
        %v1204 = vsel %vm1202, %v1201, %v1199
        %s1205 = scalar_lea.vmem %s3, 6
        %v1206 = vld [vmem:[%s1205] ss:$8 sm:$0x3]
        %v1208 = vlaneseq
        %v1209 = vshrl.u32 %v1208, 7
        %v1210 = vsub.s32 0, %v1209
        %v1211 = vrot.slane %v1206, %v1210
        %v1212 = vlaneseq
        %v1213 = vshrl.u32 %v1212, 7
        %v1214 = vsub.s32 1, %v1213
        %v1215 = vrot.slane %v1206, %v1214
        %v1218 = vmul.f32 %v1203, %v1211
        %v1219 = vmul.f32 %v1204, %v1215
        %s1220 = scalar_lea.vmem %s525, 96
        %v1221 = vld [vmem:[%s1220] sm:$0xf]
        %v1222 = vld [vmem:[%s1220 + $0x4] sm:$0xf]
        %v1223 = vld [vmem:[%s1220 + $0x8] sm:$0xf]
        %v1224 = vld [vmem:[%s1220 + $0xc] sm:$0xf]
        %v1225 = vpack.c.bf16 %v1218, %v1218
        %v1226 = vpack.c.bf16 %v1219, %v1219
        %v1231 = vunpack.c.l.b16 %v1221
        %v1232 = vunpack.c.l.b16 %v1222
        %v1233 = vunpack.c.l.b16 %v1223
        %v1234 = vunpack.c.l.b16 %v1224
        %v1235 = vpack.c.b16 %v1232, %v1231
        %v1236 = vpack.c.b16 %v1234, %v1233
        %v1238 = vsel %vm630, %v1235, 0
        %v1241 = vsel %vm630, %v1236, 0
        %v1244 = vsel %vm637, %v1225, 0
        %v1247 = vsel %vm637, %v1226, 0
        %1249 = vmatprep.subr.bf16.mxu0 0
        %1250 = vmatpush1.bf16.msra.mxu0 0
        %1251 = vmatprep.subr.bf16.mxu0 0
        %1252 = vmatpush1.bf16.msra.mxu0 0
        %1253 = vmatprep.subr.bf16.mxu0 0
        %1254 = vmatpush1.bf16.msra.mxu0 0
        %1255 = vmatprep.subr.bf16.mxu0 0
        %1256 = vmatpush1.bf16.msra.mxu0 0
        %1257 = vmatprep.subr.bf16.mxu0 0
        %1258 = vmatpush1.bf16.msra.mxu0 0
        %1259 = vmatprep.subr.bf16.mxu0 0
        %1260 = vmatpush1.bf16.msra.mxu0 0
        %1261 = vmatprep.subr.bf16.mxu0 0
        %1262 = vmatpush1.bf16.msra.mxu0 0
        %1263 = vmatprep.subr.bf16.mxu0 %v1247
        %1264 = vmatpush1.bf16.msra.mxu0 %v1244
        %1265 = vmatprep.subr.bf16.mxu0 0
        %1266 = vmatpush2.bf16.msra.mxu0 0
        %1267 = vmatprep.subr.bf16.mxu0 0
        %1268 = vmatpush2.bf16.msra.mxu0 0
        %1269 = vmatprep.subr.bf16.mxu0 0
        %1270 = vmatpush2.bf16.msra.mxu0 0
        %1271 = vmatprep.subr.bf16.mxu0 0
        %1272 = vmatpush2.bf16.msra.mxu0 0
        %1273 = vmatprep.subr.bf16.mxu0 0
        %1274 = vmatpush2.bf16.msra.mxu0 0
        %1275 = vmatprep.subr.bf16.mxu0 0
        %1276 = vmatpush2.bf16.msra.mxu0 0
        %1277 = vmatprep.subr.bf16.mxu0 0
        %1278 = vmatpush2.bf16.msra.mxu0 0
        %1279 = vmatprep.subr.bf16.mxu0 0
        %1280 = vmatpush2.bf16.msra.mxu0 0
        %1281 = vmatprep.mubr.bf16.mxu0 0
        %1282 = vmatmul.mubr.bf16.gmra.mxu0 %v1238
        %v1283 = vpop.f32.mrf.mxu0
        %v1284 = vadd.f32 0.0, %v1283
        %v1285 = vpop.f32.mrf.mxu0
        %v1286 = vadd.f32 0.0, %v1285
        %v1287 = vpop.f32.mrf.mxu0
        %v1288 = vadd.f32 0.0, %v1287
        %v1289 = vpop.f32.mrf.mxu0
        %v1290 = vadd.f32 0.0, %v1289
        %1291 = vmatprep.mubr.bf16.mxu0 0
        %1292 = vmatmul.mubr.bf16.gmra.mxu0 %v1241
        %v1293 = vpop.f32.mrf.mxu0
        %v1294 = vadd.f32 0.0, %v1293
        %v1295 = vpop.f32.mrf.mxu0
        %v1296 = vadd.f32 0.0, %v1295
        %v1297 = vpop.f32.mrf.mxu0
        %v1298 = vadd.f32 0.0, %v1297
        %v1299 = vpop.f32.mrf.mxu0
        %v1300 = vadd.f32 0.0, %v1299
        %1301 = vdwg.mxu0
        %v1302 = vadd.f32 %v1190, %v1284
        %v1303 = vadd.f32 %v1191, %v1286
        %v1304 = vadd.f32 %v1192, %v1288
        %v1305 = vadd.f32 %v1193, %v1290
        %v1306 = vadd.f32 %v1194, %v1294
        %v1307 = vadd.f32 %v1195, %v1296
        %v1308 = vadd.f32 %v1196, %v1298
        %v1309 = vadd.f32 %v1197, %v1300
        %1310 = vrot.lane.b32.xlu0 %v558, 112
        %v1311 = vpop.permute.xlu0 %1310
        %1312 = vrot.lane.b32.xlu0 %v560, 112
        %v1313 = vpop.permute.xlu0 %1312
        %vm1314 = vcmp.lt.s32.totalorder %v567, 112
        %v1315 = vsel %vm1314, %v1311, %v1313
        %v1316 = vsel %vm1314, %v1313, %v1311
        %s1317 = scalar_lea.vmem %s3, 7
        %v1318 = vld [vmem:[%s1317] ss:$8 sm:$0x3]
        %v1320 = vlaneseq
        %v1321 = vshrl.u32 %v1320, 7
        %v1322 = vsub.s32 0, %v1321
        %v1323 = vrot.slane %v1318, %v1322
        %v1324 = vlaneseq
        %v1325 = vshrl.u32 %v1324, 7
        %v1326 = vsub.s32 1, %v1325
        %v1327 = vrot.slane %v1318, %v1326
        %v1330 = vmul.f32 %v1315, %v1323
        %v1331 = vmul.f32 %v1316, %v1327
        %s1332 = scalar_lea.vmem %s525, 112
        %v1333 = vld [vmem:[%s1332] sm:$0xf]
        %v1334 = vld [vmem:[%s1332 + $0x4] sm:$0xf]
        %v1335 = vld [vmem:[%s1332 + $0x8] sm:$0xf]
        %v1336 = vld [vmem:[%s1332 + $0xc] sm:$0xf]
        %v1337 = vpack.c.bf16 %v1330, %v1330
        %v1338 = vpack.c.bf16 %v1331, %v1331
        %v1343 = vunpack.c.l.b16 %v1333
        %v1344 = vunpack.c.l.b16 %v1334
        %v1345 = vunpack.c.l.b16 %v1335
        %v1346 = vunpack.c.l.b16 %v1336
        %v1347 = vpack.c.b16 %v1344, %v1343
        %v1348 = vpack.c.b16 %v1346, %v1345
        %v1350 = vsel %vm630, %v1347, 0
        %v1353 = vsel %vm630, %v1348, 0
        %v1356 = vsel %vm637, %v1337, 0
        %v1359 = vsel %vm637, %v1338, 0
        %1361 = vmatprep.subr.bf16.mxu0 0
        %1362 = vmatpush1.bf16.msra.mxu0 0
        %1363 = vmatprep.subr.bf16.mxu0 0
        %1364 = vmatpush1.bf16.msra.mxu0 0
        %1365 = vmatprep.subr.bf16.mxu0 0
        %1366 = vmatpush1.bf16.msra.mxu0 0
        %1367 = vmatprep.subr.bf16.mxu0 0
        %1368 = vmatpush1.bf16.msra.mxu0 0
        %1369 = vmatprep.subr.bf16.mxu0 0
        %1370 = vmatpush1.bf16.msra.mxu0 0
        %1371 = vmatprep.subr.bf16.mxu0 0
        %1372 = vmatpush1.bf16.msra.mxu0 0
        %1373 = vmatprep.subr.bf16.mxu0 0
        %1374 = vmatpush1.bf16.msra.mxu0 0
        %1375 = vmatprep.subr.bf16.mxu0 %v1359
        %1376 = vmatpush1.bf16.msra.mxu0 %v1356
        %1377 = vmatprep.subr.bf16.mxu0 0
        %1378 = vmatpush2.bf16.msra.mxu0 0
        %1379 = vmatprep.subr.bf16.mxu0 0
        %1380 = vmatpush2.bf16.msra.mxu0 0
        %1381 = vmatprep.subr.bf16.mxu0 0
        %1382 = vmatpush2.bf16.msra.mxu0 0
        %1383 = vmatprep.subr.bf16.mxu0 0
        %1384 = vmatpush2.bf16.msra.mxu0 0
        %1385 = vmatprep.subr.bf16.mxu0 0
        %1386 = vmatpush2.bf16.msra.mxu0 0
        %1387 = vmatprep.subr.bf16.mxu0 0
        %1388 = vmatpush2.bf16.msra.mxu0 0
        %1389 = vmatprep.subr.bf16.mxu0 0
        %1390 = vmatpush2.bf16.msra.mxu0 0
        %1391 = vmatprep.subr.bf16.mxu0 0
        %1392 = vmatpush2.bf16.msra.mxu0 0
        %1393 = vmatprep.mubr.bf16.mxu0 0
        %1394 = vmatmul.mubr.bf16.gmra.mxu0 %v1350
        %v1395 = vpop.f32.mrf.mxu0
        %v1396 = vadd.f32 0.0, %v1395
        %v1397 = vpop.f32.mrf.mxu0
        %v1398 = vadd.f32 0.0, %v1397
        %v1399 = vpop.f32.mrf.mxu0
        %v1400 = vadd.f32 0.0, %v1399
        %v1401 = vpop.f32.mrf.mxu0
        %v1402 = vadd.f32 0.0, %v1401
        %1403 = vmatprep.mubr.bf16.mxu0 0
        %1404 = vmatmul.mubr.bf16.gmra.mxu0 %v1353
        %v1405 = vpop.f32.mrf.mxu0
        %v1406 = vadd.f32 0.0, %v1405
        %v1407 = vpop.f32.mrf.mxu0
        %v1408 = vadd.f32 0.0, %v1407
        %v1409 = vpop.f32.mrf.mxu0
        %v1410 = vadd.f32 0.0, %v1409
        %v1411 = vpop.f32.mrf.mxu0
        %v1412 = vadd.f32 0.0, %v1411
        %1413 = vdwg.mxu0
        %v1414 = vadd.f32 %v1302, %v1396
        %v1415 = vadd.f32 %v1303, %v1398
        %v1416 = vadd.f32 %v1304, %v1400
        %v1417 = vadd.f32 %v1305, %v1402
        %v1418 = vadd.f32 %v1306, %v1406
        %v1419 = vadd.f32 %v1307, %v1408
        %v1420 = vadd.f32 %v1308, %v1410
        %v1421 = vadd.f32 %v1309, %v1412
        %1422 = vrot.lane.b32.xlu0 %v558, 111
        %v1423 = vpop.permute.xlu0 %1422
        %1424 = vrot.lane.b32.xlu0 %v560, 111
        %v1425 = vpop.permute.xlu0 %1424
        %vm1426 = vcmp.lt.s32.totalorder %v567, 111
        %v1427 = vsel %vm1426, %v1423, %v1425
        %v1428 = vsel %vm1426, %v1425, %v1423
        %s1429 = scalar_lea.vmem %s3, 16
        %v1430 = vld [vmem:[%s1429] ss:$8 sm:$0x3]
        %v1432 = vlaneseq
        %v1433 = vshrl.u32 %v1432, 7
        %v1434 = vsub.s32 0, %v1433
        %v1435 = vrot.slane %v1430, %v1434
        %v1436 = vlaneseq
        %v1437 = vshrl.u32 %v1436, 7
        %v1438 = vsub.s32 1, %v1437
        %v1439 = vrot.slane %v1430, %v1438
        %v1442 = vmul.f32 %v1427, %v1435
        %v1443 = vmul.f32 %v1428, %v1439
        %s1444 = scalar_lea.vmem %s525, 128
        %v1445 = vld [vmem:[%s1444] sm:$0xf]
        %v1446 = vld [vmem:[%s1444 + $0x4] sm:$0xf]
        %v1447 = vld [vmem:[%s1444 + $0x8] sm:$0xf]
        %v1448 = vld [vmem:[%s1444 + $0xc] sm:$0xf]
        %v1449 = vpack.c.bf16 %v1442, %v1442
        %v1450 = vpack.c.bf16 %v1443, %v1443
        %v1455 = vunpack.c.l.b16 %v1445
        %v1456 = vunpack.c.l.b16 %v1446
        %v1457 = vunpack.c.l.b16 %v1447
        %v1458 = vunpack.c.l.b16 %v1448
        %v1459 = vpack.c.b16 %v1456, %v1455
        %v1460 = vpack.c.b16 %v1458, %v1457
        %v1462 = vsel %vm630, %v1459, 0
        %v1465 = vsel %vm630, %v1460, 0
        %v1468 = vsel %vm637, %v1449, 0
        %v1471 = vsel %vm637, %v1450, 0
        %1473 = vmatprep.subr.bf16.mxu0 0
        %1474 = vmatpush1.bf16.msra.mxu0 0
        %1475 = vmatprep.subr.bf16.mxu0 0
        %1476 = vmatpush1.bf16.msra.mxu0 0
        %1477 = vmatprep.subr.bf16.mxu0 0
        %1478 = vmatpush1.bf16.msra.mxu0 0
        %1479 = vmatprep.subr.bf16.mxu0 0
        %1480 = vmatpush1.bf16.msra.mxu0 0
        %1481 = vmatprep.subr.bf16.mxu0 0
        %1482 = vmatpush1.bf16.msra.mxu0 0
        %1483 = vmatprep.subr.bf16.mxu0 0
        %1484 = vmatpush1.bf16.msra.mxu0 0
        %1485 = vmatprep.subr.bf16.mxu0 0
        %1486 = vmatpush1.bf16.msra.mxu0 0
        %1487 = vmatprep.subr.bf16.mxu0 %v1471
        %1488 = vmatpush1.bf16.msra.mxu0 %v1468
        %1489 = vmatprep.subr.bf16.mxu0 0
        %1490 = vmatpush2.bf16.msra.mxu0 0
        %1491 = vmatprep.subr.bf16.mxu0 0
        %1492 = vmatpush2.bf16.msra.mxu0 0
        %1493 = vmatprep.subr.bf16.mxu0 0
        %1494 = vmatpush2.bf16.msra.mxu0 0
        %1495 = vmatprep.subr.bf16.mxu0 0
        %1496 = vmatpush2.bf16.msra.mxu0 0
        %1497 = vmatprep.subr.bf16.mxu0 0
        %1498 = vmatpush2.bf16.msra.mxu0 0
        %1499 = vmatprep.subr.bf16.mxu0 0
        %1500 = vmatpush2.bf16.msra.mxu0 0
        %1501 = vmatprep.subr.bf16.mxu0 0
        %1502 = vmatpush2.bf16.msra.mxu0 0
        %1503 = vmatprep.subr.bf16.mxu0 0
        %1504 = vmatpush2.bf16.msra.mxu0 0
        %1505 = vmatprep.mubr.bf16.mxu0 0
        %1506 = vmatmul.mubr.bf16.gmra.mxu0 %v1462
        %v1507 = vpop.f32.mrf.mxu0
        %v1508 = vadd.f32 0.0, %v1507
        %v1509 = vpop.f32.mrf.mxu0
        %v1510 = vadd.f32 0.0, %v1509
        %v1511 = vpop.f32.mrf.mxu0
        %v1512 = vadd.f32 0.0, %v1511
        %v1513 = vpop.f32.mrf.mxu0
        %v1514 = vadd.f32 0.0, %v1513
        %1515 = vmatprep.mubr.bf16.mxu0 0
        %1516 = vmatmul.mubr.bf16.gmra.mxu0 %v1465
        %v1517 = vpop.f32.mrf.mxu0
        %v1518 = vadd.f32 0.0, %v1517
        %v1519 = vpop.f32.mrf.mxu0
        %v1520 = vadd.f32 0.0, %v1519
        %v1521 = vpop.f32.mrf.mxu0
        %v1522 = vadd.f32 0.0, %v1521
        %v1523 = vpop.f32.mrf.mxu0
        %v1524 = vadd.f32 0.0, %v1523
        %1525 = vdwg.mxu0
        %v1526 = vadd.f32 %v1414, %v1508
        %v1527 = vadd.f32 %v1415, %v1510
        %v1528 = vadd.f32 %v1416, %v1512
        %v1529 = vadd.f32 %v1417, %v1514
        %v1530 = vadd.f32 %v1418, %v1518
        %v1531 = vadd.f32 %v1419, %v1520
        %v1532 = vadd.f32 %v1420, %v1522
        %v1533 = vadd.f32 %v1421, %v1524
        %v1534 = vld [vmem:[%s530] sm:$0xff]
        %v1535 = vld [vmem:[%s530 + $0x8] sm:$0xff]
        %v1536 = vld [vmem:[%s530 + $0x10] sm:$0xff]
        %v1537 = vld [vmem:[%s530 + $0x18] sm:$0xff]
        %1539 = vset.pattern.permute.xlu0 0
        %1540 = vperm.xlu0 %1539, %v1534
        %v1541 = vpop.permute.xlu0 %1540
        %1544 = vset.pattern.permute.xlu0 0
        %1545 = vperm.xlu0 %1544, %v1535
        %v1546 = vpop.permute.xlu0 %1545
        %1549 = vset.pattern.permute.xlu0 0
        %1550 = vperm.xlu0 %1549, %v1536
        %v1551 = vpop.permute.xlu0 %1550
        %1554 = vset.pattern.permute.xlu0 0
        %1555 = vperm.xlu0 %1554, %v1537
        %v1556 = vpop.permute.xlu0 %1555
        %v1558 = vadd.f32 %v1526, %v1541
        %v1559 = vadd.f32 %v1527, %v1541
        %v1560 = vadd.f32 %v1528, %v1546
        %v1561 = vadd.f32 %v1529, %v1546
        %v1562 = vadd.f32 %v1530, %v1551
        %v1563 = vadd.f32 %v1531, %v1551
        %v1564 = vadd.f32 %v1532, %v1556
        %v1565 = vadd.f32 %v1533, %v1556
        %v1566 = vmax.f32 %v1558, 0.0
        %v1567 = vmax.f32 %v1559, 0.0
        %v1568 = vmax.f32 %v1560, 0.0
        %v1569 = vmax.f32 %v1561, 0.0
        %v1570 = vmax.f32 %v1562, 0.0
        %v1571 = vmax.f32 %v1563, 0.0
        %v1572 = vmax.f32 %v1564, 0.0
        %v1573 = vmax.f32 %v1565, 0.0
        %1574 = vrot.lane.b32.xlu0 %v1566, 17
        %v1575 = vpop.permute.xlu0 %1574
        %1576 = vrot.lane.b32.xlu0 %v1568, 17
        %v1577 = vpop.permute.xlu0 %1576
        %1578 = vrot.lane.b32.xlu0 %v1570, 17
        %v1579 = vpop.permute.xlu0 %1578
        %1580 = vrot.lane.b32.xlu0 %v1572, 17
        %v1581 = vpop.permute.xlu0 %1580
        %1582 = vrot.lane.b32.xlu0 %v1567, 17
        %v1583 = vpop.permute.xlu0 %1582
        %1584 = vrot.lane.b32.xlu0 %v1569, 17
        %v1585 = vpop.permute.xlu0 %1584
        %1586 = vrot.lane.b32.xlu0 %v1571, 17
        %v1587 = vpop.permute.xlu0 %1586
        %1588 = vrot.lane.b32.xlu0 %v1573, 17
        %v1589 = vpop.permute.xlu0 %1588
        %v1590 = vsel %vm568, %v1575, %v1583
        %v1591 = vsel %vm568, %v1577, %v1585
        %v1592 = vsel %vm568, %v1579, %v1587
        %v1593 = vsel %vm568, %v1581, %v1589
        %v1594 = vsel %vm568, %v1583, %v1575
        %v1595 = vsel %vm568, %v1585, %v1577
        %v1596 = vsel %vm568, %v1587, %v1579
        %v1597 = vsel %vm568, %v1589, %v1581
        %v1598 = vmul.f32 %v1594, %v576
        %v1599 = vmul.f32 %v1590, %v580
        %v1600 = vmul.f32 %v1595, %v576
        %v1601 = vmul.f32 %v1591, %v580
        %v1602 = vmul.f32 %v1596, %v576
        %v1603 = vmul.f32 %v1592, %v580
        %v1604 = vmul.f32 %v1597, %v576
        %v1605 = vmul.f32 %v1593, %v580
        %v1606 = vld [vmem:[%s535] sm:$0xf]
        %v1607 = vld [vmem:[%s535 + $0x4] sm:$0xf]
        %v1608 = vld [vmem:[%s535 + $0x8] sm:$0xf]
        %v1609 = vld [vmem:[%s535 + $0xc] sm:$0xf]
        %v1610 = vpack.c.bf16 %v1600, %v1598
        %v1611 = vpack.c.bf16 %v1601, %v1599
        %v1612 = vpack.c.bf16 %v1604, %v1602
        %v1613 = vpack.c.bf16 %v1605, %v1603
        %1614 = vrot.lane.b32.xlu0 %v1566, 16
        %v1615 = vpop.permute.xlu0 %1614
        %1616 = vrot.lane.b32.xlu0 %v1568, 16
        %v1617 = vpop.permute.xlu0 %1616
        %1618 = vrot.lane.b32.xlu0 %v1570, 16
        %v1619 = vpop.permute.xlu0 %1618
        %1620 = vrot.lane.b32.xlu0 %v1572, 16
        %v1621 = vpop.permute.xlu0 %1620
        %1622 = vrot.lane.b32.xlu0 %v1567, 16
        %v1623 = vpop.permute.xlu0 %1622
        %1624 = vrot.lane.b32.xlu0 %v1569, 16
        %v1625 = vpop.permute.xlu0 %1624
        %1626 = vrot.lane.b32.xlu0 %v1571, 16
        %v1627 = vpop.permute.xlu0 %1626
        %1628 = vrot.lane.b32.xlu0 %v1573, 16
        %v1629 = vpop.permute.xlu0 %1628
        %v1630 = vsel %vm595, %v1615, %v1623
        %v1631 = vsel %vm595, %v1617, %v1625
        %v1632 = vsel %vm595, %v1619, %v1627
        %v1633 = vsel %vm595, %v1621, %v1629
        %v1634 = vsel %vm595, %v1623, %v1615
        %v1635 = vsel %vm595, %v1625, %v1617
        %v1636 = vsel %vm595, %v1627, %v1619
        %v1637 = vsel %vm595, %v1629, %v1621
        %v1638 = vmul.f32 %v1634, %v604
        %v1639 = vmul.f32 %v1630, %v608
        %v1640 = vmul.f32 %v1635, %v604
        %v1641 = vmul.f32 %v1631, %v608
        %v1642 = vmul.f32 %v1636, %v604
        %v1643 = vmul.f32 %v1632, %v608
        %v1644 = vmul.f32 %v1637, %v604
        %v1645 = vmul.f32 %v1633, %v608
        %s1646 = scalar_lea.vmem %s535, 16
        %v1647 = vld [vmem:[%s1646] sm:$0xf]
        %v1648 = vld [vmem:[%s1646 + $0x4] sm:$0xf]
        %v1649 = vld [vmem:[%s1646 + $0x8] sm:$0xf]
        %v1650 = vld [vmem:[%s1646 + $0xc] sm:$0xf]
        %v1651 = vpack.c.bf16 %v1640, %v1638
        %v1652 = vpack.c.bf16 %v1641, %v1639
        %v1653 = vpack.c.bf16 %v1644, %v1642
        %v1654 = vpack.c.bf16 %v1645, %v1643
        %v1659 = vunpack.c.l.b16 %v1647
        %v1660 = vunpack.c.l.b16 %v1648
        %v1661 = vunpack.c.l.b16 %v1649
        %v1662 = vunpack.c.l.b16 %v1650
        %v1663 = vpack.c.b16 %v1660, %v1659
        %v1664 = vpack.c.b16 %v1662, %v1661
        %vm1665 = vcmask 261120
        %v1667 = vsel %vm1665, %v1663, 0
        %v1670 = vsel %vm1665, %v1664, 0
        %1672 = vmatprep.subr.bf16.mxu0 0
        %1673 = vmatpush1.bf16.msra.mxu0 0
        %1674 = vmatprep.subr.bf16.mxu0 0
        %1675 = vmatpush1.bf16.msra.mxu0 0
        %1676 = vmatprep.subr.bf16.mxu0 0
        %1677 = vmatpush1.bf16.msra.mxu0 0
        %1678 = vmatprep.subr.bf16.mxu0 0
        %1679 = vmatpush1.bf16.msra.mxu0 0
        %1680 = vmatprep.subr.bf16.mxu0 0
        %1681 = vmatpush1.bf16.msra.mxu0 0
        %1682 = vmatprep.subr.bf16.mxu0 0
        %1683 = vmatpush1.bf16.msra.mxu0 0
        %1684 = vmatprep.subr.bf16.mxu0 %v1654
        %1685 = vmatpush1.bf16.msra.mxu0 %v1653
        %1686 = vmatprep.subr.bf16.mxu0 %v1652
        %1687 = vmatpush1.bf16.msra.mxu0 %v1651
        %1688 = vmatprep.subr.bf16.mxu0 0
        %1689 = vmatpush2.bf16.msra.mxu0 0
        %1690 = vmatprep.subr.bf16.mxu0 0
        %1691 = vmatpush2.bf16.msra.mxu0 0
        %1692 = vmatprep.subr.bf16.mxu0 0
        %1693 = vmatpush2.bf16.msra.mxu0 0
        %1694 = vmatprep.subr.bf16.mxu0 0
        %1695 = vmatpush2.bf16.msra.mxu0 0
        %1696 = vmatprep.subr.bf16.mxu0 0
        %1697 = vmatpush2.bf16.msra.mxu0 0
        %1698 = vmatprep.subr.bf16.mxu0 0
        %1699 = vmatpush2.bf16.msra.mxu0 0
        %1700 = vmatprep.subr.bf16.mxu0 0
        %1701 = vmatpush2.bf16.msra.mxu0 0
        %1702 = vmatprep.subr.bf16.mxu0 0
        %1703 = vmatpush2.bf16.msra.mxu0 0
        %1704 = vmatprep.mubr.bf16.mxu0 0
        %1705 = vmatmul.mubr.bf16.gmra.mxu0 %v1667
        %v1706 = vpop.f32.mrf.mxu0
        %v1707 = vadd.f32 0.0, %v1706
        %v1708 = vpop.f32.mrf.mxu0
        %v1709 = vadd.f32 0.0, %v1708
        %v1710 = vpop.f32.mrf.mxu0
        %v1711 = vadd.f32 0.0, %v1710
        %v1712 = vpop.f32.mrf.mxu0
        %v1713 = vadd.f32 0.0, %v1712
        %1714 = vmatprep.mubr.bf16.mxu0 0
        %1715 = vmatmul.mubr.bf16.gmra.mxu0 %v1670
        %v1716 = vpop.f32.mrf.mxu0
        %v1717 = vadd.f32 0.0, %v1716
        %v1718 = vpop.f32.mrf.mxu0
        %v1719 = vadd.f32 0.0, %v1718
        %v1720 = vpop.f32.mrf.mxu0
        %v1721 = vadd.f32 0.0, %v1720
        %v1722 = vpop.f32.mrf.mxu0
        %v1723 = vadd.f32 0.0, %v1722
        %1724 = vdwg.mxu0
        %v1729 = vunpack.c.l.b16 %v1606
        %v1730 = vunpack.c.l.b16 %v1607
        %v1731 = vunpack.c.l.b16 %v1608
        %v1732 = vunpack.c.l.b16 %v1609
        %v1733 = vpack.c.b16 %v1730, %v1729
        %v1734 = vpack.c.b16 %v1732, %v1731
        %v1736 = vsel %vm1665, %v1733, 0
        %v1739 = vsel %vm1665, %v1734, 0
        %1741 = vmatprep.subr.bf16.mxu0 0
        %1742 = vmatpush1.bf16.msra.mxu0 0
        %1743 = vmatprep.subr.bf16.mxu0 0
        %1744 = vmatpush1.bf16.msra.mxu0 0
        %1745 = vmatprep.subr.bf16.mxu0 0
        %1746 = vmatpush1.bf16.msra.mxu0 0
        %1747 = vmatprep.subr.bf16.mxu0 0
        %1748 = vmatpush1.bf16.msra.mxu0 0
        %1749 = vmatprep.subr.bf16.mxu0 0
        %1750 = vmatpush1.bf16.msra.mxu0 0
        %1751 = vmatprep.subr.bf16.mxu0 0
        %1752 = vmatpush1.bf16.msra.mxu0 0
        %1753 = vmatprep.subr.bf16.mxu0 %v1613
        %1754 = vmatpush1.bf16.msra.mxu0 %v1612
        %1755 = vmatprep.subr.bf16.mxu0 %v1611
        %1756 = vmatpush1.bf16.msra.mxu0 %v1610
        %1757 = vmatprep.subr.bf16.mxu0 0
        %1758 = vmatpush2.bf16.msra.mxu0 0
        %1759 = vmatprep.subr.bf16.mxu0 0
        %1760 = vmatpush2.bf16.msra.mxu0 0
        %1761 = vmatprep.subr.bf16.mxu0 0
        %1762 = vmatpush2.bf16.msra.mxu0 0
        %1763 = vmatprep.subr.bf16.mxu0 0
        %1764 = vmatpush2.bf16.msra.mxu0 0
        %1765 = vmatprep.subr.bf16.mxu0 0
        %1766 = vmatpush2.bf16.msra.mxu0 0
        %1767 = vmatprep.subr.bf16.mxu0 0
        %1768 = vmatpush2.bf16.msra.mxu0 0
        %1769 = vmatprep.subr.bf16.mxu0 0
        %1770 = vmatpush2.bf16.msra.mxu0 0
        %1771 = vmatprep.subr.bf16.mxu0 0
        %1772 = vmatpush2.bf16.msra.mxu0 0
        %1773 = vmatprep.mubr.bf16.mxu0 0
        %1774 = vmatmul.mubr.bf16.gmra.mxu0 %v1736
        %v1775 = vpop.f32.mrf.mxu0
        %v1776 = vadd.f32 %v1707, %v1775
        %v1777 = vpop.f32.mrf.mxu0
        %v1778 = vadd.f32 %v1709, %v1777
        %v1779 = vpop.f32.mrf.mxu0
        %v1780 = vadd.f32 %v1711, %v1779
        %v1781 = vpop.f32.mrf.mxu0
        %v1782 = vadd.f32 %v1713, %v1781
        %1783 = vmatprep.mubr.bf16.mxu0 0
        %1784 = vmatmul.mubr.bf16.gmra.mxu0 %v1739
        %v1785 = vpop.f32.mrf.mxu0
        %v1786 = vadd.f32 %v1717, %v1785
        %v1787 = vpop.f32.mrf.mxu0
        %v1788 = vadd.f32 %v1719, %v1787
        %v1789 = vpop.f32.mrf.mxu0
        %v1790 = vadd.f32 %v1721, %v1789
        %v1791 = vpop.f32.mrf.mxu0
        %v1792 = vadd.f32 %v1723, %v1791
        %1793 = vdwg.mxu0
        %1794 = vrot.lane.b32.xlu0 %v1566, 15
        %v1795 = vpop.permute.xlu0 %1794
        %1796 = vrot.lane.b32.xlu0 %v1568, 15
        %v1797 = vpop.permute.xlu0 %1796
        %1798 = vrot.lane.b32.xlu0 %v1570, 15
        %v1799 = vpop.permute.xlu0 %1798
        %1800 = vrot.lane.b32.xlu0 %v1572, 15
        %v1801 = vpop.permute.xlu0 %1800
        %1802 = vrot.lane.b32.xlu0 %v1567, 15
        %v1803 = vpop.permute.xlu0 %1802
        %1804 = vrot.lane.b32.xlu0 %v1569, 15
        %v1805 = vpop.permute.xlu0 %1804
        %1806 = vrot.lane.b32.xlu0 %v1571, 15
        %v1807 = vpop.permute.xlu0 %1806
        %1808 = vrot.lane.b32.xlu0 %v1573, 15
        %v1809 = vpop.permute.xlu0 %1808
        %v1810 = vsel %vm776, %v1795, %v1803
        %v1811 = vsel %vm776, %v1797, %v1805
        %v1812 = vsel %vm776, %v1799, %v1807
        %v1813 = vsel %vm776, %v1801, %v1809
        %v1814 = vsel %vm776, %v1803, %v1795
        %v1815 = vsel %vm776, %v1805, %v1797
        %v1816 = vsel %vm776, %v1807, %v1799
        %v1817 = vsel %vm776, %v1809, %v1801
        %v1818 = vmul.f32 %v1814, %v785
        %v1819 = vmul.f32 %v1810, %v789
        %v1820 = vmul.f32 %v1815, %v785
        %v1821 = vmul.f32 %v1811, %v789
        %v1822 = vmul.f32 %v1816, %v785
        %v1823 = vmul.f32 %v1812, %v789
        %v1824 = vmul.f32 %v1817, %v785
        %v1825 = vmul.f32 %v1813, %v789
        %s1826 = scalar_lea.vmem %s535, 32
        %v1827 = vld [vmem:[%s1826] sm:$0xf]
        %v1828 = vld [vmem:[%s1826 + $0x4] sm:$0xf]
        %v1829 = vld [vmem:[%s1826 + $0x8] sm:$0xf]
        %v1830 = vld [vmem:[%s1826 + $0xc] sm:$0xf]
        %v1831 = vpack.c.bf16 %v1820, %v1818
        %v1832 = vpack.c.bf16 %v1821, %v1819
        %v1833 = vpack.c.bf16 %v1824, %v1822
        %v1834 = vpack.c.bf16 %v1825, %v1823
        %v1839 = vunpack.c.l.b16 %v1827
        %v1840 = vunpack.c.l.b16 %v1828
        %v1841 = vunpack.c.l.b16 %v1829
        %v1842 = vunpack.c.l.b16 %v1830
        %v1843 = vpack.c.b16 %v1840, %v1839
        %v1844 = vpack.c.b16 %v1842, %v1841
        %v1846 = vsel %vm1665, %v1843, 0
        %v1849 = vsel %vm1665, %v1844, 0
        %1851 = vmatprep.subr.bf16.mxu0 0
        %1852 = vmatpush1.bf16.msra.mxu0 0
        %1853 = vmatprep.subr.bf16.mxu0 0
        %1854 = vmatpush1.bf16.msra.mxu0 0
        %1855 = vmatprep.subr.bf16.mxu0 0
        %1856 = vmatpush1.bf16.msra.mxu0 0
        %1857 = vmatprep.subr.bf16.mxu0 0
        %1858 = vmatpush1.bf16.msra.mxu0 0
        %1859 = vmatprep.subr.bf16.mxu0 0
        %1860 = vmatpush1.bf16.msra.mxu0 0
        %1861 = vmatprep.subr.bf16.mxu0 0
        %1862 = vmatpush1.bf16.msra.mxu0 0
        %1863 = vmatprep.subr.bf16.mxu0 %v1834
        %1864 = vmatpush1.bf16.msra.mxu0 %v1833
        %1865 = vmatprep.subr.bf16.mxu0 %v1832
        %1866 = vmatpush1.bf16.msra.mxu0 %v1831
        %1867 = vmatprep.subr.bf16.mxu0 0
        %1868 = vmatpush2.bf16.msra.mxu0 0
        %1869 = vmatprep.subr.bf16.mxu0 0
        %1870 = vmatpush2.bf16.msra.mxu0 0
        %1871 = vmatprep.subr.bf16.mxu0 0
        %1872 = vmatpush2.bf16.msra.mxu0 0
        %1873 = vmatprep.subr.bf16.mxu0 0
        %1874 = vmatpush2.bf16.msra.mxu0 0
        %1875 = vmatprep.subr.bf16.mxu0 0
        %1876 = vmatpush2.bf16.msra.mxu0 0
        %1877 = vmatprep.subr.bf16.mxu0 0
        %1878 = vmatpush2.bf16.msra.mxu0 0
        %1879 = vmatprep.subr.bf16.mxu0 0
        %1880 = vmatpush2.bf16.msra.mxu0 0
        %1881 = vmatprep.subr.bf16.mxu0 0
        %1882 = vmatpush2.bf16.msra.mxu0 0
        %1883 = vmatprep.mubr.bf16.mxu0 0
        %1884 = vmatmul.mubr.bf16.gmra.mxu0 %v1846
        %v1885 = vpop.f32.mrf.mxu0
        %v1886 = vadd.f32 0.0, %v1885
        %v1887 = vpop.f32.mrf.mxu0
        %v1888 = vadd.f32 0.0, %v1887
        %v1889 = vpop.f32.mrf.mxu0
        %v1890 = vadd.f32 0.0, %v1889
        %v1891 = vpop.f32.mrf.mxu0
        %v1892 = vadd.f32 0.0, %v1891
        %1893 = vmatprep.mubr.bf16.mxu0 0
        %1894 = vmatmul.mubr.bf16.gmra.mxu0 %v1849
        %v1895 = vpop.f32.mrf.mxu0
        %v1896 = vadd.f32 0.0, %v1895
        %v1897 = vpop.f32.mrf.mxu0
        %v1898 = vadd.f32 0.0, %v1897
        %v1899 = vpop.f32.mrf.mxu0
        %v1900 = vadd.f32 0.0, %v1899
        %v1901 = vpop.f32.mrf.mxu0
        %v1902 = vadd.f32 0.0, %v1901
        %1903 = vdwg.mxu0
        %v1904 = vadd.f32 %v1776, %v1886
        %v1905 = vadd.f32 %v1778, %v1888
        %v1906 = vadd.f32 %v1780, %v1890
        %v1907 = vadd.f32 %v1782, %v1892
        %v1908 = vadd.f32 %v1786, %v1896
        %v1909 = vadd.f32 %v1788, %v1898
        %v1910 = vadd.f32 %v1790, %v1900
        %v1911 = vadd.f32 %v1792, %v1902
        %1912 = vrot.lane.b32.xlu0 %v1566, 1
        %v1913 = vpop.permute.xlu0 %1912
        %1914 = vrot.lane.b32.xlu0 %v1568, 1
        %v1915 = vpop.permute.xlu0 %1914
        %1916 = vrot.lane.b32.xlu0 %v1570, 1
        %v1917 = vpop.permute.xlu0 %1916
        %1918 = vrot.lane.b32.xlu0 %v1572, 1
        %v1919 = vpop.permute.xlu0 %1918
        %1920 = vrot.lane.b32.xlu0 %v1567, 1
        %v1921 = vpop.permute.xlu0 %1920
        %1922 = vrot.lane.b32.xlu0 %v1569, 1
        %v1923 = vpop.permute.xlu0 %1922
        %1924 = vrot.lane.b32.xlu0 %v1571, 1
        %v1925 = vpop.permute.xlu0 %1924
        %1926 = vrot.lane.b32.xlu0 %v1573, 1
        %v1927 = vpop.permute.xlu0 %1926
        %v1928 = vsel %vm888, %v1913, %v1921
        %v1929 = vsel %vm888, %v1915, %v1923
        %v1930 = vsel %vm888, %v1917, %v1925
        %v1931 = vsel %vm888, %v1919, %v1927
        %v1932 = vsel %vm888, %v1921, %v1913
        %v1933 = vsel %vm888, %v1923, %v1915
        %v1934 = vsel %vm888, %v1925, %v1917
        %v1935 = vsel %vm888, %v1927, %v1919
        %v1936 = vmul.f32 %v1932, %v897
        %v1937 = vmul.f32 %v1928, %v901
        %v1938 = vmul.f32 %v1933, %v897
        %v1939 = vmul.f32 %v1929, %v901
        %v1940 = vmul.f32 %v1934, %v897
        %v1941 = vmul.f32 %v1930, %v901
        %v1942 = vmul.f32 %v1935, %v897
        %v1943 = vmul.f32 %v1931, %v901
        %s1944 = scalar_lea.vmem %s535, 48
        %v1945 = vld [vmem:[%s1944] sm:$0xf]
        %v1946 = vld [vmem:[%s1944 + $0x4] sm:$0xf]
        %v1947 = vld [vmem:[%s1944 + $0x8] sm:$0xf]
        %v1948 = vld [vmem:[%s1944 + $0xc] sm:$0xf]
        %v1949 = vpack.c.bf16 %v1938, %v1936
        %v1950 = vpack.c.bf16 %v1939, %v1937
        %v1951 = vpack.c.bf16 %v1942, %v1940
        %v1952 = vpack.c.bf16 %v1943, %v1941
        %v1957 = vunpack.c.l.b16 %v1945
        %v1958 = vunpack.c.l.b16 %v1946
        %v1959 = vunpack.c.l.b16 %v1947
        %v1960 = vunpack.c.l.b16 %v1948
        %v1961 = vpack.c.b16 %v1958, %v1957
        %v1962 = vpack.c.b16 %v1960, %v1959
        %v1964 = vsel %vm1665, %v1961, 0
        %v1967 = vsel %vm1665, %v1962, 0
        %1969 = vmatprep.subr.bf16.mxu0 0
        %1970 = vmatpush1.bf16.msra.mxu0 0
        %1971 = vmatprep.subr.bf16.mxu0 0
        %1972 = vmatpush1.bf16.msra.mxu0 0
        %1973 = vmatprep.subr.bf16.mxu0 0
        %1974 = vmatpush1.bf16.msra.mxu0 0
        %1975 = vmatprep.subr.bf16.mxu0 0
        %1976 = vmatpush1.bf16.msra.mxu0 0
        %1977 = vmatprep.subr.bf16.mxu0 0
        %1978 = vmatpush1.bf16.msra.mxu0 0
        %1979 = vmatprep.subr.bf16.mxu0 0
        %1980 = vmatpush1.bf16.msra.mxu0 0
        %1981 = vmatprep.subr.bf16.mxu0 %v1952
        %1982 = vmatpush1.bf16.msra.mxu0 %v1951
        %1983 = vmatprep.subr.bf16.mxu0 %v1950
        %1984 = vmatpush1.bf16.msra.mxu0 %v1949
        %1985 = vmatprep.subr.bf16.mxu0 0
        %1986 = vmatpush2.bf16.msra.mxu0 0
        %1987 = vmatprep.subr.bf16.mxu0 0
        %1988 = vmatpush2.bf16.msra.mxu0 0
        %1989 = vmatprep.subr.bf16.mxu0 0
        %1990 = vmatpush2.bf16.msra.mxu0 0
        %1991 = vmatprep.subr.bf16.mxu0 0
        %1992 = vmatpush2.bf16.msra.mxu0 0
        %1993 = vmatprep.subr.bf16.mxu0 0
        %1994 = vmatpush2.bf16.msra.mxu0 0
        %1995 = vmatprep.subr.bf16.mxu0 0
        %1996 = vmatpush2.bf16.msra.mxu0 0
        %1997 = vmatprep.subr.bf16.mxu0 0
        %1998 = vmatpush2.bf16.msra.mxu0 0
        %1999 = vmatprep.subr.bf16.mxu0 0
        %2000 = vmatpush2.bf16.msra.mxu0 0
        %2001 = vmatprep.mubr.bf16.mxu0 0
        %2002 = vmatmul.mubr.bf16.gmra.mxu0 %v1964
        %v2003 = vpop.f32.mrf.mxu0
        %v2004 = vadd.f32 0.0, %v2003
        %v2005 = vpop.f32.mrf.mxu0
        %v2006 = vadd.f32 0.0, %v2005
        %v2007 = vpop.f32.mrf.mxu0
        %v2008 = vadd.f32 0.0, %v2007
        %v2009 = vpop.f32.mrf.mxu0
        %v2010 = vadd.f32 0.0, %v2009
        %2011 = vmatprep.mubr.bf16.mxu0 0
        %2012 = vmatmul.mubr.bf16.gmra.mxu0 %v1967
        %v2013 = vpop.f32.mrf.mxu0
        %v2014 = vadd.f32 0.0, %v2013
        %v2015 = vpop.f32.mrf.mxu0
        %v2016 = vadd.f32 0.0, %v2015
        %v2017 = vpop.f32.mrf.mxu0
        %v2018 = vadd.f32 0.0, %v2017
        %v2019 = vpop.f32.mrf.mxu0
        %v2020 = vadd.f32 0.0, %v2019
        %2021 = vdwg.mxu0
        %v2022 = vadd.f32 %v1904, %v2004
        %v2023 = vadd.f32 %v1905, %v2006
        %v2024 = vadd.f32 %v1906, %v2008
        %v2025 = vadd.f32 %v1907, %v2010
        %v2026 = vadd.f32 %v1908, %v2014
        %v2027 = vadd.f32 %v1909, %v2016
        %v2028 = vadd.f32 %v1910, %v2018
        %v2029 = vadd.f32 %v1911, %v2020
        %s2030 = scalar_lea.vmem %s535, 64
        %v2031 = vld [vmem:[%s2030] sm:$0xf]
        %v2032 = vld [vmem:[%s2030 + $0x4] sm:$0xf]
        %v2033 = vld [vmem:[%s2030 + $0x8] sm:$0xf]
        %v2034 = vld [vmem:[%s2030 + $0xc] sm:$0xf]
        %v2035 = vpack.c.bf16 %v1568, %v1566
        %v2036 = vpack.c.bf16 %v1569, %v1567
        %v2037 = vpack.c.bf16 %v1572, %v1570
        %v2038 = vpack.c.bf16 %v1573, %v1571
        %v2043 = vunpack.c.l.b16 %v2031
        %v2044 = vunpack.c.l.b16 %v2032
        %v2045 = vunpack.c.l.b16 %v2033
        %v2046 = vunpack.c.l.b16 %v2034
        %v2047 = vpack.c.b16 %v2044, %v2043
        %v2048 = vpack.c.b16 %v2046, %v2045
        %v2050 = vsel %vm1665, %v2047, 0
        %v2053 = vsel %vm1665, %v2048, 0
        %2055 = vmatprep.subr.bf16.mxu0 0
        %2056 = vmatpush1.bf16.msra.mxu0 0
        %2057 = vmatprep.subr.bf16.mxu0 0
        %2058 = vmatpush1.bf16.msra.mxu0 0
        %2059 = vmatprep.subr.bf16.mxu0 0
        %2060 = vmatpush1.bf16.msra.mxu0 0
        %2061 = vmatprep.subr.bf16.mxu0 0
        %2062 = vmatpush1.bf16.msra.mxu0 0
        %2063 = vmatprep.subr.bf16.mxu0 0
        %2064 = vmatpush1.bf16.msra.mxu0 0
        %2065 = vmatprep.subr.bf16.mxu0 0
        %2066 = vmatpush1.bf16.msra.mxu0 0
        %2067 = vmatprep.subr.bf16.mxu0 %v2038
        %2068 = vmatpush1.bf16.msra.mxu0 %v2037
        %2069 = vmatprep.subr.bf16.mxu0 %v2036
        %2070 = vmatpush1.bf16.msra.mxu0 %v2035
        %2071 = vmatprep.subr.bf16.mxu0 0
        %2072 = vmatpush2.bf16.msra.mxu0 0
        %2073 = vmatprep.subr.bf16.mxu0 0
        %2074 = vmatpush2.bf16.msra.mxu0 0
        %2075 = vmatprep.subr.bf16.mxu0 0
        %2076 = vmatpush2.bf16.msra.mxu0 0
        %2077 = vmatprep.subr.bf16.mxu0 0
        %2078 = vmatpush2.bf16.msra.mxu0 0
        %2079 = vmatprep.subr.bf16.mxu0 0
        %2080 = vmatpush2.bf16.msra.mxu0 0
        %2081 = vmatprep.subr.bf16.mxu0 0
        %2082 = vmatpush2.bf16.msra.mxu0 0
        %2083 = vmatprep.subr.bf16.mxu0 0
        %2084 = vmatpush2.bf16.msra.mxu0 0
        %2085 = vmatprep.subr.bf16.mxu0 0
        %2086 = vmatpush2.bf16.msra.mxu0 0
        %2087 = vmatprep.mubr.bf16.mxu0 0
        %2088 = vmatmul.mubr.bf16.gmra.mxu0 %v2050
        %v2089 = vpop.f32.mrf.mxu0
        %v2090 = vadd.f32 0.0, %v2089
        %v2091 = vpop.f32.mrf.mxu0
        %v2092 = vadd.f32 0.0, %v2091
        %v2093 = vpop.f32.mrf.mxu0
        %v2094 = vadd.f32 0.0, %v2093
        %v2095 = vpop.f32.mrf.mxu0
        %v2096 = vadd.f32 0.0, %v2095
        %2097 = vmatprep.mubr.bf16.mxu0 0
        %2098 = vmatmul.mubr.bf16.gmra.mxu0 %v2053
        %v2099 = vpop.f32.mrf.mxu0
        %v2100 = vadd.f32 0.0, %v2099
        %v2101 = vpop.f32.mrf.mxu0
        %v2102 = vadd.f32 0.0, %v2101
        %v2103 = vpop.f32.mrf.mxu0
        %v2104 = vadd.f32 0.0, %v2103
        %v2105 = vpop.f32.mrf.mxu0
        %v2106 = vadd.f32 0.0, %v2105
        %2107 = vdwg.mxu0
        %v2108 = vadd.f32 %v2022, %v2090
        %v2109 = vadd.f32 %v2023, %v2092
        %v2110 = vadd.f32 %v2024, %v2094
        %v2111 = vadd.f32 %v2025, %v2096
        %v2112 = vadd.f32 %v2026, %v2100
        %v2113 = vadd.f32 %v2027, %v2102
        %v2114 = vadd.f32 %v2028, %v2104
        %v2115 = vadd.f32 %v2029, %v2106
        %2116 = vrot.lane.b32.xlu0 %v1566, 127
        %v2117 = vpop.permute.xlu0 %2116
        %2118 = vrot.lane.b32.xlu0 %v1568, 127
        %v2119 = vpop.permute.xlu0 %2118
        %2120 = vrot.lane.b32.xlu0 %v1570, 127
        %v2121 = vpop.permute.xlu0 %2120
        %2122 = vrot.lane.b32.xlu0 %v1572, 127
        %v2123 = vpop.permute.xlu0 %2122
        %2124 = vrot.lane.b32.xlu0 %v1567, 127
        %v2125 = vpop.permute.xlu0 %2124
        %2126 = vrot.lane.b32.xlu0 %v1569, 127
        %v2127 = vpop.permute.xlu0 %2126
        %2128 = vrot.lane.b32.xlu0 %v1571, 127
        %v2129 = vpop.permute.xlu0 %2128
        %2130 = vrot.lane.b32.xlu0 %v1573, 127
        %v2131 = vpop.permute.xlu0 %2130
        %v2132 = vsel %vm1090, %v2117, %v2125
        %v2133 = vsel %vm1090, %v2119, %v2127
        %v2134 = vsel %vm1090, %v2121, %v2129
        %v2135 = vsel %vm1090, %v2123, %v2131
        %v2136 = vsel %vm1090, %v2125, %v2117
        %v2137 = vsel %vm1090, %v2127, %v2119
        %v2138 = vsel %vm1090, %v2129, %v2121
        %v2139 = vsel %vm1090, %v2131, %v2123
        %v2140 = vmul.f32 %v2132, %v1099
        %v2141 = vmul.f32 %v2136, %v1103
        %v2142 = vmul.f32 %v2133, %v1099
        %v2143 = vmul.f32 %v2137, %v1103
        %v2144 = vmul.f32 %v2134, %v1099
        %v2145 = vmul.f32 %v2138, %v1103
        %v2146 = vmul.f32 %v2135, %v1099
        %v2147 = vmul.f32 %v2139, %v1103
        %s2148 = scalar_lea.vmem %s535, 80
        %v2149 = vld [vmem:[%s2148] sm:$0xf]
        %v2150 = vld [vmem:[%s2148 + $0x4] sm:$0xf]
        %v2151 = vld [vmem:[%s2148 + $0x8] sm:$0xf]
        %v2152 = vld [vmem:[%s2148 + $0xc] sm:$0xf]
        %v2153 = vpack.c.bf16 %v2142, %v2140
        %v2154 = vpack.c.bf16 %v2143, %v2141
        %v2155 = vpack.c.bf16 %v2146, %v2144
        %v2156 = vpack.c.bf16 %v2147, %v2145
        %v2161 = vunpack.c.l.b16 %v2149
        %v2162 = vunpack.c.l.b16 %v2150
        %v2163 = vunpack.c.l.b16 %v2151
        %v2164 = vunpack.c.l.b16 %v2152
        %v2165 = vpack.c.b16 %v2162, %v2161
        %v2166 = vpack.c.b16 %v2164, %v2163
        %v2168 = vsel %vm1665, %v2165, 0
        %v2171 = vsel %vm1665, %v2166, 0
        %2173 = vmatprep.subr.bf16.mxu0 0
        %2174 = vmatpush1.bf16.msra.mxu0 0
        %2175 = vmatprep.subr.bf16.mxu0 0
        %2176 = vmatpush1.bf16.msra.mxu0 0
        %2177 = vmatprep.subr.bf16.mxu0 0
        %2178 = vmatpush1.bf16.msra.mxu0 0
        %2179 = vmatprep.subr.bf16.mxu0 0
        %2180 = vmatpush1.bf16.msra.mxu0 0
        %2181 = vmatprep.subr.bf16.mxu0 0
        %2182 = vmatpush1.bf16.msra.mxu0 0
        %2183 = vmatprep.subr.bf16.mxu0 0
        %2184 = vmatpush1.bf16.msra.mxu0 0
        %2185 = vmatprep.subr.bf16.mxu0 %v2156
        %2186 = vmatpush1.bf16.msra.mxu0 %v2155
        %2187 = vmatprep.subr.bf16.mxu0 %v2154
        %2188 = vmatpush1.bf16.msra.mxu0 %v2153
        %2189 = vmatprep.subr.bf16.mxu0 0
        %2190 = vmatpush2.bf16.msra.mxu0 0
        %2191 = vmatprep.subr.bf16.mxu0 0
        %2192 = vmatpush2.bf16.msra.mxu0 0
        %2193 = vmatprep.subr.bf16.mxu0 0
        %2194 = vmatpush2.bf16.msra.mxu0 0
        %2195 = vmatprep.subr.bf16.mxu0 0
        %2196 = vmatpush2.bf16.msra.mxu0 0
        %2197 = vmatprep.subr.bf16.mxu0 0
        %2198 = vmatpush2.bf16.msra.mxu0 0
        %2199 = vmatprep.subr.bf16.mxu0 0
        %2200 = vmatpush2.bf16.msra.mxu0 0
        %2201 = vmatprep.subr.bf16.mxu0 0
        %2202 = vmatpush2.bf16.msra.mxu0 0
        %2203 = vmatprep.subr.bf16.mxu0 0
        %2204 = vmatpush2.bf16.msra.mxu0 0
        %2205 = vmatprep.mubr.bf16.mxu0 0
        %2206 = vmatmul.mubr.bf16.gmra.mxu0 %v2168
        %v2207 = vpop.f32.mrf.mxu0
        %v2208 = vadd.f32 0.0, %v2207
        %v2209 = vpop.f32.mrf.mxu0
        %v2210 = vadd.f32 0.0, %v2209
        %v2211 = vpop.f32.mrf.mxu0
        %v2212 = vadd.f32 0.0, %v2211
        %v2213 = vpop.f32.mrf.mxu0
        %v2214 = vadd.f32 0.0, %v2213
        %2215 = vmatprep.mubr.bf16.mxu0 0
        %2216 = vmatmul.mubr.bf16.gmra.mxu0 %v2171
        %v2217 = vpop.f32.mrf.mxu0
        %v2218 = vadd.f32 0.0, %v2217
        %v2219 = vpop.f32.mrf.mxu0
        %v2220 = vadd.f32 0.0, %v2219
        %v2221 = vpop.f32.mrf.mxu0
        %v2222 = vadd.f32 0.0, %v2221
        %v2223 = vpop.f32.mrf.mxu0
        %v2224 = vadd.f32 0.0, %v2223
        %2225 = vdwg.mxu0
        %v2226 = vadd.f32 %v2108, %v2208
        %v2227 = vadd.f32 %v2109, %v2210
        %v2228 = vadd.f32 %v2110, %v2212
        %v2229 = vadd.f32 %v2111, %v2214
        %v2230 = vadd.f32 %v2112, %v2218
        %v2231 = vadd.f32 %v2113, %v2220
        %v2232 = vadd.f32 %v2114, %v2222
        %v2233 = vadd.f32 %v2115, %v2224
        %2234 = vrot.lane.b32.xlu0 %v1566, 113
        %v2235 = vpop.permute.xlu0 %2234
        %2236 = vrot.lane.b32.xlu0 %v1568, 113
        %v2237 = vpop.permute.xlu0 %2236
        %2238 = vrot.lane.b32.xlu0 %v1570, 113
        %v2239 = vpop.permute.xlu0 %2238
        %2240 = vrot.lane.b32.xlu0 %v1572, 113
        %v2241 = vpop.permute.xlu0 %2240
        %2242 = vrot.lane.b32.xlu0 %v1567, 113
        %v2243 = vpop.permute.xlu0 %2242
        %2244 = vrot.lane.b32.xlu0 %v1569, 113
        %v2245 = vpop.permute.xlu0 %2244
        %2246 = vrot.lane.b32.xlu0 %v1571, 113
        %v2247 = vpop.permute.xlu0 %2246
        %2248 = vrot.lane.b32.xlu0 %v1573, 113
        %v2249 = vpop.permute.xlu0 %2248
        %v2250 = vsel %vm1202, %v2235, %v2243
        %v2251 = vsel %vm1202, %v2237, %v2245
        %v2252 = vsel %vm1202, %v2239, %v2247
        %v2253 = vsel %vm1202, %v2241, %v2249
        %v2254 = vsel %vm1202, %v2243, %v2235
        %v2255 = vsel %vm1202, %v2245, %v2237
        %v2256 = vsel %vm1202, %v2247, %v2239
        %v2257 = vsel %vm1202, %v2249, %v2241
        %v2258 = vmul.f32 %v2250, %v1211
        %v2259 = vmul.f32 %v2254, %v1215
        %v2260 = vmul.f32 %v2251, %v1211
        %v2261 = vmul.f32 %v2255, %v1215
        %v2262 = vmul.f32 %v2252, %v1211
        %v2263 = vmul.f32 %v2256, %v1215
        %v2264 = vmul.f32 %v2253, %v1211
        %v2265 = vmul.f32 %v2257, %v1215
        %s2266 = scalar_lea.vmem %s535, 96
        %v2267 = vld [vmem:[%s2266] sm:$0xf]
        %v2268 = vld [vmem:[%s2266 + $0x4] sm:$0xf]
        %v2269 = vld [vmem:[%s2266 + $0x8] sm:$0xf]
        %v2270 = vld [vmem:[%s2266 + $0xc] sm:$0xf]
        %v2271 = vpack.c.bf16 %v2260, %v2258
        %v2272 = vpack.c.bf16 %v2261, %v2259
        %v2273 = vpack.c.bf16 %v2264, %v2262
        %v2274 = vpack.c.bf16 %v2265, %v2263
        %v2279 = vunpack.c.l.b16 %v2267
        %v2280 = vunpack.c.l.b16 %v2268
        %v2281 = vunpack.c.l.b16 %v2269
        %v2282 = vunpack.c.l.b16 %v2270
        %v2283 = vpack.c.b16 %v2280, %v2279
        %v2284 = vpack.c.b16 %v2282, %v2281
        %v2286 = vsel %vm1665, %v2283, 0
        %v2289 = vsel %vm1665, %v2284, 0
        %2291 = vmatprep.subr.bf16.mxu0 0
        %2292 = vmatpush1.bf16.msra.mxu0 0
        %2293 = vmatprep.subr.bf16.mxu0 0
        %2294 = vmatpush1.bf16.msra.mxu0 0
        %2295 = vmatprep.subr.bf16.mxu0 0
        %2296 = vmatpush1.bf16.msra.mxu0 0
        %2297 = vmatprep.subr.bf16.mxu0 0
        %2298 = vmatpush1.bf16.msra.mxu0 0
        %2299 = vmatprep.subr.bf16.mxu0 0
        %2300 = vmatpush1.bf16.msra.mxu0 0
        %2301 = vmatprep.subr.bf16.mxu0 0
        %2302 = vmatpush1.bf16.msra.mxu0 0
        %2303 = vmatprep.subr.bf16.mxu0 %v2274
        %2304 = vmatpush1.bf16.msra.mxu0 %v2273
        %2305 = vmatprep.subr.bf16.mxu0 %v2272
        %2306 = vmatpush1.bf16.msra.mxu0 %v2271
        %2307 = vmatprep.subr.bf16.mxu0 0
        %2308 = vmatpush2.bf16.msra.mxu0 0
        %2309 = vmatprep.subr.bf16.mxu0 0
        %2310 = vmatpush2.bf16.msra.mxu0 0
        %2311 = vmatprep.subr.bf16.mxu0 0
        %2312 = vmatpush2.bf16.msra.mxu0 0
        %2313 = vmatprep.subr.bf16.mxu0 0
        %2314 = vmatpush2.bf16.msra.mxu0 0
        %2315 = vmatprep.subr.bf16.mxu0 0
        %2316 = vmatpush2.bf16.msra.mxu0 0
        %2317 = vmatprep.subr.bf16.mxu0 0
        %2318 = vmatpush2.bf16.msra.mxu0 0
        %2319 = vmatprep.subr.bf16.mxu0 0
        %2320 = vmatpush2.bf16.msra.mxu0 0
        %2321 = vmatprep.subr.bf16.mxu0 0
        %2322 = vmatpush2.bf16.msra.mxu0 0
        %2323 = vmatprep.mubr.bf16.mxu0 0
        %2324 = vmatmul.mubr.bf16.gmra.mxu0 %v2286
        %v2325 = vpop.f32.mrf.mxu0
        %v2326 = vadd.f32 0.0, %v2325
        %v2327 = vpop.f32.mrf.mxu0
        %v2328 = vadd.f32 0.0, %v2327
        %v2329 = vpop.f32.mrf.mxu0
        %v2330 = vadd.f32 0.0, %v2329
        %v2331 = vpop.f32.mrf.mxu0
        %v2332 = vadd.f32 0.0, %v2331
        %2333 = vmatprep.mubr.bf16.mxu0 0
        %2334 = vmatmul.mubr.bf16.gmra.mxu0 %v2289
        %v2335 = vpop.f32.mrf.mxu0
        %v2336 = vadd.f32 0.0, %v2335
        %v2337 = vpop.f32.mrf.mxu0
        %v2338 = vadd.f32 0.0, %v2337
        %v2339 = vpop.f32.mrf.mxu0
        %v2340 = vadd.f32 0.0, %v2339
        %v2341 = vpop.f32.mrf.mxu0
        %v2342 = vadd.f32 0.0, %v2341
        %2343 = vdwg.mxu0
        %v2344 = vadd.f32 %v2226, %v2326
        %v2345 = vadd.f32 %v2227, %v2328
        %v2346 = vadd.f32 %v2228, %v2330
        %v2347 = vadd.f32 %v2229, %v2332
        %v2348 = vadd.f32 %v2230, %v2336
        %v2349 = vadd.f32 %v2231, %v2338
        %v2350 = vadd.f32 %v2232, %v2340
        %v2351 = vadd.f32 %v2233, %v2342
        %2352 = vrot.lane.b32.xlu0 %v1566, 112
        %v2353 = vpop.permute.xlu0 %2352
        %2354 = vrot.lane.b32.xlu0 %v1568, 112
        %v2355 = vpop.permute.xlu0 %2354
        %2356 = vrot.lane.b32.xlu0 %v1570, 112
        %v2357 = vpop.permute.xlu0 %2356
        %2358 = vrot.lane.b32.xlu0 %v1572, 112
        %v2359 = vpop.permute.xlu0 %2358
        %2360 = vrot.lane.b32.xlu0 %v1567, 112
        %v2361 = vpop.permute.xlu0 %2360
        %2362 = vrot.lane.b32.xlu0 %v1569, 112
        %v2363 = vpop.permute.xlu0 %2362
        %2364 = vrot.lane.b32.xlu0 %v1571, 112
        %v2365 = vpop.permute.xlu0 %2364
        %2366 = vrot.lane.b32.xlu0 %v1573, 112
        %v2367 = vpop.permute.xlu0 %2366
        %v2368 = vsel %vm1314, %v2353, %v2361
        %v2369 = vsel %vm1314, %v2355, %v2363
        %v2370 = vsel %vm1314, %v2357, %v2365
        %v2371 = vsel %vm1314, %v2359, %v2367
        %v2372 = vsel %vm1314, %v2361, %v2353
        %v2373 = vsel %vm1314, %v2363, %v2355
        %v2374 = vsel %vm1314, %v2365, %v2357
        %v2375 = vsel %vm1314, %v2367, %v2359
        %v2376 = vmul.f32 %v2368, %v1323
        %v2377 = vmul.f32 %v2372, %v1327
        %v2378 = vmul.f32 %v2369, %v1323
        %v2379 = vmul.f32 %v2373, %v1327
        %v2380 = vmul.f32 %v2370, %v1323
        %v2381 = vmul.f32 %v2374, %v1327
        %v2382 = vmul.f32 %v2371, %v1323
        %v2383 = vmul.f32 %v2375, %v1327
        %s2384 = scalar_lea.vmem %s535, 112
        %v2385 = vld [vmem:[%s2384] sm:$0xf]
        %v2386 = vld [vmem:[%s2384 + $0x4] sm:$0xf]
        %v2387 = vld [vmem:[%s2384 + $0x8] sm:$0xf]
        %v2388 = vld [vmem:[%s2384 + $0xc] sm:$0xf]
        %v2389 = vpack.c.bf16 %v2378, %v2376
        %v2390 = vpack.c.bf16 %v2379, %v2377
        %v2391 = vpack.c.bf16 %v2382, %v2380
        %v2392 = vpack.c.bf16 %v2383, %v2381
        %v2397 = vunpack.c.l.b16 %v2385
        %v2398 = vunpack.c.l.b16 %v2386
        %v2399 = vunpack.c.l.b16 %v2387
        %v2400 = vunpack.c.l.b16 %v2388
        %v2401 = vpack.c.b16 %v2398, %v2397
        %v2402 = vpack.c.b16 %v2400, %v2399
        %v2404 = vsel %vm1665, %v2401, 0
        %v2407 = vsel %vm1665, %v2402, 0
        %2409 = vmatprep.subr.bf16.mxu0 0
        %2410 = vmatpush1.bf16.msra.mxu0 0
        %2411 = vmatprep.subr.bf16.mxu0 0
        %2412 = vmatpush1.bf16.msra.mxu0 0
        %2413 = vmatprep.subr.bf16.mxu0 0
        %2414 = vmatpush1.bf16.msra.mxu0 0
        %2415 = vmatprep.subr.bf16.mxu0 0
        %2416 = vmatpush1.bf16.msra.mxu0 0
        %2417 = vmatprep.subr.bf16.mxu0 0
        %2418 = vmatpush1.bf16.msra.mxu0 0
        %2419 = vmatprep.subr.bf16.mxu0 0
        %2420 = vmatpush1.bf16.msra.mxu0 0
        %2421 = vmatprep.subr.bf16.mxu0 %v2392
        %2422 = vmatpush1.bf16.msra.mxu0 %v2391
        %2423 = vmatprep.subr.bf16.mxu0 %v2390
        %2424 = vmatpush1.bf16.msra.mxu0 %v2389
        %2425 = vmatprep.subr.bf16.mxu0 0
        %2426 = vmatpush2.bf16.msra.mxu0 0
        %2427 = vmatprep.subr.bf16.mxu0 0
        %2428 = vmatpush2.bf16.msra.mxu0 0
        %2429 = vmatprep.subr.bf16.mxu0 0
        %2430 = vmatpush2.bf16.msra.mxu0 0
        %2431 = vmatprep.subr.bf16.mxu0 0
        %2432 = vmatpush2.bf16.msra.mxu0 0
        %2433 = vmatprep.subr.bf16.mxu0 0
        %2434 = vmatpush2.bf16.msra.mxu0 0
        %2435 = vmatprep.subr.bf16.mxu0 0
        %2436 = vmatpush2.bf16.msra.mxu0 0
        %2437 = vmatprep.subr.bf16.mxu0 0
        %2438 = vmatpush2.bf16.msra.mxu0 0
        %2439 = vmatprep.subr.bf16.mxu0 0
        %2440 = vmatpush2.bf16.msra.mxu0 0
        %2441 = vmatprep.mubr.bf16.mxu0 0
        %2442 = vmatmul.mubr.bf16.gmra.mxu0 %v2404
        %v2443 = vpop.f32.mrf.mxu0
        %v2444 = vadd.f32 0.0, %v2443
        %v2445 = vpop.f32.mrf.mxu0
        %v2446 = vadd.f32 0.0, %v2445
        %v2447 = vpop.f32.mrf.mxu0
        %v2448 = vadd.f32 0.0, %v2447
        %v2449 = vpop.f32.mrf.mxu0
        %v2450 = vadd.f32 0.0, %v2449
        %2451 = vmatprep.mubr.bf16.mxu0 0
        %2452 = vmatmul.mubr.bf16.gmra.mxu0 %v2407
        %v2453 = vpop.f32.mrf.mxu0
        %v2454 = vadd.f32 0.0, %v2453
        %v2455 = vpop.f32.mrf.mxu0
        %v2456 = vadd.f32 0.0, %v2455
        %v2457 = vpop.f32.mrf.mxu0
        %v2458 = vadd.f32 0.0, %v2457
        %v2459 = vpop.f32.mrf.mxu0
        %v2460 = vadd.f32 0.0, %v2459
        %2461 = vdwg.mxu0
        %v2462 = vadd.f32 %v2344, %v2444
        %v2463 = vadd.f32 %v2345, %v2446
        %v2464 = vadd.f32 %v2346, %v2448
        %v2465 = vadd.f32 %v2347, %v2450
        %v2466 = vadd.f32 %v2348, %v2454
        %v2467 = vadd.f32 %v2349, %v2456
        %v2468 = vadd.f32 %v2350, %v2458
        %v2469 = vadd.f32 %v2351, %v2460
        %2470 = vrot.lane.b32.xlu0 %v1566, 111
        %v2471 = vpop.permute.xlu0 %2470
        %2472 = vrot.lane.b32.xlu0 %v1568, 111
        %v2473 = vpop.permute.xlu0 %2472
        %2474 = vrot.lane.b32.xlu0 %v1570, 111
        %v2475 = vpop.permute.xlu0 %2474
        %2476 = vrot.lane.b32.xlu0 %v1572, 111
        %v2477 = vpop.permute.xlu0 %2476
        %2478 = vrot.lane.b32.xlu0 %v1567, 111
        %v2479 = vpop.permute.xlu0 %2478
        %2480 = vrot.lane.b32.xlu0 %v1569, 111
        %v2481 = vpop.permute.xlu0 %2480
        %2482 = vrot.lane.b32.xlu0 %v1571, 111
        %v2483 = vpop.permute.xlu0 %2482
        %2484 = vrot.lane.b32.xlu0 %v1573, 111
        %v2485 = vpop.permute.xlu0 %2484
        %v2486 = vsel %vm1426, %v2471, %v2479
        %v2487 = vsel %vm1426, %v2473, %v2481
        %v2488 = vsel %vm1426, %v2475, %v2483
        %v2489 = vsel %vm1426, %v2477, %v2485
        %v2490 = vsel %vm1426, %v2479, %v2471
        %v2491 = vsel %vm1426, %v2481, %v2473
        %v2492 = vsel %vm1426, %v2483, %v2475
        %v2493 = vsel %vm1426, %v2485, %v2477
        %v2494 = vmul.f32 %v2486, %v1435
        %v2495 = vmul.f32 %v2490, %v1439
        %v2496 = vmul.f32 %v2487, %v1435
        %v2497 = vmul.f32 %v2491, %v1439
        %v2498 = vmul.f32 %v2488, %v1435
        %v2499 = vmul.f32 %v2492, %v1439
        %v2500 = vmul.f32 %v2489, %v1435
        %v2501 = vmul.f32 %v2493, %v1439
        %s2502 = scalar_lea.vmem %s535, 128
        %v2503 = vld [vmem:[%s2502] sm:$0xf]
        %v2504 = vld [vmem:[%s2502 + $0x4] sm:$0xf]
        %v2505 = vld [vmem:[%s2502 + $0x8] sm:$0xf]
        %v2506 = vld [vmem:[%s2502 + $0xc] sm:$0xf]
        %v2507 = vpack.c.bf16 %v2496, %v2494
        %v2508 = vpack.c.bf16 %v2497, %v2495
        %v2509 = vpack.c.bf16 %v2500, %v2498
        %v2510 = vpack.c.bf16 %v2501, %v2499
        %v2515 = vunpack.c.l.b16 %v2503
        %v2516 = vunpack.c.l.b16 %v2504
        %v2517 = vunpack.c.l.b16 %v2505
        %v2518 = vunpack.c.l.b16 %v2506
        %v2519 = vpack.c.b16 %v2516, %v2515
        %v2520 = vpack.c.b16 %v2518, %v2517
        %v2522 = vsel %vm1665, %v2519, 0
        %v2525 = vsel %vm1665, %v2520, 0
        %2527 = vmatprep.subr.bf16.mxu0 0
        %2528 = vmatpush1.bf16.msra.mxu0 0
        %2529 = vmatprep.subr.bf16.mxu0 0
        %2530 = vmatpush1.bf16.msra.mxu0 0
        %2531 = vmatprep.subr.bf16.mxu0 0
        %2532 = vmatpush1.bf16.msra.mxu0 0
        %2533 = vmatprep.subr.bf16.mxu0 0
        %2534 = vmatpush1.bf16.msra.mxu0 0
        %2535 = vmatprep.subr.bf16.mxu0 0
        %2536 = vmatpush1.bf16.msra.mxu0 0
        %2537 = vmatprep.subr.bf16.mxu0 0
        %2538 = vmatpush1.bf16.msra.mxu0 0
        %2539 = vmatprep.subr.bf16.mxu0 %v2510
        %2540 = vmatpush1.bf16.msra.mxu0 %v2509
        %2541 = vmatprep.subr.bf16.mxu0 %v2508
        %2542 = vmatpush1.bf16.msra.mxu0 %v2507
        %2543 = vmatprep.subr.bf16.mxu0 0
        %2544 = vmatpush2.bf16.msra.mxu0 0
        %2545 = vmatprep.subr.bf16.mxu0 0
        %2546 = vmatpush2.bf16.msra.mxu0 0
        %2547 = vmatprep.subr.bf16.mxu0 0
        %2548 = vmatpush2.bf16.msra.mxu0 0
        %2549 = vmatprep.subr.bf16.mxu0 0
        %2550 = vmatpush2.bf16.msra.mxu0 0
        %2551 = vmatprep.subr.bf16.mxu0 0
        %2552 = vmatpush2.bf16.msra.mxu0 0
        %2553 = vmatprep.subr.bf16.mxu0 0
        %2554 = vmatpush2.bf16.msra.mxu0 0
        %2555 = vmatprep.subr.bf16.mxu0 0
        %2556 = vmatpush2.bf16.msra.mxu0 0
        %2557 = vmatprep.subr.bf16.mxu0 0
        %2558 = vmatpush2.bf16.msra.mxu0 0
        %2559 = vmatprep.mubr.bf16.mxu0 0
        %2560 = vmatmul.mubr.bf16.gmra.mxu0 %v2522
        %v2561 = vpop.f32.mrf.mxu0
        %v2562 = vadd.f32 0.0, %v2561
        %v2563 = vpop.f32.mrf.mxu0
        %v2564 = vadd.f32 0.0, %v2563
        %v2565 = vpop.f32.mrf.mxu0
        %v2566 = vadd.f32 0.0, %v2565
        %v2567 = vpop.f32.mrf.mxu0
        %v2568 = vadd.f32 0.0, %v2567
        %2569 = vmatprep.mubr.bf16.mxu0 0
        %2570 = vmatmul.mubr.bf16.gmra.mxu0 %v2525
        %v2571 = vpop.f32.mrf.mxu0
        %v2572 = vadd.f32 0.0, %v2571
        %v2573 = vpop.f32.mrf.mxu0
        %v2574 = vadd.f32 0.0, %v2573
        %v2575 = vpop.f32.mrf.mxu0
        %v2576 = vadd.f32 0.0, %v2575
        %v2577 = vpop.f32.mrf.mxu0
        %v2578 = vadd.f32 0.0, %v2577
        %2579 = vdwg.mxu0
        %v2580 = vadd.f32 %v2462, %v2562
        %v2581 = vadd.f32 %v2463, %v2564
        %v2582 = vadd.f32 %v2464, %v2566
        %v2583 = vadd.f32 %v2465, %v2568
        %v2584 = vadd.f32 %v2466, %v2572
        %v2585 = vadd.f32 %v2467, %v2574
        %v2586 = vadd.f32 %v2468, %v2576
        %v2587 = vadd.f32 %v2469, %v2578
        %v2588 = vld [vmem:[%s540] sm:$0xff]
        %v2589 = vld [vmem:[%s540 + $0x8] sm:$0xff]
        %v2590 = vld [vmem:[%s540 + $0x10] sm:$0xff]
        %v2591 = vld [vmem:[%s540 + $0x18] sm:$0xff]
        %2593 = vset.pattern.permute.xlu0 0
        %2594 = vperm.xlu0 %2593, %v2588
        %v2595 = vpop.permute.xlu0 %2594
        %2598 = vset.pattern.permute.xlu0 0
        %2599 = vperm.xlu0 %2598, %v2589
        %v2600 = vpop.permute.xlu0 %2599
        %2603 = vset.pattern.permute.xlu0 0
        %2604 = vperm.xlu0 %2603, %v2590
        %v2605 = vpop.permute.xlu0 %2604
        %2608 = vset.pattern.permute.xlu0 0
        %2609 = vperm.xlu0 %2608, %v2591
        %v2610 = vpop.permute.xlu0 %2609
        %v2612 = vadd.f32 %v2580, %v2595
        %v2613 = vadd.f32 %v2581, %v2595
        %v2614 = vadd.f32 %v2582, %v2600
        %v2615 = vadd.f32 %v2583, %v2600
        %v2616 = vadd.f32 %v2584, %v2605
        %v2617 = vadd.f32 %v2585, %v2605
        %v2618 = vadd.f32 %v2586, %v2610
        %v2619 = vadd.f32 %v2587, %v2610
        %v2620 = vmax.f32 %v2612, 0.0
        %v2621 = vmax.f32 %v2613, 0.0
        %v2622 = vmax.f32 %v2614, 0.0
        %v2623 = vmax.f32 %v2615, 0.0
        %v2624 = vmax.f32 %v2616, 0.0
        %v2625 = vmax.f32 %v2617, 0.0
        %v2626 = vmax.f32 %v2618, 0.0
        %v2627 = vmax.f32 %v2619, 0.0
        %2628 = vrot.lane.b32.xlu0 %v2620, 17
        %v2629 = vpop.permute.xlu0 %2628
        %2630 = vrot.lane.b32.xlu0 %v2622, 17
        %v2631 = vpop.permute.xlu0 %2630
        %2632 = vrot.lane.b32.xlu0 %v2624, 17
        %v2633 = vpop.permute.xlu0 %2632
        %2634 = vrot.lane.b32.xlu0 %v2626, 17
        %v2635 = vpop.permute.xlu0 %2634
        %2636 = vrot.lane.b32.xlu0 %v2621, 17
        %v2637 = vpop.permute.xlu0 %2636
        %2638 = vrot.lane.b32.xlu0 %v2623, 17
        %v2639 = vpop.permute.xlu0 %2638
        %2640 = vrot.lane.b32.xlu0 %v2625, 17
        %v2641 = vpop.permute.xlu0 %2640
        %2642 = vrot.lane.b32.xlu0 %v2627, 17
        %v2643 = vpop.permute.xlu0 %2642
        %v2644 = vsel %vm568, %v2629, %v2637
        %v2645 = vsel %vm568, %v2631, %v2639
        %v2646 = vsel %vm568, %v2633, %v2641
        %v2647 = vsel %vm568, %v2635, %v2643
        %v2648 = vsel %vm568, %v2637, %v2629
        %v2649 = vsel %vm568, %v2639, %v2631
        %v2650 = vsel %vm568, %v2641, %v2633
        %v2651 = vsel %vm568, %v2643, %v2635
        %v2652 = vmul.f32 %v2648, %v576
        %v2653 = vmul.f32 %v2644, %v580
        %v2654 = vmul.f32 %v2649, %v576
        %v2655 = vmul.f32 %v2645, %v580
        %v2656 = vmul.f32 %v2650, %v576
        %v2657 = vmul.f32 %v2646, %v580
        %v2658 = vmul.f32 %v2651, %v576
        %v2659 = vmul.f32 %v2647, %v580
        %v2660 = vld [vmem:[%s545] sm:$0x3]
        %v2661 = vpack.c.bf16 %v2654, %v2652
        %v2662 = vpack.c.bf16 %v2655, %v2653
        %v2663 = vpack.c.bf16 %v2658, %v2656
        %v2664 = vpack.c.bf16 %v2659, %v2657
        %2665 = vrot.lane.b32.xlu0 %v2620, 16
        %v2666 = vpop.permute.xlu0 %2665
        %2667 = vrot.lane.b32.xlu0 %v2622, 16
        %v2668 = vpop.permute.xlu0 %2667
        %2669 = vrot.lane.b32.xlu0 %v2624, 16
        %v2670 = vpop.permute.xlu0 %2669
        %2671 = vrot.lane.b32.xlu0 %v2626, 16
        %v2672 = vpop.permute.xlu0 %2671
        %2673 = vrot.lane.b32.xlu0 %v2621, 16
        %v2674 = vpop.permute.xlu0 %2673
        %2675 = vrot.lane.b32.xlu0 %v2623, 16
        %v2676 = vpop.permute.xlu0 %2675
        %2677 = vrot.lane.b32.xlu0 %v2625, 16
        %v2678 = vpop.permute.xlu0 %2677
        %2679 = vrot.lane.b32.xlu0 %v2627, 16
        %v2680 = vpop.permute.xlu0 %2679
        %v2681 = vsel %vm595, %v2666, %v2674
        %v2682 = vsel %vm595, %v2668, %v2676
        %v2683 = vsel %vm595, %v2670, %v2678
        %v2684 = vsel %vm595, %v2672, %v2680
        %v2685 = vsel %vm595, %v2674, %v2666
        %v2686 = vsel %vm595, %v2676, %v2668
        %v2687 = vsel %vm595, %v2678, %v2670
        %v2688 = vsel %vm595, %v2680, %v2672
        %v2689 = vmul.f32 %v2685, %v604
        %v2690 = vmul.f32 %v2681, %v608
        %v2691 = vmul.f32 %v2686, %v604
        %v2692 = vmul.f32 %v2682, %v608
        %v2693 = vmul.f32 %v2687, %v604
        %v2694 = vmul.f32 %v2683, %v608
        %v2695 = vmul.f32 %v2688, %v604
        %v2696 = vmul.f32 %v2684, %v608
        %s2697 = scalar_lea.vmem %s545, 2
        %v2698 = vld [vmem:[%s2697] sm:$0x3]
        %v2699 = vpack.c.bf16 %v2691, %v2689
        %v2700 = vpack.c.bf16 %v2692, %v2690
        %v2701 = vpack.c.bf16 %v2695, %v2693
        %v2702 = vpack.c.bf16 %v2696, %v2694
        %v2704 = vsel %vm1665, %v2698, 0
        %2706 = vmatprep.subr.bf16.mxu0 0
        %2707 = vmatpush1.bf16.msra.mxu0 0
        %2708 = vmatprep.subr.bf16.mxu0 0
        %2709 = vmatpush1.bf16.msra.mxu0 0
        %2710 = vmatprep.subr.bf16.mxu0 0
        %2711 = vmatpush1.bf16.msra.mxu0 0
        %2712 = vmatprep.subr.bf16.mxu0 0
        %2713 = vmatpush1.bf16.msra.mxu0 0
        %2714 = vmatprep.subr.bf16.mxu0 0
        %2715 = vmatpush1.bf16.msra.mxu0 0
        %2716 = vmatprep.subr.bf16.mxu0 0
        %2717 = vmatpush1.bf16.msra.mxu0 0
        %2718 = vmatprep.subr.bf16.mxu0 %v2702
        %2719 = vmatpush1.bf16.msra.mxu0 %v2701
        %2720 = vmatprep.subr.bf16.mxu0 %v2700
        %2721 = vmatpush1.bf16.msra.mxu0 %v2699
        %2722 = vmatprep.subr.bf16.mxu0 0
        %2723 = vmatpush2.bf16.msra.mxu0 0
        %2724 = vmatprep.subr.bf16.mxu0 0
        %2725 = vmatpush2.bf16.msra.mxu0 0
        %2726 = vmatprep.subr.bf16.mxu0 0
        %2727 = vmatpush2.bf16.msra.mxu0 0
        %2728 = vmatprep.subr.bf16.mxu0 0
        %2729 = vmatpush2.bf16.msra.mxu0 0
        %2730 = vmatprep.subr.bf16.mxu0 0
        %2731 = vmatpush2.bf16.msra.mxu0 0
        %2732 = vmatprep.subr.bf16.mxu0 0
        %2733 = vmatpush2.bf16.msra.mxu0 0
        %2734 = vmatprep.subr.bf16.mxu0 0
        %2735 = vmatpush2.bf16.msra.mxu0 0
        %2736 = vmatprep.subr.bf16.mxu0 0
        %2737 = vmatpush2.bf16.msra.mxu0 0
        %2738 = vmatprep.mubr.bf16.mxu0 0
        %2739 = vmatmul.mubr.bf16.gmra.mxu0 %v2704
        %v2740 = vpop.f32.mrf.mxu0
        %v2741 = vadd.f32 0.0, %v2740
        %v2742 = vpop.f32.mrf.mxu0
        %v2743 = vadd.f32 0.0, %v2742
        %v2744 = vpop.f32.mrf.mxu0
        %v2745 = vpop.f32.mrf.mxu0
        %2746 = vdwg.mxu0
        %v2748 = vsel %vm1665, %v2660, 0
        %2750 = vmatprep.subr.bf16.mxu0 0
        %2751 = vmatpush1.bf16.msra.mxu0 0
        %2752 = vmatprep.subr.bf16.mxu0 0
        %2753 = vmatpush1.bf16.msra.mxu0 0
        %2754 = vmatprep.subr.bf16.mxu0 0
        %2755 = vmatpush1.bf16.msra.mxu0 0
        %2756 = vmatprep.subr.bf16.mxu0 0
        %2757 = vmatpush1.bf16.msra.mxu0 0
        %2758 = vmatprep.subr.bf16.mxu0 0
        %2759 = vmatpush1.bf16.msra.mxu0 0
        %2760 = vmatprep.subr.bf16.mxu0 0
        %2761 = vmatpush1.bf16.msra.mxu0 0
        %2762 = vmatprep.subr.bf16.mxu0 %v2664
        %2763 = vmatpush1.bf16.msra.mxu0 %v2663
        %2764 = vmatprep.subr.bf16.mxu0 %v2662
        %2765 = vmatpush1.bf16.msra.mxu0 %v2661
        %2766 = vmatprep.subr.bf16.mxu0 0
        %2767 = vmatpush2.bf16.msra.mxu0 0
        %2768 = vmatprep.subr.bf16.mxu0 0
        %2769 = vmatpush2.bf16.msra.mxu0 0
        %2770 = vmatprep.subr.bf16.mxu0 0
        %2771 = vmatpush2.bf16.msra.mxu0 0
        %2772 = vmatprep.subr.bf16.mxu0 0
        %2773 = vmatpush2.bf16.msra.mxu0 0
        %2774 = vmatprep.subr.bf16.mxu0 0
        %2775 = vmatpush2.bf16.msra.mxu0 0
        %2776 = vmatprep.subr.bf16.mxu0 0
        %2777 = vmatpush2.bf16.msra.mxu0 0
        %2778 = vmatprep.subr.bf16.mxu0 0
        %2779 = vmatpush2.bf16.msra.mxu0 0
        %2780 = vmatprep.subr.bf16.mxu0 0
        %2781 = vmatpush2.bf16.msra.mxu0 0
        %2782 = vmatprep.mubr.bf16.mxu0 0
        %2783 = vmatmul.mubr.bf16.gmra.mxu0 %v2748
        %v2784 = vpop.f32.mrf.mxu0
        %v2785 = vadd.f32 %v2741, %v2784
        %v2786 = vpop.f32.mrf.mxu0
        %v2787 = vadd.f32 %v2743, %v2786
        %v2788 = vpop.f32.mrf.mxu0
        %v2789 = vpop.f32.mrf.mxu0
        %2790 = vdwg.mxu0
        %2791 = vrot.lane.b32.xlu0 %v2620, 15
        %v2792 = vpop.permute.xlu0 %2791
        %2793 = vrot.lane.b32.xlu0 %v2622, 15
        %v2794 = vpop.permute.xlu0 %2793
        %2795 = vrot.lane.b32.xlu0 %v2624, 15
        %v2796 = vpop.permute.xlu0 %2795
        %2797 = vrot.lane.b32.xlu0 %v2626, 15
        %v2798 = vpop.permute.xlu0 %2797
        %2799 = vrot.lane.b32.xlu0 %v2621, 15
        %v2800 = vpop.permute.xlu0 %2799
        %2801 = vrot.lane.b32.xlu0 %v2623, 15
        %v2802 = vpop.permute.xlu0 %2801
        %2803 = vrot.lane.b32.xlu0 %v2625, 15
        %v2804 = vpop.permute.xlu0 %2803
        %2805 = vrot.lane.b32.xlu0 %v2627, 15
        %v2806 = vpop.permute.xlu0 %2805
        %v2807 = vsel %vm776, %v2792, %v2800
        %v2808 = vsel %vm776, %v2794, %v2802
        %v2809 = vsel %vm776, %v2796, %v2804
        %v2810 = vsel %vm776, %v2798, %v2806
        %v2811 = vsel %vm776, %v2800, %v2792
        %v2812 = vsel %vm776, %v2802, %v2794
        %v2813 = vsel %vm776, %v2804, %v2796
        %v2814 = vsel %vm776, %v2806, %v2798
        %v2815 = vmul.f32 %v2811, %v785
        %v2816 = vmul.f32 %v2807, %v789
        %v2817 = vmul.f32 %v2812, %v785
        %v2818 = vmul.f32 %v2808, %v789
        %v2819 = vmul.f32 %v2813, %v785
        %v2820 = vmul.f32 %v2809, %v789
        %v2821 = vmul.f32 %v2814, %v785
        %v2822 = vmul.f32 %v2810, %v789
        %s2823 = scalar_lea.vmem %s545, 4
        %v2824 = vld [vmem:[%s2823] sm:$0x3]
        %v2825 = vpack.c.bf16 %v2817, %v2815
        %v2826 = vpack.c.bf16 %v2818, %v2816
        %v2827 = vpack.c.bf16 %v2821, %v2819
        %v2828 = vpack.c.bf16 %v2822, %v2820
        %v2830 = vsel %vm1665, %v2824, 0
        %2832 = vmatprep.subr.bf16.mxu0 0
        %2833 = vmatpush1.bf16.msra.mxu0 0
        %2834 = vmatprep.subr.bf16.mxu0 0
        %2835 = vmatpush1.bf16.msra.mxu0 0
        %2836 = vmatprep.subr.bf16.mxu0 0
        %2837 = vmatpush1.bf16.msra.mxu0 0
        %2838 = vmatprep.subr.bf16.mxu0 0
        %2839 = vmatpush1.bf16.msra.mxu0 0
        %2840 = vmatprep.subr.bf16.mxu0 0
        %2841 = vmatpush1.bf16.msra.mxu0 0
        %2842 = vmatprep.subr.bf16.mxu0 0
        %2843 = vmatpush1.bf16.msra.mxu0 0
        %2844 = vmatprep.subr.bf16.mxu0 %v2828
        %2845 = vmatpush1.bf16.msra.mxu0 %v2827
        %2846 = vmatprep.subr.bf16.mxu0 %v2826
        %2847 = vmatpush1.bf16.msra.mxu0 %v2825
        %2848 = vmatprep.subr.bf16.mxu0 0
        %2849 = vmatpush2.bf16.msra.mxu0 0
        %2850 = vmatprep.subr.bf16.mxu0 0
        %2851 = vmatpush2.bf16.msra.mxu0 0
        %2852 = vmatprep.subr.bf16.mxu0 0
        %2853 = vmatpush2.bf16.msra.mxu0 0
        %2854 = vmatprep.subr.bf16.mxu0 0
        %2855 = vmatpush2.bf16.msra.mxu0 0
        %2856 = vmatprep.subr.bf16.mxu0 0
        %2857 = vmatpush2.bf16.msra.mxu0 0
        %2858 = vmatprep.subr.bf16.mxu0 0
        %2859 = vmatpush2.bf16.msra.mxu0 0
        %2860 = vmatprep.subr.bf16.mxu0 0
        %2861 = vmatpush2.bf16.msra.mxu0 0
        %2862 = vmatprep.subr.bf16.mxu0 0
        %2863 = vmatpush2.bf16.msra.mxu0 0
        %2864 = vmatprep.mubr.bf16.mxu0 0
        %2865 = vmatmul.mubr.bf16.gmra.mxu0 %v2830
        %v2866 = vpop.f32.mrf.mxu0
        %v2867 = vadd.f32 0.0, %v2866
        %v2868 = vpop.f32.mrf.mxu0
        %v2869 = vadd.f32 0.0, %v2868
        %v2870 = vpop.f32.mrf.mxu0
        %v2871 = vpop.f32.mrf.mxu0
        %2872 = vdwg.mxu0
        %v2873 = vadd.f32 %v2785, %v2867
        %v2874 = vadd.f32 %v2787, %v2869
        %2875 = vrot.lane.b32.xlu0 %v2620, 1
        %v2876 = vpop.permute.xlu0 %2875
        %2877 = vrot.lane.b32.xlu0 %v2622, 1
        %v2878 = vpop.permute.xlu0 %2877
        %2879 = vrot.lane.b32.xlu0 %v2624, 1
        %v2880 = vpop.permute.xlu0 %2879
        %2881 = vrot.lane.b32.xlu0 %v2626, 1
        %v2882 = vpop.permute.xlu0 %2881
        %2883 = vrot.lane.b32.xlu0 %v2621, 1
        %v2884 = vpop.permute.xlu0 %2883
        %2885 = vrot.lane.b32.xlu0 %v2623, 1
        %v2886 = vpop.permute.xlu0 %2885
        %2887 = vrot.lane.b32.xlu0 %v2625, 1
        %v2888 = vpop.permute.xlu0 %2887
        %2889 = vrot.lane.b32.xlu0 %v2627, 1
        %v2890 = vpop.permute.xlu0 %2889
        %v2891 = vsel %vm888, %v2876, %v2884
        %v2892 = vsel %vm888, %v2878, %v2886
        %v2893 = vsel %vm888, %v2880, %v2888
        %v2894 = vsel %vm888, %v2882, %v2890
        %v2895 = vsel %vm888, %v2884, %v2876
        %v2896 = vsel %vm888, %v2886, %v2878
        %v2897 = vsel %vm888, %v2888, %v2880
        %v2898 = vsel %vm888, %v2890, %v2882
        %v2899 = vmul.f32 %v2895, %v897
        %v2900 = vmul.f32 %v2891, %v901
        %v2901 = vmul.f32 %v2896, %v897
        %v2902 = vmul.f32 %v2892, %v901
        %v2903 = vmul.f32 %v2897, %v897
        %v2904 = vmul.f32 %v2893, %v901
        %v2905 = vmul.f32 %v2898, %v897
        %v2906 = vmul.f32 %v2894, %v901
        %s2907 = scalar_lea.vmem %s545, 6
        %v2908 = vld [vmem:[%s2907] sm:$0x3]
        %v2909 = vpack.c.bf16 %v2901, %v2899
        %v2910 = vpack.c.bf16 %v2902, %v2900
        %v2911 = vpack.c.bf16 %v2905, %v2903
        %v2912 = vpack.c.bf16 %v2906, %v2904
        %v2914 = vsel %vm1665, %v2908, 0
        %2916 = vmatprep.subr.bf16.mxu0 0
        %2917 = vmatpush1.bf16.msra.mxu0 0
        %2918 = vmatprep.subr.bf16.mxu0 0
        %2919 = vmatpush1.bf16.msra.mxu0 0
        %2920 = vmatprep.subr.bf16.mxu0 0
        %2921 = vmatpush1.bf16.msra.mxu0 0
        %2922 = vmatprep.subr.bf16.mxu0 0
        %2923 = vmatpush1.bf16.msra.mxu0 0
        %2924 = vmatprep.subr.bf16.mxu0 0
        %2925 = vmatpush1.bf16.msra.mxu0 0
        %2926 = vmatprep.subr.bf16.mxu0 0
        %2927 = vmatpush1.bf16.msra.mxu0 0
        %2928 = vmatprep.subr.bf16.mxu0 %v2912
        %2929 = vmatpush1.bf16.msra.mxu0 %v2911
        %2930 = vmatprep.subr.bf16.mxu0 %v2910
        %2931 = vmatpush1.bf16.msra.mxu0 %v2909
        %2932 = vmatprep.subr.bf16.mxu0 0
        %2933 = vmatpush2.bf16.msra.mxu0 0
        %2934 = vmatprep.subr.bf16.mxu0 0
        %2935 = vmatpush2.bf16.msra.mxu0 0
        %2936 = vmatprep.subr.bf16.mxu0 0
        %2937 = vmatpush2.bf16.msra.mxu0 0
        %2938 = vmatprep.subr.bf16.mxu0 0
        %2939 = vmatpush2.bf16.msra.mxu0 0
        %2940 = vmatprep.subr.bf16.mxu0 0
        %2941 = vmatpush2.bf16.msra.mxu0 0
        %2942 = vmatprep.subr.bf16.mxu0 0
        %2943 = vmatpush2.bf16.msra.mxu0 0
        %2944 = vmatprep.subr.bf16.mxu0 0
        %2945 = vmatpush2.bf16.msra.mxu0 0
        %2946 = vmatprep.subr.bf16.mxu0 0
        %2947 = vmatpush2.bf16.msra.mxu0 0
        %2948 = vmatprep.mubr.bf16.mxu0 0
        %2949 = vmatmul.mubr.bf16.gmra.mxu0 %v2914
        %v2950 = vpop.f32.mrf.mxu0
        %v2951 = vadd.f32 0.0, %v2950
        %v2952 = vpop.f32.mrf.mxu0
        %v2953 = vadd.f32 0.0, %v2952
        %v2954 = vpop.f32.mrf.mxu0
        %v2955 = vpop.f32.mrf.mxu0
        %2956 = vdwg.mxu0
        %v2957 = vadd.f32 %v2873, %v2951
        %v2958 = vadd.f32 %v2874, %v2953
        %s2959 = scalar_lea.vmem %s545, 8
        %v2960 = vld [vmem:[%s2959] sm:$0x3]
        %v2961 = vpack.c.bf16 %v2622, %v2620
        %v2962 = vpack.c.bf16 %v2623, %v2621
        %v2963 = vpack.c.bf16 %v2626, %v2624
        %v2964 = vpack.c.bf16 %v2627, %v2625
        %v2966 = vsel %vm1665, %v2960, 0
        %2968 = vmatprep.subr.bf16.mxu0 0
        %2969 = vmatpush1.bf16.msra.mxu0 0
        %2970 = vmatprep.subr.bf16.mxu0 0
        %2971 = vmatpush1.bf16.msra.mxu0 0
        %2972 = vmatprep.subr.bf16.mxu0 0
        %2973 = vmatpush1.bf16.msra.mxu0 0
        %2974 = vmatprep.subr.bf16.mxu0 0
        %2975 = vmatpush1.bf16.msra.mxu0 0
        %2976 = vmatprep.subr.bf16.mxu0 0
        %2977 = vmatpush1.bf16.msra.mxu0 0
        %2978 = vmatprep.subr.bf16.mxu0 0
        %2979 = vmatpush1.bf16.msra.mxu0 0
        %2980 = vmatprep.subr.bf16.mxu0 %v2964
        %2981 = vmatpush1.bf16.msra.mxu0 %v2963
        %2982 = vmatprep.subr.bf16.mxu0 %v2962
        %2983 = vmatpush1.bf16.msra.mxu0 %v2961
        %2984 = vmatprep.subr.bf16.mxu0 0
        %2985 = vmatpush2.bf16.msra.mxu0 0
        %2986 = vmatprep.subr.bf16.mxu0 0
        %2987 = vmatpush2.bf16.msra.mxu0 0
        %2988 = vmatprep.subr.bf16.mxu0 0
        %2989 = vmatpush2.bf16.msra.mxu0 0
        %2990 = vmatprep.subr.bf16.mxu0 0
        %2991 = vmatpush2.bf16.msra.mxu0 0
        %2992 = vmatprep.subr.bf16.mxu0 0
        %2993 = vmatpush2.bf16.msra.mxu0 0
        %2994 = vmatprep.subr.bf16.mxu0 0
        %2995 = vmatpush2.bf16.msra.mxu0 0
        %2996 = vmatprep.subr.bf16.mxu0 0
        %2997 = vmatpush2.bf16.msra.mxu0 0
        %2998 = vmatprep.subr.bf16.mxu0 0
        %2999 = vmatpush2.bf16.msra.mxu0 0
        %3000 = vmatprep.mubr.bf16.mxu0 0
        %3001 = vmatmul.mubr.bf16.gmra.mxu0 %v2966
        %v3002 = vpop.f32.mrf.mxu0
        %v3003 = vadd.f32 0.0, %v3002
        %v3004 = vpop.f32.mrf.mxu0
        %v3005 = vadd.f32 0.0, %v3004
        %v3006 = vpop.f32.mrf.mxu0
        %v3007 = vpop.f32.mrf.mxu0
        %3008 = vdwg.mxu0
        %v3009 = vadd.f32 %v2957, %v3003
        %v3010 = vadd.f32 %v2958, %v3005
        %3011 = vrot.lane.b32.xlu0 %v2620, 127
        %v3012 = vpop.permute.xlu0 %3011
        %3013 = vrot.lane.b32.xlu0 %v2622, 127
        %v3014 = vpop.permute.xlu0 %3013
        %3015 = vrot.lane.b32.xlu0 %v2624, 127
        %v3016 = vpop.permute.xlu0 %3015
        %3017 = vrot.lane.b32.xlu0 %v2626, 127
        %v3018 = vpop.permute.xlu0 %3017
        %3019 = vrot.lane.b32.xlu0 %v2621, 127
        %v3020 = vpop.permute.xlu0 %3019
        %3021 = vrot.lane.b32.xlu0 %v2623, 127
        %v3022 = vpop.permute.xlu0 %3021
        %3023 = vrot.lane.b32.xlu0 %v2625, 127
        %v3024 = vpop.permute.xlu0 %3023
        %3025 = vrot.lane.b32.xlu0 %v2627, 127
        %v3026 = vpop.permute.xlu0 %3025
        %v3027 = vsel %vm1090, %v3012, %v3020
        %v3028 = vsel %vm1090, %v3014, %v3022
        %v3029 = vsel %vm1090, %v3016, %v3024
        %v3030 = vsel %vm1090, %v3018, %v3026
        %v3031 = vsel %vm1090, %v3020, %v3012
        %v3032 = vsel %vm1090, %v3022, %v3014
        %v3033 = vsel %vm1090, %v3024, %v3016
        %v3034 = vsel %vm1090, %v3026, %v3018
        %v3035 = vmul.f32 %v3027, %v1099
        %v3036 = vmul.f32 %v3031, %v1103
        %v3037 = vmul.f32 %v3028, %v1099
        %v3038 = vmul.f32 %v3032, %v1103
        %v3039 = vmul.f32 %v3029, %v1099
        %v3040 = vmul.f32 %v3033, %v1103
        %v3041 = vmul.f32 %v3030, %v1099
        %v3042 = vmul.f32 %v3034, %v1103
        %s3043 = scalar_lea.vmem %s545, 10
        %v3044 = vld [vmem:[%s3043] sm:$0x3]
        %v3045 = vpack.c.bf16 %v3037, %v3035
        %v3046 = vpack.c.bf16 %v3038, %v3036
        %v3047 = vpack.c.bf16 %v3041, %v3039
        %v3048 = vpack.c.bf16 %v3042, %v3040
        %v3050 = vsel %vm1665, %v3044, 0
        %3052 = vmatprep.subr.bf16.mxu0 0
        %3053 = vmatpush1.bf16.msra.mxu0 0
        %3054 = vmatprep.subr.bf16.mxu0 0
        %3055 = vmatpush1.bf16.msra.mxu0 0
        %3056 = vmatprep.subr.bf16.mxu0 0
        %3057 = vmatpush1.bf16.msra.mxu0 0
        %3058 = vmatprep.subr.bf16.mxu0 0
        %3059 = vmatpush1.bf16.msra.mxu0 0
        %3060 = vmatprep.subr.bf16.mxu0 0
        %3061 = vmatpush1.bf16.msra.mxu0 0
        %3062 = vmatprep.subr.bf16.mxu0 0
        %3063 = vmatpush1.bf16.msra.mxu0 0
        %3064 = vmatprep.subr.bf16.mxu0 %v3048
        %3065 = vmatpush1.bf16.msra.mxu0 %v3047
        %3066 = vmatprep.subr.bf16.mxu0 %v3046
        %3067 = vmatpush1.bf16.msra.mxu0 %v3045
        %3068 = vmatprep.subr.bf16.mxu0 0
        %3069 = vmatpush2.bf16.msra.mxu0 0
        %3070 = vmatprep.subr.bf16.mxu0 0
        %3071 = vmatpush2.bf16.msra.mxu0 0
        %3072 = vmatprep.subr.bf16.mxu0 0
        %3073 = vmatpush2.bf16.msra.mxu0 0
        %3074 = vmatprep.subr.bf16.mxu0 0
        %3075 = vmatpush2.bf16.msra.mxu0 0
        %3076 = vmatprep.subr.bf16.mxu0 0
        %3077 = vmatpush2.bf16.msra.mxu0 0
        %3078 = vmatprep.subr.bf16.mxu0 0
        %3079 = vmatpush2.bf16.msra.mxu0 0
        %3080 = vmatprep.subr.bf16.mxu0 0
        %3081 = vmatpush2.bf16.msra.mxu0 0
        %3082 = vmatprep.subr.bf16.mxu0 0
        %3083 = vmatpush2.bf16.msra.mxu0 0
        %3084 = vmatprep.mubr.bf16.mxu0 0
        %3085 = vmatmul.mubr.bf16.gmra.mxu0 %v3050
        %v3086 = vpop.f32.mrf.mxu0
        %v3087 = vadd.f32 0.0, %v3086
        %v3088 = vpop.f32.mrf.mxu0
        %v3089 = vadd.f32 0.0, %v3088
        %v3090 = vpop.f32.mrf.mxu0
        %v3091 = vpop.f32.mrf.mxu0
        %3092 = vdwg.mxu0
        %v3093 = vadd.f32 %v3009, %v3087
        %v3094 = vadd.f32 %v3010, %v3089
        %3095 = vrot.lane.b32.xlu0 %v2620, 113
        %v3096 = vpop.permute.xlu0 %3095
        %3097 = vrot.lane.b32.xlu0 %v2622, 113
        %v3098 = vpop.permute.xlu0 %3097
        %3099 = vrot.lane.b32.xlu0 %v2624, 113
        %v3100 = vpop.permute.xlu0 %3099
        %3101 = vrot.lane.b32.xlu0 %v2626, 113
        %v3102 = vpop.permute.xlu0 %3101
        %3103 = vrot.lane.b32.xlu0 %v2621, 113
        %v3104 = vpop.permute.xlu0 %3103
        %3105 = vrot.lane.b32.xlu0 %v2623, 113
        %v3106 = vpop.permute.xlu0 %3105
        %3107 = vrot.lane.b32.xlu0 %v2625, 113
        %v3108 = vpop.permute.xlu0 %3107
        %3109 = vrot.lane.b32.xlu0 %v2627, 113
        %v3110 = vpop.permute.xlu0 %3109
        %v3111 = vsel %vm1202, %v3096, %v3104
        %v3112 = vsel %vm1202, %v3098, %v3106
        %v3113 = vsel %vm1202, %v3100, %v3108
        %v3114 = vsel %vm1202, %v3102, %v3110
        %v3115 = vsel %vm1202, %v3104, %v3096
        %v3116 = vsel %vm1202, %v3106, %v3098
        %v3117 = vsel %vm1202, %v3108, %v3100
        %v3118 = vsel %vm1202, %v3110, %v3102
        %v3119 = vmul.f32 %v3111, %v1211
        %v3120 = vmul.f32 %v3115, %v1215
        %v3121 = vmul.f32 %v3112, %v1211
        %v3122 = vmul.f32 %v3116, %v1215
        %v3123 = vmul.f32 %v3113, %v1211
        %v3124 = vmul.f32 %v3117, %v1215
        %v3125 = vmul.f32 %v3114, %v1211
        %v3126 = vmul.f32 %v3118, %v1215
        %s3127 = scalar_lea.vmem %s545, 12
        %v3128 = vld [vmem:[%s3127] sm:$0x3]
        %v3129 = vpack.c.bf16 %v3121, %v3119
        %v3130 = vpack.c.bf16 %v3122, %v3120
        %v3131 = vpack.c.bf16 %v3125, %v3123
        %v3132 = vpack.c.bf16 %v3126, %v3124
        %v3134 = vsel %vm1665, %v3128, 0
        %3136 = vmatprep.subr.bf16.mxu0 0
        %3137 = vmatpush1.bf16.msra.mxu0 0
        %3138 = vmatprep.subr.bf16.mxu0 0
        %3139 = vmatpush1.bf16.msra.mxu0 0
        %3140 = vmatprep.subr.bf16.mxu0 0
        %3141 = vmatpush1.bf16.msra.mxu0 0
        %3142 = vmatprep.subr.bf16.mxu0 0
        %3143 = vmatpush1.bf16.msra.mxu0 0
        %3144 = vmatprep.subr.bf16.mxu0 0
        %3145 = vmatpush1.bf16.msra.mxu0 0
        %3146 = vmatprep.subr.bf16.mxu0 0
        %3147 = vmatpush1.bf16.msra.mxu0 0
        %3148 = vmatprep.subr.bf16.mxu0 %v3132
        %3149 = vmatpush1.bf16.msra.mxu0 %v3131
        %3150 = vmatprep.subr.bf16.mxu0 %v3130
        %3151 = vmatpush1.bf16.msra.mxu0 %v3129
        %3152 = vmatprep.subr.bf16.mxu0 0
        %3153 = vmatpush2.bf16.msra.mxu0 0
        %3154 = vmatprep.subr.bf16.mxu0 0
        %3155 = vmatpush2.bf16.msra.mxu0 0
        %3156 = vmatprep.subr.bf16.mxu0 0
        %3157 = vmatpush2.bf16.msra.mxu0 0
        %3158 = vmatprep.subr.bf16.mxu0 0
        %3159 = vmatpush2.bf16.msra.mxu0 0
        %3160 = vmatprep.subr.bf16.mxu0 0
        %3161 = vmatpush2.bf16.msra.mxu0 0
        %3162 = vmatprep.subr.bf16.mxu0 0
        %3163 = vmatpush2.bf16.msra.mxu0 0
        %3164 = vmatprep.subr.bf16.mxu0 0
        %3165 = vmatpush2.bf16.msra.mxu0 0
        %3166 = vmatprep.subr.bf16.mxu0 0
        %3167 = vmatpush2.bf16.msra.mxu0 0
        %3168 = vmatprep.mubr.bf16.mxu0 0
        %3169 = vmatmul.mubr.bf16.gmra.mxu0 %v3134
        %v3170 = vpop.f32.mrf.mxu0
        %v3171 = vadd.f32 0.0, %v3170
        %v3172 = vpop.f32.mrf.mxu0
        %v3173 = vadd.f32 0.0, %v3172
        %v3174 = vpop.f32.mrf.mxu0
        %v3175 = vpop.f32.mrf.mxu0
        %3176 = vdwg.mxu0
        %v3177 = vadd.f32 %v3093, %v3171
        %v3178 = vadd.f32 %v3094, %v3173
        %3179 = vrot.lane.b32.xlu0 %v2620, 112
        %v3180 = vpop.permute.xlu0 %3179
        %3181 = vrot.lane.b32.xlu0 %v2622, 112
        %v3182 = vpop.permute.xlu0 %3181
        %3183 = vrot.lane.b32.xlu0 %v2624, 112
        %v3184 = vpop.permute.xlu0 %3183
        %3185 = vrot.lane.b32.xlu0 %v2626, 112
        %v3186 = vpop.permute.xlu0 %3185
        %3187 = vrot.lane.b32.xlu0 %v2621, 112
        %v3188 = vpop.permute.xlu0 %3187
        %3189 = vrot.lane.b32.xlu0 %v2623, 112
        %v3190 = vpop.permute.xlu0 %3189
        %3191 = vrot.lane.b32.xlu0 %v2625, 112
        %v3192 = vpop.permute.xlu0 %3191
        %3193 = vrot.lane.b32.xlu0 %v2627, 112
        %v3194 = vpop.permute.xlu0 %3193
        %v3195 = vsel %vm1314, %v3180, %v3188
        %v3196 = vsel %vm1314, %v3182, %v3190
        %v3197 = vsel %vm1314, %v3184, %v3192
        %v3198 = vsel %vm1314, %v3186, %v3194
        %v3199 = vsel %vm1314, %v3188, %v3180
        %v3200 = vsel %vm1314, %v3190, %v3182
        %v3201 = vsel %vm1314, %v3192, %v3184
        %v3202 = vsel %vm1314, %v3194, %v3186
        %v3203 = vmul.f32 %v3195, %v1323
        %v3204 = vmul.f32 %v3199, %v1327
        %v3205 = vmul.f32 %v3196, %v1323
        %v3206 = vmul.f32 %v3200, %v1327
        %v3207 = vmul.f32 %v3197, %v1323
        %v3208 = vmul.f32 %v3201, %v1327
        %v3209 = vmul.f32 %v3198, %v1323
        %v3210 = vmul.f32 %v3202, %v1327
        %s3211 = scalar_lea.vmem %s545, 14
        %v3212 = vld [vmem:[%s3211] sm:$0x3]
        %v3213 = vpack.c.bf16 %v3205, %v3203
        %v3214 = vpack.c.bf16 %v3206, %v3204
        %v3215 = vpack.c.bf16 %v3209, %v3207
        %v3216 = vpack.c.bf16 %v3210, %v3208
        %v3218 = vsel %vm1665, %v3212, 0
        %3220 = vmatprep.subr.bf16.mxu0 0
        %3221 = vmatpush1.bf16.msra.mxu0 0
        %3222 = vmatprep.subr.bf16.mxu0 0
        %3223 = vmatpush1.bf16.msra.mxu0 0
        %3224 = vmatprep.subr.bf16.mxu0 0
        %3225 = vmatpush1.bf16.msra.mxu0 0
        %3226 = vmatprep.subr.bf16.mxu0 0
        %3227 = vmatpush1.bf16.msra.mxu0 0
        %3228 = vmatprep.subr.bf16.mxu0 0
        %3229 = vmatpush1.bf16.msra.mxu0 0
        %3230 = vmatprep.subr.bf16.mxu0 0
        %3231 = vmatpush1.bf16.msra.mxu0 0
        %3232 = vmatprep.subr.bf16.mxu0 %v3216
        %3233 = vmatpush1.bf16.msra.mxu0 %v3215
        %3234 = vmatprep.subr.bf16.mxu0 %v3214
        %3235 = vmatpush1.bf16.msra.mxu0 %v3213
        %3236 = vmatprep.subr.bf16.mxu0 0
        %3237 = vmatpush2.bf16.msra.mxu0 0
        %3238 = vmatprep.subr.bf16.mxu0 0
        %3239 = vmatpush2.bf16.msra.mxu0 0
        %3240 = vmatprep.subr.bf16.mxu0 0
        %3241 = vmatpush2.bf16.msra.mxu0 0
        %3242 = vmatprep.subr.bf16.mxu0 0
        %3243 = vmatpush2.bf16.msra.mxu0 0
        %3244 = vmatprep.subr.bf16.mxu0 0
        %3245 = vmatpush2.bf16.msra.mxu0 0
        %3246 = vmatprep.subr.bf16.mxu0 0
        %3247 = vmatpush2.bf16.msra.mxu0 0
        %3248 = vmatprep.subr.bf16.mxu0 0
        %3249 = vmatpush2.bf16.msra.mxu0 0
        %3250 = vmatprep.subr.bf16.mxu0 0
        %3251 = vmatpush2.bf16.msra.mxu0 0
        %3252 = vmatprep.mubr.bf16.mxu0 0
        %3253 = vmatmul.mubr.bf16.gmra.mxu0 %v3218
        %v3254 = vpop.f32.mrf.mxu0
        %v3255 = vadd.f32 0.0, %v3254
        %v3256 = vpop.f32.mrf.mxu0
        %v3257 = vadd.f32 0.0, %v3256
        %v3258 = vpop.f32.mrf.mxu0
        %v3259 = vpop.f32.mrf.mxu0
        %3260 = vdwg.mxu0
        %v3261 = vadd.f32 %v3177, %v3255
        %v3262 = vadd.f32 %v3178, %v3257
        %3263 = vrot.lane.b32.xlu0 %v2620, 111
        %v3264 = vpop.permute.xlu0 %3263
        %3265 = vrot.lane.b32.xlu0 %v2622, 111
        %v3266 = vpop.permute.xlu0 %3265
        %3267 = vrot.lane.b32.xlu0 %v2624, 111
        %v3268 = vpop.permute.xlu0 %3267
        %3269 = vrot.lane.b32.xlu0 %v2626, 111
        %v3270 = vpop.permute.xlu0 %3269
        %3271 = vrot.lane.b32.xlu0 %v2621, 111
        %v3272 = vpop.permute.xlu0 %3271
        %3273 = vrot.lane.b32.xlu0 %v2623, 111
        %v3274 = vpop.permute.xlu0 %3273
        %3275 = vrot.lane.b32.xlu0 %v2625, 111
        %v3276 = vpop.permute.xlu0 %3275
        %3277 = vrot.lane.b32.xlu0 %v2627, 111
        %v3278 = vpop.permute.xlu0 %3277
        %v3279 = vsel %vm1426, %v3264, %v3272
        %v3280 = vsel %vm1426, %v3266, %v3274
        %v3281 = vsel %vm1426, %v3268, %v3276
        %v3282 = vsel %vm1426, %v3270, %v3278
        %v3283 = vsel %vm1426, %v3272, %v3264
        %v3284 = vsel %vm1426, %v3274, %v3266
        %v3285 = vsel %vm1426, %v3276, %v3268
        %v3286 = vsel %vm1426, %v3278, %v3270
        %v3287 = vmul.f32 %v3279, %v1435
        %v3288 = vmul.f32 %v3283, %v1439
        %v3289 = vmul.f32 %v3280, %v1435
        %v3290 = vmul.f32 %v3284, %v1439
        %v3291 = vmul.f32 %v3281, %v1435
        %v3292 = vmul.f32 %v3285, %v1439
        %v3293 = vmul.f32 %v3282, %v1435
        %v3294 = vmul.f32 %v3286, %v1439
        %s3295 = scalar_lea.vmem %s545, 16
        %v3296 = vld [vmem:[%s3295] sm:$0x3]
        %v3297 = vpack.c.bf16 %v3289, %v3287
        %v3298 = vpack.c.bf16 %v3290, %v3288
        %v3299 = vpack.c.bf16 %v3293, %v3291
        %v3300 = vpack.c.bf16 %v3294, %v3292
        %v3302 = vsel %vm1665, %v3296, 0
        %3304 = vmatprep.subr.bf16.mxu0 0
        %3305 = vmatpush1.bf16.msra.mxu0 0
        %3306 = vmatprep.subr.bf16.mxu0 0
        %3307 = vmatpush1.bf16.msra.mxu0 0
        %3308 = vmatprep.subr.bf16.mxu0 0
        %3309 = vmatpush1.bf16.msra.mxu0 0
        %3310 = vmatprep.subr.bf16.mxu0 0
        %3311 = vmatpush1.bf16.msra.mxu0 0
        %3312 = vmatprep.subr.bf16.mxu0 0
        %3313 = vmatpush1.bf16.msra.mxu0 0
        %3314 = vmatprep.subr.bf16.mxu0 0
        %3315 = vmatpush1.bf16.msra.mxu0 0
        %3316 = vmatprep.subr.bf16.mxu0 %v3300
        %3317 = vmatpush1.bf16.msra.mxu0 %v3299
        %3318 = vmatprep.subr.bf16.mxu0 %v3298
        %3319 = vmatpush1.bf16.msra.mxu0 %v3297
        %3320 = vmatprep.subr.bf16.mxu0 0
        %3321 = vmatpush2.bf16.msra.mxu0 0
        %3322 = vmatprep.subr.bf16.mxu0 0
        %3323 = vmatpush2.bf16.msra.mxu0 0
        %3324 = vmatprep.subr.bf16.mxu0 0
        %3325 = vmatpush2.bf16.msra.mxu0 0
        %3326 = vmatprep.subr.bf16.mxu0 0
        %3327 = vmatpush2.bf16.msra.mxu0 0
        %3328 = vmatprep.subr.bf16.mxu0 0
        %3329 = vmatpush2.bf16.msra.mxu0 0
        %3330 = vmatprep.subr.bf16.mxu0 0
        %3331 = vmatpush2.bf16.msra.mxu0 0
        %3332 = vmatprep.subr.bf16.mxu0 0
        %3333 = vmatpush2.bf16.msra.mxu0 0
        %3334 = vmatprep.subr.bf16.mxu0 0
        %3335 = vmatpush2.bf16.msra.mxu0 0
        %3336 = vmatprep.mubr.bf16.mxu0 0
        %3337 = vmatmul.mubr.bf16.gmra.mxu0 %v3302
        %v3338 = vpop.f32.mrf.mxu0
        %v3339 = vadd.f32 0.0, %v3338
        %v3340 = vpop.f32.mrf.mxu0
        %v3341 = vadd.f32 0.0, %v3340
        %v3342 = vpop.f32.mrf.mxu0
        %v3343 = vpop.f32.mrf.mxu0
        %3344 = vdwg.mxu0
        %v3345 = vadd.f32 %v3261, %v3339
        %v3346 = vadd.f32 %v3262, %v3341
        %v3347 = vld [vmem:[%s549] sm:$0xf]
        %3349 = vset.pattern.permute.xlu0 0
        %3350 = vperm.xlu0 %3349, %v3347
        %v3351 = vpop.permute.xlu0 %3350
        %v3353 = vadd.f32 %v3345, %v3351
        %v3354 = vadd.f32 %v3346, %v3351
        %v3355 = vadd.f32 %v3353, %v558
        %v3356 = vadd.f32 %v3354, %v560
        %v3357 = vld [vmem:[%s519] sm:$0xff]
        %v3358 = vadd.f32 %v3357, 0.05
        %v3359 = vld [vmem:[%s513] sm:$0xff]
        %v3360 = vmul.f32 %v3355, 0.05
        %v3361 = vmul.f32 %v3356, 0.05
        %v3364 = vcombine.low %v3360, %v3361
        %v3366 = vadd.f32 %v3359, %v3364
        %v3367 = vmul.f32 %v3358, %v558
        %v3368 = vsub.f32 %v3366, %v3367
        %v3369 = vmul.f32 %v3368, %v3368
        %v3371 = vcombine.high %v3369, %v3369
        %vm3373 = vcmask 1043456
        %v3374 = vsel %vm3373, %v3369, 0.0
        %v3375 = vsel %vm3373, %v3371, 0.0
        %v3376 = vadd.f32 %v3374, %v3375
        %3377 = vadd.xlane.f32.xlu0 %v3376
        %v3378 = vpop.xlane.xlu0 %3377
        %v3379 = vrot.slane %v3378, 4
        %v3380 = vadd.f32 %v3378, %v3379
        %v3381 = vrot.slane %v3380, 2
        %v3382 = vadd.f32 %v3380, %v3381
        %v3383 = vrot.slane %v3382, 1
        %v3384 = vadd.f32 %v3382, %v3383
        %s3385 = vtos %v3384
        %v3386 = vmul.f32 %v3358, %v3368
        %v3387 = vmul.f32 %v3368, %v3386
        %v3389 = vcombine.high %v3387, %v3387
        %v3391 = vsel %vm3373, %v3387, 0.0
        %v3392 = vsel %vm3373, %v3389, 0.0
        %v3393 = vadd.f32 %v3391, %v3392
        %3394 = vadd.xlane.f32.xlu0 %v3393
        %v3395 = vpop.xlane.xlu0 %3394
        %v3396 = vrot.slane %v3395, 4
        %v3397 = vadd.f32 %v3395, %v3396
        %v3398 = vrot.slane %v3397, 2
        %v3399 = vadd.f32 %v3397, %v3398
        %v3400 = vrot.slane %v3399, 1
        %v3401 = vadd.f32 %v3399, %v3400
        %s3402 = vtos %v3401
        %s3403 = sadd.f32 %s3402, 1e-12
        %v3404 = vstv %s3403
        %v3405 = vrcp.pop %v3404
        %s3406 = vtos %v3405
        %s3407 = smul.f32 %s3385, %s3406
        %v3408 = vstv %s3407
        %v3409 = vmul.f32 %v3408, %v3368
        %v3410 = vadd.f32 %v558, %v3409
        %v3411 = vmul.f32 %v3408, %v3386
        %v3412 = vsub.f32 %v3368, %v3411
        %v3413 = vmul.f32 %v3412, %v3412
        %v3415 = vcombine.high %v3413, %v3413
        %v3417 = vsel %vm3373, %v3413, 0.0
        %v3418 = vsel %vm3373, %v3415, 0.0
        %v3419 = vadd.f32 %v3417, %v3418
        %3420 = vadd.xlane.f32.xlu0 %v3419
        %v3421 = vpop.xlane.xlu0 %3420
        %v3422 = vrot.slane %v3421, 4
        %v3423 = vadd.f32 %v3421, %v3422
        %v3424 = vrot.slane %v3423, 2
        %v3425 = vadd.f32 %v3423, %v3424
        %v3426 = vrot.slane %v3425, 1
        %v3427 = vadd.f32 %v3425, %v3426
        %s3428 = vtos %v3427
        %s3429 = sadd.f32 %s3385, 1e-12
        %v3430 = vstv %s3429
        %v3431 = vrcp.pop %v3430
        %s3432 = vtos %v3431
        %s3433 = smul.f32 %s3428, %s3432
        %v3434 = vstv %s3433
        %v3435 = vmul.f32 %v3434, %v3368
        %v3436 = vadd.f32 %v3412, %v3435
        %v3437 = vmul.f32 %v3358, %v3436
        %v3438 = vmul.f32 %v3436, %v3437
        %v3440 = vcombine.high %v3438, %v3438
        %v3442 = vsel %vm3373, %v3438, 0.0
        %v3443 = vsel %vm3373, %v3440, 0.0
        %v3444 = vadd.f32 %v3442, %v3443
        %3445 = vadd.xlane.f32.xlu0 %v3444
        %v3446 = vpop.xlane.xlu0 %3445
        %v3447 = vrot.slane %v3446, 4
        %v3448 = vadd.f32 %v3446, %v3447
        %v3449 = vrot.slane %v3448, 2
        %v3450 = vadd.f32 %v3448, %v3449
        %v3451 = vrot.slane %v3450, 1
        %v3452 = vadd.f32 %v3450, %v3451
        %s3453 = vtos %v3452
        %s3454 = sadd.f32 %s3453, 1e-12
        %v3455 = vstv %s3454
        %v3456 = vrcp.pop %v3455
        %s3457 = vtos %v3456
        %s3458 = smul.f32 %s3428, %s3457
        %v3459 = vstv %s3458
        %v3460 = vmul.f32 %v3459, %v3436
        %v3461 = vadd.f32 %v3410, %v3460
        %v3462 = vmul.f32 %v3459, %v3437
        %v3463 = vsub.f32 %v3412, %v3462
        %v3464 = vmul.f32 %v3463, %v3463
        %v3466 = vcombine.high %v3464, %v3464
        %v3468 = vsel %vm3373, %v3464, 0.0
        %v3469 = vsel %vm3373, %v3466, 0.0
        %v3470 = vadd.f32 %v3468, %v3469
        %3471 = vadd.xlane.f32.xlu0 %v3470
        %v3472 = vpop.xlane.xlu0 %3471
        %v3473 = vrot.slane %v3472, 4
        %v3474 = vadd.f32 %v3472, %v3473
        %v3475 = vrot.slane %v3474, 2
        %v3476 = vadd.f32 %v3474, %v3475
        %v3477 = vrot.slane %v3476, 1
        %v3478 = vadd.f32 %v3476, %v3477
        %s3479 = vtos %v3478
        %s3480 = sadd.f32 %s3428, 1e-12
        %v3481 = vstv %s3480
        %v3482 = vrcp.pop %v3481
        %s3483 = vtos %v3482
        %s3484 = smul.f32 %s3479, %s3483
        %v3485 = vstv %s3484
        %v3486 = vmul.f32 %v3485, %v3436
        %v3487 = vadd.f32 %v3463, %v3486
        %v3488 = vmul.f32 %v3358, %v3487
        %v3489 = vmul.f32 %v3487, %v3488
        %v3491 = vcombine.high %v3489, %v3489
        %v3493 = vsel %vm3373, %v3489, 0.0
        %v3494 = vsel %vm3373, %v3491, 0.0
        %v3495 = vadd.f32 %v3493, %v3494
        %3496 = vadd.xlane.f32.xlu0 %v3495
        %v3497 = vpop.xlane.xlu0 %3496
        %v3498 = vrot.slane %v3497, 4
        %v3499 = vadd.f32 %v3497, %v3498
        %v3500 = vrot.slane %v3499, 2
        %v3501 = vadd.f32 %v3499, %v3500
        %v3502 = vrot.slane %v3501, 1
        %v3503 = vadd.f32 %v3501, %v3502
        %s3504 = vtos %v3503
        %s3505 = sadd.f32 %s3504, 1e-12
        %v3506 = vstv %s3505
        %v3507 = vrcp.pop %v3506
        %s3508 = vtos %v3507
        %s3509 = smul.f32 %s3479, %s3508
        %v3510 = vstv %s3509
        %v3511 = vmul.f32 %v3510, %v3487
        %v3512 = vadd.f32 %v3461, %v3511
        %v3513 = vmul.f32 %v3510, %v3488
        %v3514 = vsub.f32 %v3463, %v3513
        %v3515 = vmul.f32 %v3514, %v3514
        %v3517 = vcombine.high %v3515, %v3515
        %v3519 = vsel %vm3373, %v3515, 0.0
        %v3520 = vsel %vm3373, %v3517, 0.0
        %v3521 = vadd.f32 %v3519, %v3520
        %3522 = vadd.xlane.f32.xlu0 %v3521
        %v3523 = vpop.xlane.xlu0 %3522
        %v3524 = vrot.slane %v3523, 4
        %v3525 = vadd.f32 %v3523, %v3524
        %v3526 = vrot.slane %v3525, 2
        %v3527 = vadd.f32 %v3525, %v3526
        %v3528 = vrot.slane %v3527, 1
        %v3529 = vadd.f32 %v3527, %v3528
        %s3530 = vtos %v3529
        %s3531 = sadd.f32 %s3479, 1e-12
        %v3532 = vstv %s3531
        %v3533 = vrcp.pop %v3532
        %s3534 = vtos %v3533
        %s3535 = smul.f32 %s3530, %s3534
        %v3536 = vstv %s3535
        %v3537 = vmul.f32 %v3536, %v3487
        %v3538 = vadd.f32 %v3514, %v3537
        %v3539 = vmul.f32 %v3358, %v3538
        %v3540 = vmul.f32 %v3538, %v3539
        %v3542 = vcombine.high %v3540, %v3540
        %v3544 = vsel %vm3373, %v3540, 0.0
        %v3545 = vsel %vm3373, %v3542, 0.0
        %v3546 = vadd.f32 %v3544, %v3545
        %3547 = vadd.xlane.f32.xlu0 %v3546
        %v3548 = vpop.xlane.xlu0 %3547
        %v3549 = vrot.slane %v3548, 4
        %v3550 = vadd.f32 %v3548, %v3549
        %v3551 = vrot.slane %v3550, 2
        %v3552 = vadd.f32 %v3550, %v3551
        %v3553 = vrot.slane %v3552, 1
        %v3554 = vadd.f32 %v3552, %v3553
        %s3555 = vtos %v3554
        %s3556 = sadd.f32 %s3555, 1e-12
        %v3557 = vstv %s3556
        %v3558 = vrcp.pop %v3557
        %s3559 = vtos %v3558
        %s3560 = smul.f32 %s3530, %s3559
        %v3561 = vstv %s3560
        %v3562 = vmul.f32 %v3561, %v3538
        %v3563 = vadd.f32 %v3512, %v3562
        %v3564 = vmul.f32 %v3561, %v3539
        %v3565 = vsub.f32 %v3514, %v3564
        %v3566 = vmul.f32 %v3565, %v3565
        %v3568 = vcombine.high %v3566, %v3566
        %v3570 = vsel %vm3373, %v3566, 0.0
        %v3571 = vsel %vm3373, %v3568, 0.0
        %v3572 = vadd.f32 %v3570, %v3571
        %3573 = vadd.xlane.f32.xlu0 %v3572
        %v3574 = vpop.xlane.xlu0 %3573
        %v3575 = vrot.slane %v3574, 4
        %v3576 = vadd.f32 %v3574, %v3575
        %v3577 = vrot.slane %v3576, 2
        %v3578 = vadd.f32 %v3576, %v3577
        %v3579 = vrot.slane %v3578, 1
        %v3580 = vadd.f32 %v3578, %v3579
        %s3581 = vtos %v3580
        %s3582 = sadd.f32 %s3530, 1e-12
        %v3583 = vstv %s3582
        %v3584 = vrcp.pop %v3583
        %s3585 = vtos %v3584
        %s3586 = smul.f32 %s3581, %s3585
        %v3587 = vstv %s3586
        %v3588 = vmul.f32 %v3587, %v3538
        %v3589 = vadd.f32 %v3565, %v3588
        %v3590 = vmul.f32 %v3358, %v3589
        %v3591 = vmul.f32 %v3589, %v3590
        %v3593 = vcombine.high %v3591, %v3591
        %v3595 = vsel %vm3373, %v3591, 0.0
        %v3596 = vsel %vm3373, %v3593, 0.0
        %v3597 = vadd.f32 %v3595, %v3596
        %3598 = vadd.xlane.f32.xlu0 %v3597
        %v3599 = vpop.xlane.xlu0 %3598
        %v3600 = vrot.slane %v3599, 4
        %v3601 = vadd.f32 %v3599, %v3600
        %v3602 = vrot.slane %v3601, 2
        %v3603 = vadd.f32 %v3601, %v3602
        %v3604 = vrot.slane %v3603, 1
        %v3605 = vadd.f32 %v3603, %v3604
        %s3606 = vtos %v3605
        %s3607 = sadd.f32 %s3606, 1e-12
        %v3608 = vstv %s3607
        %v3609 = vrcp.pop %v3608
        %s3610 = vtos %v3609
        %s3611 = smul.f32 %s3581, %s3610
        %v3612 = vstv %s3611
        %v3613 = vmul.f32 %v3612, %v3589
        %v3614 = vadd.f32 %v3563, %v3613
        %v3615 = vmul.f32 %v3612, %v3590
        %v3616 = vsub.f32 %v3565, %v3615
        %v3617 = vmul.f32 %v3616, %v3616
        %v3619 = vcombine.high %v3617, %v3617
        %v3621 = vsel %vm3373, %v3617, 0.0
        %v3622 = vsel %vm3373, %v3619, 0.0
        %v3623 = vadd.f32 %v3621, %v3622
        %3624 = vadd.xlane.f32.xlu0 %v3623
        %v3625 = vpop.xlane.xlu0 %3624
        %v3626 = vrot.slane %v3625, 4
        %v3627 = vadd.f32 %v3625, %v3626
        %v3628 = vrot.slane %v3627, 2
        %v3629 = vadd.f32 %v3627, %v3628
        %v3630 = vrot.slane %v3629, 1
        %v3631 = vadd.f32 %v3629, %v3630
        %s3632 = vtos %v3631
        %s3633 = sadd.f32 %s3581, 1e-12
        %v3634 = vstv %s3633
        %v3635 = vrcp.pop %v3634
        %s3636 = vtos %v3635
        %s3637 = smul.f32 %s3632, %s3636
        %v3638 = vstv %s3637
        %v3639 = vmul.f32 %v3638, %v3589
        %v3640 = vadd.f32 %v3616, %v3639
        %v3641 = vmul.f32 %v3358, %v3640
        %v3642 = vmul.f32 %v3640, %v3641
        %v3644 = vcombine.high %v3642, %v3642
        %v3646 = vsel %vm3373, %v3642, 0.0
        %v3647 = vsel %vm3373, %v3644, 0.0
        %v3648 = vadd.f32 %v3646, %v3647
        %3649 = vadd.xlane.f32.xlu0 %v3648
        %v3650 = vpop.xlane.xlu0 %3649
        %v3651 = vrot.slane %v3650, 4
        %v3652 = vadd.f32 %v3650, %v3651
        %v3653 = vrot.slane %v3652, 2
        %v3654 = vadd.f32 %v3652, %v3653
        %v3655 = vrot.slane %v3654, 1
        %v3656 = vadd.f32 %v3654, %v3655
        %s3657 = vtos %v3656
        %s3658 = sadd.f32 %s3657, 1e-12
        %v3659 = vstv %s3658
        %v3660 = vrcp.pop %v3659
        %s3661 = vtos %v3660
        %s3662 = smul.f32 %s3632, %s3661
        %v3663 = vstv %s3662
        %v3664 = vmul.f32 %v3663, %v3640
        %v3665 = vadd.f32 %v3614, %v3664
        %v3666 = vmul.f32 %v3663, %v3641
        %v3667 = vsub.f32 %v3616, %v3666
        %v3668 = vmul.f32 %v3667, %v3667
        %v3670 = vcombine.high %v3668, %v3668
        %v3672 = vsel %vm3373, %v3668, 0.0
        %v3673 = vsel %vm3373, %v3670, 0.0
        %v3674 = vadd.f32 %v3672, %v3673
        %3675 = vadd.xlane.f32.xlu0 %v3674
        %v3676 = vpop.xlane.xlu0 %3675
        %v3677 = vrot.slane %v3676, 4
        %v3678 = vadd.f32 %v3676, %v3677
        %v3679 = vrot.slane %v3678, 2
        %v3680 = vadd.f32 %v3678, %v3679
        %v3681 = vrot.slane %v3680, 1
        %v3682 = vadd.f32 %v3680, %v3681
        %s3683 = vtos %v3682
        %s3684 = sadd.f32 %s3632, 1e-12
        %v3685 = vstv %s3684
        %v3686 = vrcp.pop %v3685
        %s3687 = vtos %v3686
        %s3688 = smul.f32 %s3683, %s3687
        %v3689 = vstv %s3688
        %v3690 = vmul.f32 %v3689, %v3640
        %v3691 = vadd.f32 %v3667, %v3690
        %v3692 = vmul.f32 %v3358, %v3691
        %v3693 = vmul.f32 %v3691, %v3692
        %v3695 = vcombine.high %v3693, %v3693
        %v3697 = vsel %vm3373, %v3693, 0.0
        %v3698 = vsel %vm3373, %v3695, 0.0
        %v3699 = vadd.f32 %v3697, %v3698
        %3700 = vadd.xlane.f32.xlu0 %v3699
        %v3701 = vpop.xlane.xlu0 %3700
        %v3702 = vrot.slane %v3701, 4
        %v3703 = vadd.f32 %v3701, %v3702
        %v3704 = vrot.slane %v3703, 2
        %v3705 = vadd.f32 %v3703, %v3704
        %v3706 = vrot.slane %v3705, 1
        %v3707 = vadd.f32 %v3705, %v3706
        %s3708 = vtos %v3707
        %s3709 = sadd.f32 %s3708, 1e-12
        %v3710 = vstv %s3709
        %v3711 = vrcp.pop %v3710
        %s3712 = vtos %v3711
        %s3713 = smul.f32 %s3683, %s3712
        %v3714 = vstv %s3713
        %v3715 = vmul.f32 %v3714, %v3691
        %v3716 = vadd.f32 %v3665, %v3715
        %v3717 = vmul.f32 %v3714, %v3692
        %v3718 = vsub.f32 %v3667, %v3717
        %v3719 = vmul.f32 %v3718, %v3718
        %v3721 = vcombine.high %v3719, %v3719
        %v3723 = vsel %vm3373, %v3719, 0.0
        %v3724 = vsel %vm3373, %v3721, 0.0
        %v3725 = vadd.f32 %v3723, %v3724
        %3726 = vadd.xlane.f32.xlu0 %v3725
        %v3727 = vpop.xlane.xlu0 %3726
        %v3728 = vrot.slane %v3727, 4
        %v3729 = vadd.f32 %v3727, %v3728
        %v3730 = vrot.slane %v3729, 2
        %v3731 = vadd.f32 %v3729, %v3730
        %v3732 = vrot.slane %v3731, 1
        %v3733 = vadd.f32 %v3731, %v3732
        %s3734 = vtos %v3733
        %s3735 = sadd.f32 %s3683, 1e-12
        %v3736 = vstv %s3735
        %v3737 = vrcp.pop %v3736
        %s3738 = vtos %v3737
        %s3739 = smul.f32 %s3734, %s3738
        %v3740 = vstv %s3739
        %v3741 = vmul.f32 %v3740, %v3691
        %v3742 = vadd.f32 %v3718, %v3741
        %v3743 = vmul.f32 %v3358, %v3742
        %v3744 = vmul.f32 %v3742, %v3743
        %v3746 = vcombine.high %v3744, %v3744
        %v3748 = vsel %vm3373, %v3744, 0.0
        %v3749 = vsel %vm3373, %v3746, 0.0
        %v3750 = vadd.f32 %v3748, %v3749
        %3751 = vadd.xlane.f32.xlu0 %v3750
        %v3752 = vpop.xlane.xlu0 %3751
        %v3753 = vrot.slane %v3752, 4
        %v3754 = vadd.f32 %v3752, %v3753
        %v3755 = vrot.slane %v3754, 2
        %v3756 = vadd.f32 %v3754, %v3755
        %v3757 = vrot.slane %v3756, 1
        %v3758 = vadd.f32 %v3756, %v3757
        %s3759 = vtos %v3758
        %s3760 = sadd.f32 %s3759, 1e-12
        %v3761 = vstv %s3760
        %v3762 = vrcp.pop %v3761
        %s3763 = vtos %v3762
        %s3764 = smul.f32 %s3734, %s3763
        %v3765 = vstv %s3764
        %v3766 = vmul.f32 %v3765, %v3742
        %v3767 = vadd.f32 %v3716, %v3766
        %3768 = vst [vmem:[%s507] sm:$0xff] %v3767
        %s3769 = sand.u32 %s302, 1
        %s3770 = scalar_lea.sflag [#allocation4], %s3769
        %s3771 = sand.u32 %s302, 1
        %s3772 = smul.addr %s3771, 8
        %s3773 = scalar_lea.vmem [#allocation5], %s3772
        // Predicated region
        $region69: #{tpu_custom_call.1} parent=59 // pred_check
          %p3774 = pneg %p312
        $region70: #{tpu_custom_call.1} parent=59 // pred_check_branch
          %3776 = sbr.rel (%p3774) target = $region72
        $region71: #{tpu_custom_call.1} parent=59 // pred_region
          %s3777 = smul.u32 2, %s31
          %s3779 = ssub.s32 128, 128
          %3780 = vsyncadd %s3770, %s3779
          %s3781 = smul.addr %s3777, 64
          %s3782 = scalar_lea.hbm %s10, %s3781
          %s3784 = sshll.u32 %s3773, 4
          %s3785 = int_to_ptr.vmem [resolvable:$true] %s3784
          %3787 = dma.vmem_to_hbm [thread:$0]  %s3785, 128, %s3782, %s3770
        $region72: #{tpu_custom_call.1} parent=59 // pred_fallthru
          _
      $region60: #{tpu_custom_call.1} parent=5 // pred_fallthru
        _
      %p3788 = scmp.le.s32.totalorder 2, %s22
      // Predicated region
      $region73: #{tpu_custom_call.1} parent=5 // pred_check
        %p3789 = pneg %p3788
      $region74: #{tpu_custom_call.1} parent=5 // pred_check_branch
        %3791 = sbr.rel (%p3789) target = $region76
      $region75: #{tpu_custom_call.1} parent=5 // pred_region
        %s3792 = ssub.s32 %s22, 2
        // Predicated region
        $region77: #{tpu_custom_call.1} parent=75 // pred_check
          %p3793 = pneg %p318
        $region78: #{tpu_custom_call.1} parent=75 // pred_check_branch
          %3795 = sbr.rel (%p3793) target = $region80
        $region79: #{tpu_custom_call.1} parent=75 // pred_region
          %s3796 = sand.u32 %s303, 1
          %s3797 = scalar_lea.sflag [#allocation4], %s3796
          %s3798 = sand.u32 %s303, 1
          %s3799 = smul.addr %s3798, 8
          %s3800 = scalar_lea.vmem [#allocation5], %s3799
          %3801 = dma.done %s3797, 128
        $region80: #{tpu_custom_call.1} parent=75 // pred_fallthru
          _
      $region76: #{tpu_custom_call.1} parent=5 // pred_fallthru
        _
    $region6: #{tpu_custom_call.1} parent=1 // loop_footer
      %s26 = sadd.s32 1, %s22
    $region7: #{tpu_custom_call.1} parent=1 // loop_footer_branch
      %21 = sbr.rel target = $region3
    $region8: #{tpu_custom_call.1} parent=1 // loop_exit
      _
    %3802 = vsyncpa [#allocation3], 1
    %s3803 = scalar_lea.sflag [#allocation3], 1
    %3804 = vsyncpa %s3803, 1
    %3805 = vsyncpa [#allocation4], 1
    %s3806 = scalar_lea.sflag [#allocation4], 1
    %3807 = vsyncpa %s3806, 1

</llo_original>
